<compile_context>
chip_gen: v6e
topology: v6e:2x2x1
jax: 0.10.0
libtpu: 0.0.40
codegen_flags: <defaults>
</compile_context>

<pallas_src>
import functools
import math

import jax
import jax.numpy as jnp
from jax.experimental import pallas as pl
from jax.experimental.pallas import tpu as pltpu

BN_EPS = 1e-5
BN_SCALE = float(1.0 / math.sqrt(1.0 + BN_EPS))  # eval BatchNorm w/ default stats

BLOCK_ROWS = 2048                    # 1-2K rows: ~85%+ of HBM roofline per step
VMEM_LIMIT_BYTES = 48 * 1024 * 1024  # explicit; < physical on v5e/v6e/v7x


def _round_up(x, m):
    return ((x + m - 1) // m) * m


def _apply_act(y, act):
    if act == "relu":
        return jnp.maximum(y, 0.0)
    if act == "gelu":
        return jax.nn.gelu(y)        # tanh approx (see TODO above)
    return y


# ---------------------------------------------------------------------------
# Generic row-tiled launcher
# ---------------------------------------------------------------------------
def _row_blocked_call(kernel, operands, tiled, out_info, *,
                      block_rows=BLOCK_ROWS):
    """Launch a 1-D row-tiled Pallas kernel.

    operands : list of 2-D arrays; tiled[i]=True -> row-tiled, False -> full
               array (weights / (1,N) biases).
    out_info : list of (num_cols, dtype) of row-tiled outputs.
    """
    rows = [a.shape[0] for a, t in zip(operands, tiled) if t]
    m = rows[0]
    assert all(r == m for r in rows)
    tm = m if m <= block_rows else block_rows
    assert m % tm == 0, "row count must be pre-padded to a block_rows multiple"

    in_specs = []
    for a, t in zip(operands, tiled):
        if t:
            in_specs.append(pl.BlockSpec((tm, a.shape[1]), lambda i: (i, 0)))
        else:
            in_specs.append(pl.BlockSpec(a.shape, lambda i: (0, 0)))
    out_specs = tuple(pl.BlockSpec((tm, c), lambda i: (i, 0))
                      for c, _ in out_info)
    out_shape = tuple(jax.ShapeDtypeStruct((m, c), dt) for c, dt in out_info)

    res = pl.pallas_call(
        kernel,
        grid=(m // tm,),
        in_specs=in_specs,
        out_specs=out_specs,
        out_shape=out_shape,
        compiler_params=pltpu.CompilerParams(
            dimension_semantics=("parallel",),
            vmem_limit_bytes=VMEM_LIMIT_BYTES),
    )(*operands)
    return res if len(out_info) > 1 else res[0]


# ---------------------------------------------------------------------------
# Pallas kernels
# ---------------------------------------------------------------------------
def _linear_kernel(*refs, act, has_res, res_scale):
    """o = act(x @ w + b [+ res_scale * res]); K fits one block."""
    if has_res:
        x_ref, r_ref, w_ref, b_ref, o_ref = refs
    else:
        x_ref, w_ref, b_ref, o_ref = refs
        r_ref = None
    y = jnp.dot(x_ref[...], w_ref[...], preferred_element_type=jnp.float32)
    y = y + b_ref[...]
    if r_ref is not None:
        y = y + r_ref[...].astype(jnp.float32) * res_scale
    o_ref[...] = _apply_act(y, act).astype(o_ref.dtype)


def _mlp2_kernel(x_ref, w1_ref, b1_ref, w2_ref, b2_ref, o_ref, *, act1, act2):
    """Two-layer MLP, hidden kept on-chip: o = act2(act1(x@W1+b1)@W2+b2)."""
    h = jnp.dot(x_ref[...], w1_ref[...],
                preferred_element_type=jnp.float32) + b1_ref[...]
    h = _apply_act(h, act1).astype(jnp.bfloat16)
    y = jnp.dot(h, w2_ref[...],
                preferred_element_type=jnp.float32) + b2_ref[...]
    o_ref[...] = _apply_act(y, act2).astype(o_ref.dtype)


def _proj4_kernel(x_ref, wq_ref, wk_ref, wv_ref, ws_ref,
                  bq_ref, bk_ref, bv_ref, bs_ref,
                  q_ref, k_ref, v_ref, s_ref):
    """Fused q|k|v|skip projection: one x DMA, 4 outputs written in-block."""
    x = x_ref[...]

    def proj(w_ref, b_ref, o_ref):
        y = jnp.dot(x, w_ref[...],
                    preferred_element_type=jnp.float32) + b_ref[...]
        o_ref[...] = y.astype(o_ref.dtype)

    proj(wq_ref, bq_ref, q_ref)
    proj(wk_ref, bk_ref, k_ref)
    proj(wv_ref, bv_ref, v_ref)
    proj(ws_ref, bs_ref, s_ref)


def _edge_attn_kernel(q_ref, k_ref, v_ref, ea_ref, we_ref, red_ref,
                      logit_ref, msg_ref):
    """Fused per-edge attention prep (lin_edge projection fused in).

    e             = edge_attr @ We            (lin_edge, no bias)
    logits[e, h]  = sum_c q*(k+e) per head / sqrt(C)   (via reduction matmul)
    msg[e, :]     = v + e                     (bf16 output)
    """
    e = jnp.dot(ea_ref[...], we_ref[...], preferred_element_type=jnp.float32)
    t = q_ref[...].astype(jnp.float32) * (k_ref[...].astype(jnp.float32) + e)
    logit_ref[...] = jnp.dot(t, red_ref[...],
                             preferred_element_type=jnp.float32)
    msg_ref[...] = (v_ref[...].astype(jnp.float32) + e).astype(msg_ref.dtype)


def _node_ffn_kernel(x_ref, w1_ref, b1_ref, w2_ref, b2_ref, wx_ref, wy_ref,
                     node_ref, nx_ref, ny_ref):
    """Node FFN + norm2 + edge-side node projections, all in one launch.

    h   = GELU(x @ W1 + b1)
    y   = h @ (W2*s) + b2*s + x*s          (= norm2(FFN(x) + x), s = BN scale)
    out = GELU(y), nx = y @ Wx, ny = y @ Wy (Wx/Wy from the we1 split)
    """
    x = x_ref[...]
    h = jnp.dot(x, w1_ref[...],
                preferred_element_type=jnp.float32) + b1_ref[...]
    h = _apply_act(h, "gelu").astype(jnp.bfloat16)
    y = (jnp.dot(h, w2_ref[...], preferred_element_type=jnp.float32)
         + b2_ref[...] + x.astype(jnp.float32) * BN_SCALE)
    node_ref[...] = _apply_act(y, "gelu").astype(node_ref.dtype)
    yb = y.astype(jnp.bfloat16)
    nx_ref[...] = jnp.dot(yb, wx_ref[...],
                          preferred_element_type=jnp.float32).astype(nx_ref.dtype)
    ny_ref[...] = jnp.dot(yb, wy_ref[...],
                          preferred_element_type=jnp.float32).astype(ny_ref.dtype)


def _edge_update_kernel(ea_ref, nx_ref, ny_ref, we_ref, b1_ref, w2_ref, b2_ref,
                        o_ref):
    """Edge MLP with the concat folded away:

    h   = GELU(edge_attr @ W_e + nx[src] + ny[dst] + b1)
    out = GELU(h @ (We2*s) + b2*s)          (norm_edge folded, then act)
    """
    pre = (jnp.dot(ea_ref[...], we_ref[...], preferred_element_type=jnp.float32)
           + nx_ref[...].astype(jnp.float32)
           + ny_ref[...].astype(jnp.float32)
           + b1_ref[...])
    h = _apply_act(pre, "gelu").astype(jnp.bfloat16)
    y = jnp.dot(h, w2_ref[...],
                preferred_element_type=jnp.float32) + b2_ref[...]
    o_ref[...] = _apply_act(y, "gelu").astype(o_ref.dtype)


# ---------------------------------------------------------------------------
# Kernel wrappers
# ---------------------------------------------------------------------------
def pallas_linear(x, w, b, *, act="none", residual=None, res_scale=1.0,
                  out_dtype=jnp.float32):
    M, K = x.shape
    Kw, N = w.shape
    assert K == Kw, (K, Kw)
    if M < 8:   # graph-level matmuls (2 rows): XLA is cheaper than a launch
        y = jnp.dot(x.astype(jnp.float32), w.astype(jnp.float32)) + b
        if residual is not None:
            y = y + residual.astype(jnp.float32) * res_scale
        return _apply_act(y, act).astype(out_dtype)

    operands = [x.astype(jnp.bfloat16)]
    tiled = [True]
    if residual is not None:
        operands.append(residual.astype(jnp.bfloat16))
        tiled.append(True)
    operands += [w, b]
    tiled += [False, False]
    kern = functools.partial(_linear_kernel, act=act,
                             has_res=residual is not None,
                             res_scale=float(res_scale))
    return _row_blocked_call(kern, operands, tiled, [(N, out_dtype)])


def pallas_mlp2(x, w1, b1, w2, b2, *, act1, act2, out_dtype=jnp.bfloat16):
    N = w2.shape[1]
    kern = functools.partial(_mlp2_kernel, act1=act1, act2=act2)
    return _row_blocked_call(kern,
                             [x.astype(jnp.bfloat16), w1, b1, w2, b2],
                             [True, False, False, False, False],
                             [(N, out_dtype)])


def pallas_qkvs_proj(x, p, hc):
    return _row_blocked_call(
        _proj4_kernel,
        [x.astype(jnp.bfloat16),
         p["wq"], p["wk"], p["wv"], p["ws"],
         p["bq"], p["bk"], p["bv"], p["bs"]],
        [True] + [False] * 8,
        [(hc, jnp.bfloat16), (hc, jnp.bfloat16), (hc, jnp.bfloat16),
         (hc, jnp.float32)])


def pallas_edge_attention(q_i, k_j, v_j, edge_attr, we, red, heads, hc):
    return _row_blocked_call(
        _edge_attn_kernel,
        [q_i, k_j, v_j, edge_attr.astype(jnp.bfloat16), we, red],
        [True, True, True, True, False, False],
        [(heads, jnp.float32), (hc, jnp.bfloat16)])


def pallas_node_ffn(x, w1, b1, w2s, b2s, wx, wy):
    out_ch = w2s.shape[1]
    d = wx.shape[1]
    return _row_blocked_call(
        _node_ffn_kernel,
        [x.astype(jnp.bfloat16), w1, b1, w2s, b2s, wx, wy],
        [True] + [False] * 6,
        [(out_ch, jnp.bfloat16), (d, jnp.bfloat16), (d, jnp.bfloat16)])


def pallas_edge_update(edge_attr, nx_g, ny_g, w_e, b1, w2s, b2s):
    d = w2s.shape[1]
    return _row_blocked_call(
        _edge_update_kernel,
        [edge_attr.astype(jnp.bfloat16), nx_g.astype(jnp.bfloat16),
         ny_g.astype(jnp.bfloat16), w_e, b1, w2s, b2s],
        [True, True, True, False, False, False, False],
        [(d, jnp.bfloat16)])


# ---------------------------------------------------------------------------
# Plain-JAX glue (data-dependent segment ops)
# ---------------------------------------------------------------------------
def segment_softmax(logits, index, num_segments):
    seg_max = jax.ops.segment_max(logits, index, num_segments=num_segments)
    seg_max = jnp.where(jnp.isfinite(seg_max), seg_max, 0.0)
    ex = jnp.exp(logits - seg_max[index])
    seg_sum = jax.ops.segment_sum(ex, index, num_segments=num_segments)
    return ex / (seg_sum[index] + 1e-16)


# ---------------------------------------------------------------------------
# Model pieces
# ---------------------------------------------------------------------------
def attention_conv(x, edge_attr, src, dst, p, heads, dim_head):
    """PyG TransformerConv (concat=True, root_weight=True, beta=False)."""
    n = x.shape[0]
    hc = heads * dim_head

    q, k, v, skip = pallas_qkvs_proj(x, p, hc)

    # TODO(synk): gathers + segment softmax/scatter-add kept in plain JAX;
    # scalar-prefetched in-kernel gathers would cut the (E,HC) HBM traffic.
    q_i, k_j, v_j = q[dst], k[src], v[src]

    logits, msg = pallas_edge_attention(q_i, k_j, v_j, edge_attr,
                                        p["we"], p["red"], heads, hc)
    alpha = segment_softmax(logits, dst, n)                      # (E, H)

    msg = msg.astype(jnp.float32).reshape(-1, heads, dim_head) * alpha[:, :, None]
    out = jax.ops.segment_sum(msg, dst, num_segments=n).reshape(n, hc)
    return out + skip


def attention_block(node_attr, edge_attr, src, dst, p, heads, out_ch):
    dim_head = out_ch // heads
    conv = attention_conv(node_attr, edge_attr, src, dst, p["mhsa"],
                          heads, dim_head)
    node_out1 = (conv * BN_SCALE).astype(jnp.bfloat16)           # norm1 (eval)

    # FFN + norm2 + per-node edge projections (Wx/Wy) in one fused launch
    node_gelu, nx, ny = pallas_node_ffn(node_out1, p["w1"], p["b1"],
                                        p["w2s"], p["b2s"], p["wx"], p["wy"])

    # per-edge: gather the per-node projections and run the fused edge MLP
    edge_out = pallas_edge_update(edge_attr, nx[src], ny[dst], p["we_e"],
                                  p["be1"], p["we2s"], p["be2s"])
    return node_gelu, edge_out


def _pad_last(x, k_target):
    pad = k_target - x.shape[-1]
    return x if pad == 0 else jnp.pad(x, ((0, 0), (0, pad)))


def _row_targets(n_nodes, n_edges, block_rows):
    def tgt(n):
        return n if n <= block_rows else _round_up(n, block_rows)
    n_t, e_t = tgt(n_nodes), tgt(n_edges)
    if e_t > n_edges and n_t == n_nodes:
        # guarantee at least one dummy node to absorb padded-edge scatters
        n_t = tgt(n_nodes + 1)
    return n_t, e_t


def attention_net_forward(params, settings, node_features, global_features,
                          edge_features, edge_index, batch_vec, num_graphs):
    n_real = node_features.shape[0]
    e_real = edge_features.shape[0]
    src, dst = edge_index[0], edge_index[1]

    # one-time row padding (only when counts exceed one row block); padded
    # nodes -> dummy pool segment, padded edges -> dummy node.
    n_pad, e_pad = _row_targets(n_real, e_real, BLOCK_ROWS)
    if n_pad != n_real:
        node_features = jnp.pad(node_features, ((0, n_pad - n_real), (0, 0)))
        batch_vec = jnp.concatenate(
            [batch_vec, jnp.full((n_pad - n_real,), num_graphs, jnp.int32)])
    if e_pad != e_real:
        edge_features = jnp.pad(edge_features, ((0, e_pad - e_real), (0, 0)))
        fill = jnp.full((e_pad - e_real,), n_real, jnp.int32)
        src = jnp.concatenate([src, fill])
        dst = jnp.concatenate([dst, fill])

    # pad raw feature K once to the K-padded first-layer weights
    nf = _pad_last(node_features, params["in_w"].shape[0])
    ef = _pad_last(edge_features, params["e1_w"].shape[0])

    # input embedding: BN -> Linear -> BN -> ReLU (both BNs folded into W/b)
    node_attr = pallas_linear(nf, params["in_w"], params["in_b"], act="relu",
                              out_dtype=jnp.bfloat16)

    # global embedding (2 rows -> XLA path): BN->Lin->ReLU->Lin->BN->ReLU
    u = pallas_linear(global_features, params["g1_w"], params["g1_b"],
                      act="relu")
    u = pallas_linear(u, params["g2_w"], params["g2_b"], act="relu")

    # edge embedding: BN -> Lin -> ReLU -> Lin -> ReLU, fused in one kernel
    edge_attr = pallas_mlp2(ef, params["e1_w"], params["e1_b"],
                            params["e2_w"], params["e2_b"],
                            act1="relu", act2="relu", out_dtype=jnp.bfloat16)

    for blk_p, (out_ch, heads, _dlb, _drop) in zip(params["blocks"],
                                                   settings["block_params"]):
        node_attr, edge_attr = attention_block(node_attr, edge_attr, src, dst,
                                               blk_p, heads, out_ch)

    # global mean pool (+1 dummy segment for padded nodes, sliced off)
    counts = jax.ops.segment_sum(
        jnp.ones((node_attr.shape[0],), jnp.float32), batch_vec,
        num_segments=num_graphs + 1)[:num_graphs]
    pooled = jax.ops.segment_sum(
        node_attr.astype(jnp.float32), batch_vec,
        num_segments=num_graphs + 1)[:num_graphs]
    pooled = pooled / jnp.maximum(counts, 1.0)[:, None]

    x = jnp.concatenate([u, pooled], axis=-1)
    for w, b in params["fc"]:
        x = pallas_linear(x, w, b, act="relu")      # Dropout = identity
    return pallas_linear(x, params["out_w"], params["out_b"])


# ---------------------------------------------------------------------------
# Deterministic parameter construction (weights prepped once: bf16, K-padded,
# BN folded, we1 split; biases reshaped to (1, N) f32; red matrix hoisted)
# ---------------------------------------------------------------------------
def _prep_w(w, fold=1.0, pad_k_to=None):
    if pad_k_to is not None and w.shape[0] % pad_k_to:
        w = jnp.pad(w, ((0, _round_up(w.shape[0], pad_k_to) - w.shape[0]),
                        (0, 0)))
    return (w * fold).astype(jnp.bfloat16)


def _prep_b(b, fold=1.0):
    return (b * fold).reshape(1, -1).astype(jnp.float32)


def _init_params(settings, key):
    keys = iter(jax.random.split(key, 256))

    def lin(fan_in, fan_out, bias=True):
        lim = math.sqrt(6.0 / (fan_in + fan_out))
        w = jax.random.uniform(next(keys), (fan_in, fan_out), jnp.float32,
                               -lim, lim)
        b = (jax.random.uniform(next(keys), (fan_out,), jnp.float32,
                                -lim, lim) if bias
             else jnp.zeros((fan_out,), jnp.float32))
        return w, b

    d = settings["dim_embedding"]
    p = {}

    # input embedding: fold input BN and output BN into W/b
    w, b = lin(settings["input_features"], d)
    p["in_w"] = _prep_w(w, fold=BN_SCALE * BN_SCALE, pad_k_to=16)
    p["in_b"] = _prep_b(b, fold=BN_SCALE)

    w, b = lin(settings["global_features"], 4 * d)
    p["g1_w"], p["g1_b"] = _prep_w(w, fold=BN_SCALE), _prep_b(b)
    w, b = lin(4 * d, d)
    p["g2_w"], p["g2_b"] = _prep_w(w, fold=BN_SCALE), _prep_b(b, fold=BN_SCALE)

    w, b = lin(settings["edge_features"], 4 * d)
    p["e1_w"], p["e1_b"] = _prep_w(w, fold=BN_SCALE, pad_k_to=16), _prep_b(b)
    w, b = lin(4 * d, d)
    p["e2_w"], p["e2_b"] = _prep_w(w), _prep_b(b)

    p["blocks"] = []
    prev = d
    for out_ch, heads, dlb, _drop in settings["block_params"]:
        dim_head = out_ch // heads
        hc = heads * dim_head
        mhsa = {}
        for name, (wm, bm) in zip("qkvs", [lin(prev, hc) for _ in range(4)]):
            mhsa["w" + name] = _prep_w(wm)
            mhsa["b" + name] = _prep_b(bm)
        we, _ = lin(d, hc, bias=False)
        mhsa["we"] = _prep_w(we)
        # per-head block-sum matrix with 1/sqrt(C) folded in (built once)
        mhsa["red"] = (jnp.repeat(jnp.eye(heads, dtype=jnp.float32),
                                  dim_head, axis=0) / math.sqrt(dim_head))

        blk = {"mhsa": mhsa}
        # node FFN; norm2 scale folded into W2/b2 (residual scaled in-kernel)
        w, b = lin(out_ch, dlb)
        blk["w1"], blk["b1"] = _prep_w(w), _prep_b(b)
        w, b = lin(dlb, out_ch)
        blk["w2s"], blk["b2s"] = _prep_w(w, fold=BN_SCALE), _prep_b(b, fold=BN_SCALE)

        # edge update: split we1 = [W_e | W_a | W_b] so the concat disappears
        w, b = lin(d + 2 * out_ch, d)
        w_e, w_a, w_b = w[:d], w[d:d + out_ch], w[d + out_ch:]
        blk["we_e"] = _prep_w(w_e)
        blk["wx"] = (w_a + w_b).astype(jnp.bfloat16)   # applied to node_out[src]
        blk["wy"] = (w_b - w_a).astype(jnp.bfloat16)   # applied to node_out[dst]
        blk["be1"] = _prep_b(b)
        w, b = lin(d, d)
        blk["we2s"], blk["be2s"] = _prep_w(w, fold=BN_SCALE), _prep_b(b, fold=BN_SCALE)
        p["blocks"].append(blk)
        prev = out_ch

    p["fc"] = []
    prev_fc = d + prev
    for _drop, units in settings["fc_params"]:
        w, b = lin(prev_fc, units)
        p["fc"].append((_prep_w(w), _prep_b(b)))
        prev_fc = units
    w, b = lin(prev_fc, settings["output_classes"])
    p["out_w"], p["out_b"] = _prep_w(w), _prep_b(b)
    return p


# ---------------------------------------------------------------------------
if __name__ == "__main__":
    settings = {
        "dim_embedding": 32,
        "input_features": 6,
        "global_features": 5,
        "edge_features": 4,
        "block_params": [(32, 4, 64, 0.1), (32, 4, 64, 0.1)],
        "fc_params": [(0.1, 64), (0.1, 32)],
        "output_classes": 3,
    }

    key = jax.random.PRNGKey(0)
    k_param, k_node, k_glob, k_edgef, k_src, k_dst = jax.random.split(key, 6)

    num_graphs = 2
    nodes_per_graph = 10
    edges_per_graph = 20
    n_nodes = num_graphs * nodes_per_graph
    n_edges = num_graphs * edges_per_graph

    node_features = jax.random.normal(
        k_node, (n_nodes, settings["input_features"]), jnp.float32)
    global_features = jax.random.normal(
        k_glob, (num_graphs, settings["global_features"]), jnp.float32)
    edge_features = jax.random.normal(
        k_edgef, (n_edges, settings["edge_features"]), jnp.float32)

    # edges stay within their own graph
    src_local = jax.random.randint(k_src, (n_edges,), 0, nodes_per_graph)
    dst_local = jax.random.randint(k_dst, (n_edges,), 0, nodes_per_graph)
    graph_of_edge = jnp.repeat(jnp.arange(num_graphs), edges_per_graph)
    src = src_local + graph_of_edge * nodes_per_graph
    dst = dst_local + graph_of_edge * nodes_per_graph
    edge_index = jnp.stack([src, dst]).astype(jnp.int32)
    batch_vec = jnp.repeat(jnp.arange(num_graphs), nodes_per_graph).astype(
        jnp.int32)

    params = _init_params(settings, k_param)

    @jax.jit
    def run(params, node_features, global_features, edge_features,
            edge_index, batch_vec):
        return attention_net_forward(params, settings, node_features,
                                     global_features, edge_features,
                                     edge_index, batch_vec, num_graphs)

    out = run(params, node_features, global_features, edge_features,
              edge_index, batch_vec)
    out = jax.block_until_ready(out)
    assert out.shape == (num_graphs, settings["output_classes"])
    assert bool(jnp.all(jnp.isfinite(out)))
    print("KERNEL_OK")
</pallas_src>

<mosaic_0001>
module attributes {stable_mosaic.version = 11 : i64} {
  func.func @_linear_kernel(%arg0: i32, %arg1: memref<20x16xbf16, #tpu.memory_space<vmem>>, %arg2: memref<16x32xbf16, #tpu.memory_space<vmem>>, %arg3: memref<1x32xf32, #tpu.memory_space<vmem>>, %arg4: memref<20x32xbf16, #tpu.memory_space<vmem>>) attributes {dimension_semantics = [#tpu.dimension_semantics<parallel>], iteration_bounds = array<i64: 1>, scalar_prefetch = 0 : i64, scratch_operands = 0 : i64, tpu.core_type = #tpu.core_type<tc>, window_params = [{transform_indices = @transform_0, window_bounds = array<i64: 20, 16>}, {pipeline_mode = #tpu.pipeline_mode<synchronous>, transform_indices = @transform_1, window_bounds = array<i64: 16, 32>}, {pipeline_mode = #tpu.pipeline_mode<synchronous>, transform_indices = @transform_2, window_bounds = array<i64: 1, 32>}, {transform_indices = @transform_3, window_bounds = array<i64: 20, 32>}]} {
    %c0 = arith.constant 0 : index
    %c0_0 = arith.constant 0 : index
    %0 = vector.load %arg1[%c0, %c0_0] : memref<20x16xbf16, #tpu.memory_space<vmem>>, vector<20x16xbf16>
    %c0_1 = arith.constant 0 : index
    %c0_2 = arith.constant 0 : index
    %1 = vector.load %arg2[%c0_1, %c0_2] : memref<16x32xbf16, #tpu.memory_space<vmem>>, vector<16x32xbf16>
    %cst = arith.constant dense<0.000000e+00> : vector<20x32xf32>
    %2 = tpu.matmul %0, %1, %cst {dimension_numbers = #tpu.dot_dimension_numbers<[1], [0], [0], [1], [0, 0, 1, 1], [], []>} : vector<20x16xbf16>, vector<16x32xbf16>, vector<20x32xf32> -> vector<20x32xf32>
    %c0_3 = arith.constant 0 : index
    %c0_4 = arith.constant 0 : index
    %3 = vector.load %arg3[%c0_3, %c0_4] : memref<1x32xf32, #tpu.memory_space<vmem>>, vector<1x32xf32>
    %4 = vector.broadcast %3 : vector<1x32xf32> to vector<20x32xf32>
    %5 = arith.addf %2, %4 : vector<20x32xf32>
    %cst_5 = arith.constant 0.000000e+00 : f32
    %6 = vector.broadcast %cst_5 : f32 to vector<20x32xf32>
    %7 = arith.maximumf %5, %6 : vector<20x32xf32>
    %8 = arith.truncf %7 : vector<20x32xf32> to vector<20x32xbf16>
    %c0_6 = arith.constant 0 : index
    %c0_7 = arith.constant 0 : index
    %9 = vector.load %arg4[%c0_6, %c0_7] : memref<20x32xbf16, #tpu.memory_space<vmem>>, vector<20x32xbf16>
    tpu.vector_store %arg4[%c0_6, %c0_7], %8 {strides = array<i32>} : memref<20x32xbf16, #tpu.memory_space<vmem>>, vector<20x32xbf16>,
    return
  }
  func.func @transform_0(%arg0: i32) -> (i32, i32) {
    %c0_i32 = arith.constant 0 : i32
    %c0_i32_0 = arith.constant 0 : i32
    return %arg0, %c0_i32 : i32, i32
  }
  func.func @transform_1(%arg0: i32) -> (i32, i32) {
    %c0_i32 = arith.constant 0 : i32
    %c0_i32_0 = arith.constant 0 : i32
    %c0_i32_1 = arith.constant 0 : i32
    return %c0_i32, %c0_i32_0 : i32, i32
  }
  func.func @transform_2(%arg0: i32) -> (i32, i32) {
    %c0_i32 = arith.constant 0 : i32
    %c0_i32_0 = arith.constant 0 : i32
    %c0_i32_1 = arith.constant 0 : i32
    return %c0_i32, %c0_i32_0 : i32, i32
  }
  func.func @transform_3(%arg0: i32) -> (i32, i32) {
    %c0_i32 = arith.constant 0 : i32
    %c0_i32_0 = arith.constant 0 : i32
    return %arg0, %c0_i32 : i32, i32
  }
}

module attributes {stable_mosaic.version = 11 : i64} {
  func.func @_proj4_kernel(%arg0: i32, %arg1: memref<20x32xbf16, #tpu.memory_space<vmem>>, %arg2: memref<32x32xbf16, #tpu.memory_space<vmem>>, %arg3: memref<32x32xbf16, #tpu.memory_space<vmem>>, %arg4: memref<32x32xbf16, #tpu.memory_space<vmem>>, %arg5: memref<32x32xbf16, #tpu.memory_space<vmem>>, %arg6: memref<1x32xf32, #tpu.memory_space<vmem>>, %arg7: memref<1x32xf32, #tpu.memory_space<vmem>>, %arg8: memref<1x32xf32, #tpu.memory_space<vmem>>, %arg9: memref<1x32xf32, #tpu.memory_space<vmem>>, %arg10: memref<20x32xbf16, #tpu.memory_space<vmem>>, %arg11: memref<20x32xbf16, #tpu.memory_space<vmem>>, %arg12: memref<20x32xbf16, #tpu.memory_space<vmem>>, %arg13: memref<20x32xf32, #tpu.memory_space<vmem>>) attributes {dimension_semantics = [#tpu.dimension_semantics<parallel>], iteration_bounds = array<i64: 1>, scalar_prefetch = 0 : i64, scratch_operands = 0 : i64, tpu.core_type = #tpu.core_type<tc>, window_params = [{transform_indices = @transform_0, window_bounds = array<i64: 20, 32>}, {pipeline_mode = #tpu.pipeline_mode<synchronous>, transform_indices = @transform_1, window_bounds = array<i64: 32, 32>}, {pipeline_mode = #tpu.pipeline_mode<synchronous>, transform_indices = @transform_2, window_bounds = array<i64: 32, 32>}, {pipeline_mode = #tpu.pipeline_mode<synchronous>, transform_indices = @transform_3, window_bounds = array<i64: 32, 32>}, {pipeline_mode = #tpu.pipeline_mode<synchronous>, transform_indices = @transform_4, window_bounds = array<i64: 32, 32>}, {pipeline_mode = #tpu.pipeline_mode<synchronous>, transform_indices = @transform_5, window_bounds = array<i64: 1, 32>}, {pipeline_mode = #tpu.pipeline_mode<synchronous>, transform_indices = @transform_6, window_bounds = array<i64: 1, 32>}, {pipeline_mode = #tpu.pipeline_mode<synchronous>, transform_indices = @transform_7, window_bounds = array<i64: 1, 32>}, {pipeline_mode = #tpu.pipeline_mode<synchronous>, transform_indices = @transform_8, window_bounds = array<i64: 1, 32>}, {transform_indices = @transform_9, window_bounds = array<i64: 20, 32>}, {transform_indices = @transform_10, window_bounds = array<i64: 20, 32>}, {transform_indices = @transform_11, window_bounds = array<i64: 20, 32>}, {transform_indices = @transform_12, window_bounds = array<i64: 20, 32>}]} {
    %c0 = arith.constant 0 : index
    %c0_0 = arith.constant 0 : index
    %0 = vector.load %arg1[%c0, %c0_0] : memref<20x32xbf16, #tpu.memory_space<vmem>>, vector<20x32xbf16>
    %c0_1 = arith.constant 0 : index
    %c0_2 = arith.constant 0 : index
    %1 = vector.load %arg2[%c0_1, %c0_2] : memref<32x32xbf16, #tpu.memory_space<vmem>>, vector<32x32xbf16>
    %cst = arith.constant dense<0.000000e+00> : vector<20x32xf32>
    %2 = tpu.matmul %0, %1, %cst {dimension_numbers = #tpu.dot_dimension_numbers<[1], [0], [0], [1], [0, 0, 1, 1], [], []>} : vector<20x32xbf16>, vector<32x32xbf16>, vector<20x32xf32> -> vector<20x32xf32>
    %c0_3 = arith.constant 0 : index
    %c0_4 = arith.constant 0 : index
    %3 = vector.load %arg6[%c0_3, %c0_4] : memref<1x32xf32, #tpu.memory_space<vmem>>, vector<1x32xf32>
    %4 = vector.broadcast %3 : vector<1x32xf32> to vector<20x32xf32>
    %5 = arith.addf %2, %4 : vector<20x32xf32>
    %6 = arith.truncf %5 : vector<20x32xf32> to vector<20x32xbf16>
    %c0_5 = arith.constant 0 : index
    %c0_6 = arith.constant 0 : index
    %7 = vector.load %arg10[%c0_5, %c0_6] : memref<20x32xbf16, #tpu.memory_space<vmem>>, vector<20x32xbf16>
    tpu.vector_store %arg10[%c0_5, %c0_6], %6 {strides = array<i32>} : memref<20x32xbf16, #tpu.memory_space<vmem>>, vector<20x32xbf16>,
    %c0_7 = arith.constant 0 : index
    %c0_8 = arith.constant 0 : index
    %8 = vector.load %arg3[%c0_7, %c0_8] : memref<32x32xbf16, #tpu.memory_space<vmem>>, vector<32x32xbf16>
    %cst_9 = arith.constant dense<0.000000e+00> : vector<20x32xf32>
    %9 = tpu.matmul %0, %8, %cst_9 {dimension_numbers = #tpu.dot_dimension_numbers<[1], [0], [0], [1], [0, 0, 1, 1], [], []>} : vector<20x32xbf16>, vector<32x32xbf16>, vector<20x32xf32> -> vector<20x32xf32>
    %c0_10 = arith.constant 0 : index
    %c0_11 = arith.constant 0 : index
    %10 = vector.load %arg7[%c0_10, %c0_11] : memref<1x32xf32, #tpu.memory_space<vmem>>, vector<1x32xf32>
    %11 = vector.broadcast %10 : vector<1x32xf32> to vector<20x32xf32>
    %12 = arith.addf %9, %11 : vector<20x32xf32>
    %13 = arith.truncf %12 : vector<20x32xf32> to vector<20x32xbf16>
    %c0_12 = arith.constant 0 : index
    %c0_13 = arith.constant 0 : index
    %14 = vector.load %arg11[%c0_12, %c0_13] : memref<20x32xbf16, #tpu.memory_space<vmem>>, vector<20x32xbf16>
    tpu.vector_store %arg11[%c0_12, %c0_13], %13 {strides = array<i32>} : memref<20x32xbf16, #tpu.memory_space<vmem>>, vector<20x32xbf16>,
    %c0_14 = arith.constant 0 : index
    %c0_15 = arith.constant 0 : index
    %15 = vector.load %arg4[%c0_14, %c0_15] : memref<32x32xbf16, #tpu.memory_space<vmem>>, vector<32x32xbf16>
    %cst_16 = arith.constant dense<0.000000e+00> : vector<20x32xf32>
    %16 = tpu.matmul %0, %15, %cst_16 {dimension_numbers = #tpu.dot_dimension_numbers<[1], [0], [0], [1], [0, 0, 1, 1], [], []>} : vector<20x32xbf16>, vector<32x32xbf16>, vector<20x32xf32> -> vector<20x32xf32>
    %c0_17 = arith.constant 0 : index
    %c0_18 = arith.constant 0 : index
    %17 = vector.load %arg8[%c0_17, %c0_18] : memref<1x32xf32, #tpu.memory_space<vmem>>, vector<1x32xf32>
    %18 = vector.broadcast %17 : vector<1x32xf32> to vector<20x32xf32>
    %19 = arith.addf %16, %18 : vector<20x32xf32>
    %20 = arith.truncf %19 : vector<20x32xf32> to vector<20x32xbf16>
    %c0_19 = arith.constant 0 : index
    %c0_20 = arith.constant 0 : index
    %21 = vector.load %arg12[%c0_19, %c0_20] : memref<20x32xbf16, #tpu.memory_space<vmem>>, vector<20x32xbf16>
    tpu.vector_store %arg12[%c0_19, %c0_20], %20 {strides = array<i32>} : memref<20x32xbf16, #tpu.memory_space<vmem>>, vector<20x32xbf16>,
    %c0_21 = arith.constant 0 : index
    %c0_22 = arith.constant 0 : index
    %22 = vector.load %arg5[%c0_21, %c0_22] : memref<32x32xbf16, #tpu.memory_space<vmem>>, vector<32x32xbf16>
    %cst_23 = arith.constant dense<0.000000e+00> : vector<20x32xf32>
    %23 = tpu.matmul %0, %22, %cst_23 {dimension_numbers = #tpu.dot_dimension_numbers<[1], [0], [0], [1], [0, 0, 1, 1], [], []>} : vector<20x32xbf16>, vector<32x32xbf16>, vector<20x32xf32> -> vector<20x32xf32>
    %c0_24 = arith.constant 0 : index
    %c0_25 = arith.constant 0 : index
    %24 = vector.load %arg9[%c0_24, %c0_25] : memref<1x32xf32, #tpu.memory_space<vmem>>, vector<1x32xf32>
    %25 = vector.broadcast %24 : vector<1x32xf32> to vector<20x32xf32>
    %26 = arith.addf %23, %25 : vector<20x32xf32>
    %c0_26 = arith.constant 0 : index
    %c0_27 = arith.constant 0 : index
    %27 = vector.load %arg13[%c0_26, %c0_27] : memref<20x32xf32, #tpu.memory_space<vmem>>, vector<20x32xf32>
    tpu.vector_store %arg13[%c0_26, %c0_27], %26 {strides = array<i32>} : memref<20x32xf32, #tpu.memory_space<vmem>>, vector<20x32xf32>,
    return
  }
  func.func @transform_0(%arg0: i32) -> (i32, i32) {
    %c0_i32 = arith.constant 0 : i32
    %c0_i32_0 = arith.constant 0 : i32
    return %arg0, %c0_i32 : i32, i32
  }
  func.func @transform_1(%arg0: i32) -> (i32, i32) {
    %c0_i32 = arith.constant 0 : i32
    %c0_i32_0 = arith.constant 0 : i32
    %c0_i32_1 = arith.constant 0 : i32
    return %c0_i32, %c0_i32_0 : i32, i32
  }
  func.func @transform_2(%arg0: i32) -> (i32, i32) {
    %c0_i32 = arith.constant 0 : i32
    %c0_i32_0 = arith.constant 0 : i32
    %c0_i32_1 = arith.constant 0 : i32
    return %c0_i32, %c0_i32_0 : i32, i32
  }
  func.func @transform_3(%arg0: i32) -> (i32, i32) {
    %c0_i32 = arith.constant 0 : i32
    %c0_i32_0 = arith.constant 0 : i32
    %c0_i32_1 = arith.constant 0 : i32
    return %c0_i32, %c0_i32_0 : i32, i32
  }
  func.func @transform_4(%arg0: i32) -> (i32, i32) {
    %c0_i32 = arith.constant 0 : i32
    %c0_i32_0 = arith.constant 0 : i32
    %c0_i32_1 = arith.constant 0 : i32
    return %c0_i32, %c0_i32_0 : i32, i32
  }
  func.func @transform_5(%arg0: i32) -> (i32, i32) {
    %c0_i32 = arith.constant 0 : i32
    %c0_i32_0 = arith.constant 0 : i32
    %c0_i32_1 = arith.constant 0 : i32
    return %c0_i32, %c0_i32_0 : i32, i32
  }
  func.func @transform_6(%arg0: i32) -> (i32, i32) {
    %c0_i32 = arith.constant 0 : i32
    %c0_i32_0 = arith.constant 0 : i32
    %c0_i32_1 = arith.constant 0 : i32
    return %c0_i32, %c0_i32_0 : i32, i32
  }
  func.func @transform_7(%arg0: i32) -> (i32, i32) {
    %c0_i32 = arith.constant 0 : i32
    %c0_i32_0 = arith.constant 0 : i32
    %c0_i32_1 = arith.constant 0 : i32
    return %c0_i32, %c0_i32_0 : i32, i32
  }
  func.func @transform_8(%arg0: i32) -> (i32, i32) {
    %c0_i32 = arith.constant 0 : i32
    %c0_i32_0 = arith.constant 0 : i32
    %c0_i32_1 = arith.constant 0 : i32
    return %c0_i32, %c0_i32_0 : i32, i32
  }
  func.func @transform_9(%arg0: i32) -> (i32, i32) {
    %c0_i32 = arith.constant 0 : i32
    %c0_i32_0 = arith.constant 0 : i32
    return %arg0, %c0_i32 : i32, i32
  }
  func.func @transform_10(%arg0: i32) -> (i32, i32) {
    %c0_i32 = arith.constant 0 : i32
    %c0_i32_0 = arith.constant 0 : i32
    return %arg0, %c0_i32 : i32, i32
  }
  func.func @transform_11(%arg0: i32) -> (i32, i32) {
    %c0_i32 = arith.constant 0 : i32
    %c0_i32_0 = arith.constant 0 : i32
    return %arg0, %c0_i32 : i32, i32
  }
  func.func @transform_12(%arg0: i32) -> (i32, i32) {
    %c0_i32 = arith.constant 0 : i32
    %c0_i32_0 = arith.constant 0 : i32
    return %arg0, %c0_i32 : i32, i32
  }
}

module attributes {stable_mosaic.version = 11 : i64} {
  func.func @_mlp2_kernel(%arg0: i32, %arg1: memref<40x16xbf16, #tpu.memory_space<vmem>>, %arg2: memref<16x128xbf16, #tpu.memory_space<vmem>>, %arg3: memref<1x128xf32, #tpu.memory_space<vmem>>, %arg4: memref<128x32xbf16, #tpu.memory_space<vmem>>, %arg5: memref<1x32xf32, #tpu.memory_space<vmem>>, %arg6: memref<40x32xbf16, #tpu.memory_space<vmem>>) attributes {dimension_semantics = [#tpu.dimension_semantics<parallel>], iteration_bounds = array<i64: 1>, scalar_prefetch = 0 : i64, scratch_operands = 0 : i64, tpu.core_type = #tpu.core_type<tc>, window_params = [{transform_indices = @transform_0, window_bounds = array<i64: 40, 16>}, {pipeline_mode = #tpu.pipeline_mode<synchronous>, transform_indices = @transform_1, window_bounds = array<i64: 16, 128>}, {pipeline_mode = #tpu.pipeline_mode<synchronous>, transform_indices = @transform_2, window_bounds = array<i64: 1, 128>}, {pipeline_mode = #tpu.pipeline_mode<synchronous>, transform_indices = @transform_3, window_bounds = array<i64: 128, 32>}, {pipeline_mode = #tpu.pipeline_mode<synchronous>, transform_indices = @transform_4, window_bounds = array<i64: 1, 32>}, {transform_indices = @transform_5, window_bounds = array<i64: 40, 32>}]} {
    %c0 = arith.constant 0 : index
    %c0_0 = arith.constant 0 : index
    %0 = vector.load %arg1[%c0, %c0_0] : memref<40x16xbf16, #tpu.memory_space<vmem>>, vector<40x16xbf16>
    %c0_1 = arith.constant 0 : index
    %c0_2 = arith.constant 0 : index
    %1 = vector.load %arg2[%c0_1, %c0_2] : memref<16x128xbf16, #tpu.memory_space<vmem>>, vector<16x128xbf16>
    %cst = arith.constant dense<0.000000e+00> : vector<40x128xf32>
    %2 = tpu.matmul %0, %1, %cst {dimension_numbers = #tpu.dot_dimension_numbers<[1], [0], [0], [1], [0, 0, 1, 1], [], []>} : vector<40x16xbf16>, vector<16x128xbf16>, vector<40x128xf32> -> vector<40x128xf32>
    %c0_3 = arith.constant 0 : index
    %c0_4 = arith.constant 0 : index
    %3 = vector.load %arg3[%c0_3, %c0_4] : memref<1x128xf32, #tpu.memory_space<vmem>>, vector<1x128xf32>
    %4 = vector.broadcast %3 : vector<1x128xf32> to vector<40x128xf32>
    %5 = arith.addf %2, %4 : vector<40x128xf32>
    %cst_5 = arith.constant 0.000000e+00 : f32
    %6 = vector.broadcast %cst_5 : f32 to vector<40x128xf32>
    %7 = arith.maximumf %5, %6 : vector<40x128xf32>
    %8 = arith.truncf %7 : vector<40x128xf32> to vector<40x128xbf16>
    %c0_6 = arith.constant 0 : index
    %c0_7 = arith.constant 0 : index
    %9 = vector.load %arg4[%c0_6, %c0_7] : memref<128x32xbf16, #tpu.memory_space<vmem>>, vector<128x32xbf16>
    %cst_8 = arith.constant dense<0.000000e+00> : vector<40x32xf32>
    %10 = tpu.matmul %8, %9, %cst_8 {dimension_numbers = #tpu.dot_dimension_numbers<[1], [0], [0], [1], [0, 0, 1, 1], [], []>} : vector<40x128xbf16>, vector<128x32xbf16>, vector<40x32xf32> -> vector<40x32xf32>
    %c0_9 = arith.constant 0 : index
    %c0_10 = arith.constant 0 : index
    %11 = vector.load %arg5[%c0_9, %c0_10] : memref<1x32xf32, #tpu.memory_space<vmem>>, vector<1x32xf32>
    %12 = vector.broadcast %11 : vector<1x32xf32> to vector<40x32xf32>
    %13 = arith.addf %10, %12 : vector<40x32xf32>
    %cst_11 = arith.constant 0.000000e+00 : f32
    %14 = vector.broadcast %cst_11 : f32 to vector<40x32xf32>
    %15 = arith.maximumf %13, %14 : vector<40x32xf32>
    %16 = arith.truncf %15 : vector<40x32xf32> to vector<40x32xbf16>
    %c0_12 = arith.constant 0 : index
    %c0_13 = arith.constant 0 : index
    %17 = vector.load %arg6[%c0_12, %c0_13] : memref<40x32xbf16, #tpu.memory_space<vmem>>, vector<40x32xbf16>
    tpu.vector_store %arg6[%c0_12, %c0_13], %16 {strides = array<i32>} : memref<40x32xbf16, #tpu.memory_space<vmem>>, vector<40x32xbf16>,
    return
  }
  func.func @transform_0(%arg0: i32) -> (i32, i32) {
    %c0_i32 = arith.constant 0 : i32
    %c0_i32_0 = arith.constant 0 : i32
    return %arg0, %c0_i32 : i32, i32
  }
  func.func @transform_1(%arg0: i32) -> (i32, i32) {
    %c0_i32 = arith.constant 0 : i32
    %c0_i32_0 = arith.constant 0 : i32
    %c0_i32_1 = arith.constant 0 : i32
    return %c0_i32, %c0_i32_0 : i32, i32
  }
  func.func @transform_2(%arg0: i32) -> (i32, i32) {
    %c0_i32 = arith.constant 0 : i32
    %c0_i32_0 = arith.constant 0 : i32
    %c0_i32_1 = arith.constant 0 : i32
    return %c0_i32, %c0_i32_0 : i32, i32
  }
  func.func @transform_3(%arg0: i32) -> (i32, i32) {
    %c0_i32 = arith.constant 0 : i32
    %c0_i32_0 = arith.constant 0 : i32
    %c0_i32_1 = arith.constant 0 : i32
    return %c0_i32, %c0_i32_0 : i32, i32
  }
  func.func @transform_4(%arg0: i32) -> (i32, i32) {
    %c0_i32 = arith.constant 0 : i32
    %c0_i32_0 = arith.constant 0 : i32
    %c0_i32_1 = arith.constant 0 : i32
    return %c0_i32, %c0_i32_0 : i32, i32
  }
  func.func @transform_5(%arg0: i32) -> (i32, i32) {
    %c0_i32 = arith.constant 0 : i32
    %c0_i32_0 = arith.constant 0 : i32
    return %arg0, %c0_i32 : i32, i32
  }
}

module attributes {stable_mosaic.version = 11 : i64} {
  func.func @_edge_attn_kernel(%arg0: i32, %arg1: memref<40x32xbf16, #tpu.memory_space<vmem>>, %arg2: memref<40x32xbf16, #tpu.memory_space<vmem>>, %arg3: memref<40x32xbf16, #tpu.memory_space<vmem>>, %arg4: memref<40x32xbf16, #tpu.memory_space<vmem>>, %arg5: memref<32x32xbf16, #tpu.memory_space<vmem>>, %arg6: memref<32x4xf32, #tpu.memory_space<vmem>>, %arg7: memref<40x4xf32, #tpu.memory_space<vmem>>, %arg8: memref<40x32xbf16, #tpu.memory_space<vmem>>) attributes {dimension_semantics = [#tpu.dimension_semantics<parallel>], iteration_bounds = array<i64: 1>, scalar_prefetch = 0 : i64, scratch_operands = 0 : i64, tpu.core_type = #tpu.core_type<tc>, window_params = [{transform_indices = @transform_0, window_bounds = array<i64: 40, 32>}, {transform_indices = @transform_1, window_bounds = array<i64: 40, 32>}, {transform_indices = @transform_2, window_bounds = array<i64: 40, 32>}, {transform_indices = @transform_3, window_bounds = array<i64: 40, 32>}, {pipeline_mode = #tpu.pipeline_mode<synchronous>, transform_indices = @transform_4, window_bounds = array<i64: 32, 32>}, {pipeline_mode = #tpu.pipeline_mode<synchronous>, transform_indices = @transform_5, window_bounds = array<i64: 32, 4>}, {transform_indices = @transform_6, window_bounds = array<i64: 40, 4>}, {transform_indices = @transform_7, window_bounds = array<i64: 40, 32>}]} {
    %c0 = arith.constant 0 : index
    %c0_0 = arith.constant 0 : index
    %0 = vector.load %arg4[%c0, %c0_0] : memref<40x32xbf16, #tpu.memory_space<vmem>>, vector<40x32xbf16>
    %c0_1 = arith.constant 0 : index
    %c0_2 = arith.constant 0 : index
    %1 = vector.load %arg5[%c0_1, %c0_2] : memref<32x32xbf16, #tpu.memory_space<vmem>>, vector<32x32xbf16>
    %cst = arith.constant dense<0.000000e+00> : vector<40x32xf32>
    %2 = tpu.matmul %0, %1, %cst {dimension_numbers = #tpu.dot_dimension_numbers<[1], [0], [0], [1], [0, 0, 1, 1], [], []>} : vector<40x32xbf16>, vector<32x32xbf16>, vector<40x32xf32> -> vector<40x32xf32>
    %c0_3 = arith.constant 0 : index
    %c0_4 = arith.constant 0 : index
    %3 = vector.load %arg1[%c0_3, %c0_4] : memref<40x32xbf16, #tpu.memory_space<vmem>>, vector<40x32xbf16>
    %4 = arith.extf %3 : vector<40x32xbf16> to vector<40x32xf32>
    %c0_5 = arith.constant 0 : index
    %c0_6 = arith.constant 0 : index
    %5 = vector.load %arg2[%c0_5, %c0_6] : memref<40x32xbf16, #tpu.memory_space<vmem>>, vector<40x32xbf16>
    %6 = arith.extf %5 : vector<40x32xbf16> to vector<40x32xf32>
    %7 = arith.addf %6, %2 : vector<40x32xf32>
    %8 = arith.mulf %4, %7 : vector<40x32xf32>
    %c0_7 = arith.constant 0 : index
    %c0_8 = arith.constant 0 : index
    %9 = vector.load %arg6[%c0_7, %c0_8] : memref<32x4xf32, #tpu.memory_space<vmem>>, vector<32x4xf32>
    %cst_9 = arith.constant dense<0.000000e+00> : vector<40x4xf32>
    %10 = tpu.matmul %8, %9, %cst_9 {dimension_numbers = #tpu.dot_dimension_numbers<[1], [0], [0], [1], [0, 0, 1, 1], [], []>} : vector<40x32xf32>, vector<32x4xf32>, vector<40x4xf32> -> vector<40x4xf32>
    %c0_10 = arith.constant 0 : index
    %c0_11 = arith.constant 0 : index
    %11 = vector.load %arg7[%c0_10, %c0_11] : memref<40x4xf32, #tpu.memory_space<vmem>>, vector<40x4xf32>
    tpu.vector_store %arg7[%c0_10, %c0_11], %10 {strides = array<i32>} : memref<40x4xf32, #tpu.memory_space<vmem>>, vector<40x4xf32>,
    %c0_12 = arith.constant 0 : index
    %c0_13 = arith.constant 0 : index
    %12 = vector.load %arg3[%c0_12, %c0_13] : memref<40x32xbf16, #tpu.memory_space<vmem>>, vector<40x32xbf16>
    %13 = arith.extf %12 : vector<40x32xbf16> to vector<40x32xf32>
    %14 = arith.addf %13, %2 : vector<40x32xf32>
    %15 = arith.truncf %14 : vector<40x32xf32> to vector<40x32xbf16>
    %c0_14 = arith.constant 0 : index
    %c0_15 = arith.constant 0 : index
    %16 = vector.load %arg8[%c0_14, %c0_15] : memref<40x32xbf16, #tpu.memory_space<vmem>>, vector<40x32xbf16>
    tpu.vector_store %arg8[%c0_14, %c0_15], %15 {strides = array<i32>} : memref<40x32xbf16, #tpu.memory_space<vmem>>, vector<40x32xbf16>,
    return
  }
  func.func @transform_0(%arg0: i32) -> (i32, i32) {
    %c0_i32 = arith.constant 0 : i32
    %c0_i32_0 = arith.constant 0 : i32
    return %arg0, %c0_i32 : i32, i32
  }
  func.func @transform_1(%arg0: i32) -> (i32, i32) {
    %c0_i32 = arith.constant 0 : i32
    %c0_i32_0 = arith.constant 0 : i32
    return %arg0, %c0_i32 : i32, i32
  }
  func.func @transform_2(%arg0: i32) -> (i32, i32) {
    %c0_i32 = arith.constant 0 : i32
    %c0_i32_0 = arith.constant 0 : i32
    return %arg0, %c0_i32 : i32, i32
  }
  func.func @transform_3(%arg0: i32) -> (i32, i32) {
    %c0_i32 = arith.constant 0 : i32
    %c0_i32_0 = arith.constant 0 : i32
    return %arg0, %c0_i32 : i32, i32
  }
  func.func @transform_4(%arg0: i32) -> (i32, i32) {
    %c0_i32 = arith.constant 0 : i32
    %c0_i32_0 = arith.constant 0 : i32
    %c0_i32_1 = arith.constant 0 : i32
    return %c0_i32, %c0_i32_0 : i32, i32
  }
  func.func @transform_5(%arg0: i32) -> (i32, i32) {
    %c0_i32 = arith.constant 0 : i32
    %c0_i32_0 = arith.constant 0 : i32
    %c0_i32_1 = arith.constant 0 : i32
    return %c0_i32, %c0_i32_0 : i32, i32
  }
  func.func @transform_6(%arg0: i32) -> (i32, i32) {
    %c0_i32 = arith.constant 0 : i32
    %c0_i32_0 = arith.constant 0 : i32
    return %arg0, %c0_i32 : i32, i32
  }
  func.func @transform_7(%arg0: i32) -> (i32, i32) {
    %c0_i32 = arith.constant 0 : i32
    %c0_i32_0 = arith.constant 0 : i32
    return %arg0, %c0_i32 : i32, i32
  }
}

module attributes {stable_mosaic.version = 11 : i64} {
  func.func @_edge_update_kernel(%arg0: i32, %arg1: memref<40x32xbf16, #tpu.memory_space<vmem>>, %arg2: memref<40x32xbf16, #tpu.memory_space<vmem>>, %arg3: memref<40x32xbf16, #tpu.memory_space<vmem>>, %arg4: memref<32x32xbf16, #tpu.memory_space<vmem>>, %arg5: memref<1x32xf32, #tpu.memory_space<vmem>>, %arg6: memref<32x32xbf16, #tpu.memory_space<vmem>>, %arg7: memref<1x32xf32, #tpu.memory_space<vmem>>, %arg8: memref<40x32xbf16, #tpu.memory_space<vmem>>) attributes {dimension_semantics = [#tpu.dimension_semantics<parallel>], iteration_bounds = array<i64: 1>, scalar_prefetch = 0 : i64, scratch_operands = 0 : i64, tpu.core_type = #tpu.core_type<tc>, window_params = [{transform_indices = @transform_0, window_bounds = array<i64: 40, 32>}, {transform_indices = @transform_1, window_bounds = array<i64: 40, 32>}, {transform_indices = @transform_2, window_bounds = array<i64: 40, 32>}, {pipeline_mode = #tpu.pipeline_mode<synchronous>, transform_indices = @transform_3, window_bounds = array<i64: 32, 32>}, {pipeline_mode = #tpu.pipeline_mode<synchronous>, transform_indices = @transform_4, window_bounds = array<i64: 1, 32>}, {pipeline_mode = #tpu.pipeline_mode<synchronous>, transform_indices = @transform_5, window_bounds = array<i64: 32, 32>}, {pipeline_mode = #tpu.pipeline_mode<synchronous>, transform_indices = @transform_6, window_bounds = array<i64: 1, 32>}, {transform_indices = @transform_7, window_bounds = array<i64: 40, 32>}]} {
    %c0 = arith.constant 0 : index
    %c0_0 = arith.constant 0 : index
    %0 = vector.load %arg1[%c0, %c0_0] : memref<40x32xbf16, #tpu.memory_space<vmem>>, vector<40x32xbf16>
    %c0_1 = arith.constant 0 : index
    %c0_2 = arith.constant 0 : index
    %1 = vector.load %arg4[%c0_1, %c0_2] : memref<32x32xbf16, #tpu.memory_space<vmem>>, vector<32x32xbf16>
    %cst = arith.constant dense<0.000000e+00> : vector<40x32xf32>
    %2 = tpu.matmul %0, %1, %cst {dimension_numbers = #tpu.dot_dimension_numbers<[1], [0], [0], [1], [0, 0, 1, 1], [], []>} : vector<40x32xbf16>, vector<32x32xbf16>, vector<40x32xf32> -> vector<40x32xf32>
    %c0_3 = arith.constant 0 : index
    %c0_4 = arith.constant 0 : index
    %3 = vector.load %arg2[%c0_3, %c0_4] : memref<40x32xbf16, #tpu.memory_space<vmem>>, vector<40x32xbf16>
    %4 = arith.extf %3 : vector<40x32xbf16> to vector<40x32xf32>
    %5 = arith.addf %2, %4 : vector<40x32xf32>
    %c0_5 = arith.constant 0 : index
    %c0_6 = arith.constant 0 : index
    %6 = vector.load %arg3[%c0_5, %c0_6] : memref<40x32xbf16, #tpu.memory_space<vmem>>, vector<40x32xbf16>
    %7 = arith.extf %6 : vector<40x32xbf16> to vector<40x32xf32>
    %8 = arith.addf %5, %7 : vector<40x32xf32>
    %c0_7 = arith.constant 0 : index
    %c0_8 = arith.constant 0 : index
    %9 = vector.load %arg5[%c0_7, %c0_8] : memref<1x32xf32, #tpu.memory_space<vmem>>, vector<1x32xf32>
    %10 = vector.broadcast %9 : vector<1x32xf32> to vector<40x32xf32>
    %11 = arith.addf %8, %10 : vector<40x32xf32>
    %12 = arith.mulf %11, %11 : vector<40x32xf32>
    %13 = arith.mulf %11, %12 : vector<40x32xf32>
    %cst_9 = arith.constant 4.471500e-02 : f32
    %14 = vector.broadcast %cst_9 : f32 to vector<40x32xf32>
    %15 = arith.mulf %14, %13 : vector<40x32xf32>
    %16 = arith.addf %11, %15 : vector<40x32xf32>
    %cst_10 = arith.constant 0.797884583 : f32
    %17 = vector.broadcast %cst_10 : f32 to vector<40x32xf32>
    %18 = arith.mulf %17, %16 : vector<40x32xf32>
    %19 = math.tanh %18 : vector<40x32xf32>
    %cst_11 = arith.constant 1.000000e+00 : f32
    %20 = vector.broadcast %cst_11 : f32 to vector<40x32xf32>
    %21 = arith.addf %20, %19 : vector<40x32xf32>
    %cst_12 = arith.constant 5.000000e-01 : f32
    %22 = vector.broadcast %cst_12 : f32 to vector<40x32xf32>
    %23 = arith.mulf %22, %21 : vector<40x32xf32>
    %24 = arith.mulf %11, %23 : vector<40x32xf32>
    %25 = arith.truncf %24 : vector<40x32xf32> to vector<40x32xbf16>
    %c0_13 = arith.constant 0 : index
    %c0_14 = arith.constant 0 : index
    %26 = vector.load %arg6[%c0_13, %c0_14] : memref<32x32xbf16, #tpu.memory_space<vmem>>, vector<32x32xbf16>
    %cst_15 = arith.constant dense<0.000000e+00> : vector<40x32xf32>
    %27 = tpu.matmul %25, %26, %cst_15 {dimension_numbers = #tpu.dot_dimension_numbers<[1], [0], [0], [1], [0, 0, 1, 1], [], []>} : vector<40x32xbf16>, vector<32x32xbf16>, vector<40x32xf32> -> vector<40x32xf32>
    %c0_16 = arith.constant 0 : index
    %c0_17 = arith.constant 0 : index
    %28 = vector.load %arg7[%c0_16, %c0_17] : memref<1x32xf32, #tpu.memory_space<vmem>>, vector<1x32xf32>
    %29 = vector.broadcast %28 : vector<1x32xf32> to vector<40x32xf32>
    %30 = arith.addf %27, %29 : vector<40x32xf32>
    %31 = arith.mulf %30, %30 : vector<40x32xf32>
    %32 = arith.mulf %30, %31 : vector<40x32xf32>
    %cst_18 = arith.constant 4.471500e-02 : f32
    %33 = vector.broadcast %cst_18 : f32 to vector<40x32xf32>
    %34 = arith.mulf %33, %32 : vector<40x32xf32>
    %35 = arith.addf %30, %34 : vector<40x32xf32>
    %cst_19 = arith.constant 0.797884583 : f32
    %36 = vector.broadcast %cst_19 : f32 to vector<40x32xf32>
    %37 = arith.mulf %36, %35 : vector<40x32xf32>
    %38 = math.tanh %37 : vector<40x32xf32>
    %cst_20 = arith.constant 1.000000e+00 : f32
    %39 = vector.broadcast %cst_20 : f32 to vector<40x32xf32>
    %40 = arith.addf %39, %38 : vector<40x32xf32>
    %cst_21 = arith.constant 5.000000e-01 : f32
    %41 = vector.broadcast %cst_21 : f32 to vector<40x32xf32>
    %42 = arith.mulf %41, %40 : vector<40x32xf32>
    %43 = arith.mulf %30, %42 : vector<40x32xf32>
    %44 = arith.truncf %43 : vector<40x32xf32> to vector<40x32xbf16>
    %c0_22 = arith.constant 0 : index
    %c0_23 = arith.constant 0 : index
    %45 = vector.load %arg8[%c0_22, %c0_23] : memref<40x32xbf16, #tpu.memory_space<vmem>>, vector<40x32xbf16>
    tpu.vector_store %arg8[%c0_22, %c0_23], %44 {strides = array<i32>} : memref<40x32xbf16, #tpu.memory_space<vmem>>, vector<40x32xbf16>,
    return
  }
  func.func @transform_0(%arg0: i32) -> (i32, i32) {
    %c0_i32 = arith.constant 0 : i32
    %c0_i32_0 = arith.constant 0 : i32
    return %arg0, %c0_i32 : i32, i32
  }
  func.func @transform_1(%arg0: i32) -> (i32, i32) {
    %c0_i32 = arith.constant 0 : i32
    %c0_i32_0 = arith.constant 0 : i32
    return %arg0, %c0_i32 : i32, i32
  }
  func.func @transform_2(%arg0: i32) -> (i32, i32) {
    %c0_i32 = arith.constant 0 : i32
    %c0_i32_0 = arith.constant 0 : i32
    return %arg0, %c0_i32 : i32, i32
  }
  func.func @transform_3(%arg0: i32) -> (i32, i32) {
    %c0_i32 = arith.constant 0 : i32
    %c0_i32_0 = arith.constant 0 : i32
    %c0_i32_1 = arith.constant 0 : i32
    return %c0_i32, %c0_i32_0 : i32, i32
  }
  func.func @transform_4(%arg0: i32) -> (i32, i32) {
    %c0_i32 = arith.constant 0 : i32
    %c0_i32_0 = arith.constant 0 : i32
    %c0_i32_1 = arith.constant 0 : i32
    return %c0_i32, %c0_i32_0 : i32, i32
  }
  func.func @transform_5(%arg0: i32) -> (i32, i32) {
    %c0_i32 = arith.constant 0 : i32
    %c0_i32_0 = arith.constant 0 : i32
    %c0_i32_1 = arith.constant 0 : i32
    return %c0_i32, %c0_i32_0 : i32, i32
  }
  func.func @transform_6(%arg0: i32) -> (i32, i32) {
    %c0_i32 = arith.constant 0 : i32
    %c0_i32_0 = arith.constant 0 : i32
    %c0_i32_1 = arith.constant 0 : i32
    return %c0_i32, %c0_i32_0 : i32, i32
  }
  func.func @transform_7(%arg0: i32) -> (i32, i32) {
    %c0_i32 = arith.constant 0 : i32
    %c0_i32_0 = arith.constant 0 : i32
    return %arg0, %c0_i32 : i32, i32
  }
}

module attributes {stable_mosaic.version = 11 : i64} {
  func.func @_node_ffn_kernel(%arg0: i32, %arg1: memref<20x32xbf16, #tpu.memory_space<vmem>>, %arg2: memref<32x64xbf16, #tpu.memory_space<vmem>>, %arg3: memref<1x64xf32, #tpu.memory_space<vmem>>, %arg4: memref<64x32xbf16, #tpu.memory_space<vmem>>, %arg5: memref<1x32xf32, #tpu.memory_space<vmem>>, %arg6: memref<32x32xbf16, #tpu.memory_space<vmem>>, %arg7: memref<32x32xbf16, #tpu.memory_space<vmem>>, %arg8: memref<20x32xbf16, #tpu.memory_space<vmem>>, %arg9: memref<20x32xbf16, #tpu.memory_space<vmem>>, %arg10: memref<20x32xbf16, #tpu.memory_space<vmem>>) attributes {dimension_semantics = [#tpu.dimension_semantics<parallel>], iteration_bounds = array<i64: 1>, scalar_prefetch = 0 : i64, scratch_operands = 0 : i64, tpu.core_type = #tpu.core_type<tc>, window_params = [{transform_indices = @transform_0, window_bounds = array<i64: 20, 32>}, {pipeline_mode = #tpu.pipeline_mode<synchronous>, transform_indices = @transform_1, window_bounds = array<i64: 32, 64>}, {pipeline_mode = #tpu.pipeline_mode<synchronous>, transform_indices = @transform_2, window_bounds = array<i64: 1, 64>}, {pipeline_mode = #tpu.pipeline_mode<synchronous>, transform_indices = @transform_3, window_bounds = array<i64: 64, 32>}, {pipeline_mode = #tpu.pipeline_mode<synchronous>, transform_indices = @transform_4, window_bounds = array<i64: 1, 32>}, {pipeline_mode = #tpu.pipeline_mode<synchronous>, transform_indices = @transform_5, window_bounds = array<i64: 32, 32>}, {pipeline_mode = #tpu.pipeline_mode<synchronous>, transform_indices = @transform_6, window_bounds = array<i64: 32, 32>}, {transform_indices = @transform_7, window_bounds = array<i64: 20, 32>}, {transform_indices = @transform_8, window_bounds = array<i64: 20, 32>}, {transform_indices = @transform_9, window_bounds = array<i64: 20, 32>}]} {
    %c0 = arith.constant 0 : index
    %c0_0 = arith.constant 0 : index
    %0 = vector.load %arg1[%c0, %c0_0] : memref<20x32xbf16, #tpu.memory_space<vmem>>, vector<20x32xbf16>
    %c0_1 = arith.constant 0 : index
    %c0_2 = arith.constant 0 : index
    %1 = vector.load %arg2[%c0_1, %c0_2] : memref<32x64xbf16, #tpu.memory_space<vmem>>, vector<32x64xbf16>
    %cst = arith.constant dense<0.000000e+00> : vector<20x64xf32>
    %2 = tpu.matmul %0, %1, %cst {dimension_numbers = #tpu.dot_dimension_numbers<[1], [0], [0], [1], [0, 0, 1, 1], [], []>} : vector<20x32xbf16>, vector<32x64xbf16>, vector<20x64xf32> -> vector<20x64xf32>
    %c0_3 = arith.constant 0 : index
    %c0_4 = arith.constant 0 : index
    %3 = vector.load %arg3[%c0_3, %c0_4] : memref<1x64xf32, #tpu.memory_space<vmem>>, vector<1x64xf32>
    %4 = vector.broadcast %3 : vector<1x64xf32> to vector<20x64xf32>
    %5 = arith.addf %2, %4 : vector<20x64xf32>
    %6 = arith.mulf %5, %5 : vector<20x64xf32>
    %7 = arith.mulf %5, %6 : vector<20x64xf32>
    %cst_5 = arith.constant 4.471500e-02 : f32
    %8 = vector.broadcast %cst_5 : f32 to vector<20x64xf32>
    %9 = arith.mulf %8, %7 : vector<20x64xf32>
    %10 = arith.addf %5, %9 : vector<20x64xf32>
    %cst_6 = arith.constant 0.797884583 : f32
    %11 = vector.broadcast %cst_6 : f32 to vector<20x64xf32>
    %12 = arith.mulf %11, %10 : vector<20x64xf32>
    %13 = math.tanh %12 : vector<20x64xf32>
    %cst_7 = arith.constant 1.000000e+00 : f32
    %14 = vector.broadcast %cst_7 : f32 to vector<20x64xf32>
    %15 = arith.addf %14, %13 : vector<20x64xf32>
    %cst_8 = arith.constant 5.000000e-01 : f32
    %16 = vector.broadcast %cst_8 : f32 to vector<20x64xf32>
    %17 = arith.mulf %16, %15 : vector<20x64xf32>
    %18 = arith.mulf %5, %17 : vector<20x64xf32>
    %19 = arith.truncf %18 : vector<20x64xf32> to vector<20x64xbf16>
    %c0_9 = arith.constant 0 : index
    %c0_10 = arith.constant 0 : index
    %20 = vector.load %arg4[%c0_9, %c0_10] : memref<64x32xbf16, #tpu.memory_space<vmem>>, vector<64x32xbf16>
    %cst_11 = arith.constant dense<0.000000e+00> : vector<20x32xf32>
    %21 = tpu.matmul %19, %20, %cst_11 {dimension_numbers = #tpu.dot_dimension_numbers<[1], [0], [0], [1], [0, 0, 1, 1], [], []>} : vector<20x64xbf16>, vector<64x32xbf16>, vector<20x32xf32> -> vector<20x32xf32>
    %c0_12 = arith.constant 0 : index
    %c0_13 = arith.constant 0 : index
    %22 = vector.load %arg5[%c0_12, %c0_13] : memref<1x32xf32, #tpu.memory_space<vmem>>, vector<1x32xf32>
    %23 = vector.broadcast %22 : vector<1x32xf32> to vector<20x32xf32>
    %24 = arith.addf %21, %23 : vector<20x32xf32>
    %25 = arith.extf %0 : vector<20x32xbf16> to vector<20x32xf32>
    %cst_14 = arith.constant 0.999994993 : f32
    %26 = vector.broadcast %cst_14 : f32 to vector<20x32xf32>
    %27 = arith.mulf %25, %26 : vector<20x32xf32>
    %28 = arith.addf %24, %27 : vector<20x32xf32>
    %29 = arith.mulf %28, %28 : vector<20x32xf32>
    %30 = arith.mulf %28, %29 : vector<20x32xf32>
    %cst_15 = arith.constant 4.471500e-02 : f32
    %31 = vector.broadcast %cst_15 : f32 to vector<20x32xf32>
    %32 = arith.mulf %31, %30 : vector<20x32xf32>
    %33 = arith.addf %28, %32 : vector<20x32xf32>
    %cst_16 = arith.constant 0.797884583 : f32
    %34 = vector.broadcast %cst_16 : f32 to vector<20x32xf32>
    %35 = arith.mulf %34, %33 : vector<20x32xf32>
    %36 = math.tanh %35 : vector<20x32xf32>
    %cst_17 = arith.constant 1.000000e+00 : f32
    %37 = vector.broadcast %cst_17 : f32 to vector<20x32xf32>
    %38 = arith.addf %37, %36 : vector<20x32xf32>
    %cst_18 = arith.constant 5.000000e-01 : f32
    %39 = vector.broadcast %cst_18 : f32 to vector<20x32xf32>
    %40 = arith.mulf %39, %38 : vector<20x32xf32>
    %41 = arith.mulf %28, %40 : vector<20x32xf32>
    %42 = arith.truncf %41 : vector<20x32xf32> to vector<20x32xbf16>
    %c0_19 = arith.constant 0 : index
    %c0_20 = arith.constant 0 : index
    %43 = vector.load %arg8[%c0_19, %c0_20] : memref<20x32xbf16, #tpu.memory_space<vmem>>, vector<20x32xbf16>
    tpu.vector_store %arg8[%c0_19, %c0_20], %42 {strides = array<i32>} : memref<20x32xbf16, #tpu.memory_space<vmem>>, vector<20x32xbf16>,
    %44 = arith.truncf %28 : vector<20x32xf32> to vector<20x32xbf16>
    %c0_21 = arith.constant 0 : index
    %c0_22 = arith.constant 0 : index
    %45 = vector.load %arg6[%c0_21, %c0_22] : memref<32x32xbf16, #tpu.memory_space<vmem>>, vector<32x32xbf16>
    %cst_23 = arith.constant dense<0.000000e+00> : vector<20x32xf32>
    %46 = tpu.matmul %44, %45, %cst_23 {dimension_numbers = #tpu.dot_dimension_numbers<[1], [0], [0], [1], [0, 0, 1, 1], [], []>} : vector<20x32xbf16>, vector<32x32xbf16>, vector<20x32xf32> -> vector<20x32xf32>
    %47 = arith.truncf %46 : vector<20x32xf32> to vector<20x32xbf16>
    %c0_24 = arith.constant 0 : index
    %c0_25 = arith.constant 0 : index
    %48 = vector.load %arg9[%c0_24, %c0_25] : memref<20x32xbf16, #tpu.memory_space<vmem>>, vector<20x32xbf16>
    tpu.vector_store %arg9[%c0_24, %c0_25], %47 {strides = array<i32>} : memref<20x32xbf16, #tpu.memory_space<vmem>>, vector<20x32xbf16>,
    %c0_26 = arith.constant 0 : index
    %c0_27 = arith.constant 0 : index
    %49 = vector.load %arg7[%c0_26, %c0_27] : memref<32x32xbf16, #tpu.memory_space<vmem>>, vector<32x32xbf16>
    %cst_28 = arith.constant dense<0.000000e+00> : vector<20x32xf32>
    %50 = tpu.matmul %44, %49, %cst_28 {dimension_numbers = #tpu.dot_dimension_numbers<[1], [0], [0], [1], [0, 0, 1, 1], [], []>} : vector<20x32xbf16>, vector<32x32xbf16>, vector<20x32xf32> -> vector<20x32xf32>
    %51 = arith.truncf %50 : vector<20x32xf32> to vector<20x32xbf16>
    %c0_29 = arith.constant 0 : index
    %c0_30 = arith.constant 0 : index
    %52 = vector.load %arg10[%c0_29, %c0_30] : memref<20x32xbf16, #tpu.memory_space<vmem>>, vector<20x32xbf16>
    tpu.vector_store %arg10[%c0_29, %c0_30], %51 {strides = array<i32>} : memref<20x32xbf16, #tpu.memory_space<vmem>>, vector<20x32xbf16>,
    return
  }
  func.func @transform_0(%arg0: i32) -> (i32, i32) {
    %c0_i32 = arith.constant 0 : i32
    %c0_i32_0 = arith.constant 0 : i32
    return %arg0, %c0_i32 : i32, i32
  }
  func.func @transform_1(%arg0: i32) -> (i32, i32) {
    %c0_i32 = arith.constant 0 : i32
    %c0_i32_0 = arith.constant 0 : i32
    %c0_i32_1 = arith.constant 0 : i32
    return %c0_i32, %c0_i32_0 : i32, i32
  }
  func.func @transform_2(%arg0: i32) -> (i32, i32) {
    %c0_i32 = arith.constant 0 : i32
    %c0_i32_0 = arith.constant 0 : i32
    %c0_i32_1 = arith.constant 0 : i32
    return %c0_i32, %c0_i32_0 : i32, i32
  }
  func.func @transform_3(%arg0: i32) -> (i32, i32) {
    %c0_i32 = arith.constant 0 : i32
    %c0_i32_0 = arith.constant 0 : i32
    %c0_i32_1 = arith.constant 0 : i32
    return %c0_i32, %c0_i32_0 : i32, i32
  }
  func.func @transform_4(%arg0: i32) -> (i32, i32) {
    %c0_i32 = arith.constant 0 : i32
    %c0_i32_0 = arith.constant 0 : i32
    %c0_i32_1 = arith.constant 0 : i32
    return %c0_i32, %c0_i32_0 : i32, i32
  }
  func.func @transform_5(%arg0: i32) -> (i32, i32) {
    %c0_i32 = arith.constant 0 : i32
    %c0_i32_0 = arith.constant 0 : i32
    %c0_i32_1 = arith.constant 0 : i32
    return %c0_i32, %c0_i32_0 : i32, i32
  }
  func.func @transform_6(%arg0: i32) -> (i32, i32) {
    %c0_i32 = arith.constant 0 : i32
    %c0_i32_0 = arith.constant 0 : i32
    %c0_i32_1 = arith.constant 0 : i32
    return %c0_i32, %c0_i32_0 : i32, i32
  }
  func.func @transform_7(%arg0: i32) -> (i32, i32) {
    %c0_i32 = arith.constant 0 : i32
    %c0_i32_0 = arith.constant 0 : i32
    return %arg0, %c0_i32 : i32, i32
  }
  func.func @transform_8(%arg0: i32) -> (i32, i32) {
    %c0_i32 = arith.constant 0 : i32
    %c0_i32_0 = arith.constant 0 : i32
    return %arg0, %c0_i32 : i32, i32
  }
  func.func @transform_9(%arg0: i32) -> (i32, i32) {
    %c0_i32 = arith.constant 0 : i32
    %c0_i32_0 = arith.constant 0 : i32
    return %arg0, %c0_i32 : i32, i32
  }
}

module attributes {stable_mosaic.version = 11 : i64} {
  func.func @_node_ffn_kernel(%arg0: i32, %arg1: memref<20x32xbf16, #tpu.memory_space<vmem>>, %arg2: memref<32x64xbf16, #tpu.memory_space<vmem>>, %arg3: memref<1x64xf32, #tpu.memory_space<vmem>>, %arg4: memref<64x32xbf16, #tpu.memory_space<vmem>>, %arg5: memref<1x32xf32, #tpu.memory_space<vmem>>, %arg6: memref<32x32xbf16, #tpu.memory_space<vmem>>, %arg7: memref<32x32xbf16, #tpu.memory_space<vmem>>, %arg8: memref<20x32xbf16, #tpu.memory_space<vmem>>, %arg9: memref<20x32xbf16, #tpu.memory_space<vmem>>, %arg10: memref<20x32xbf16, #tpu.memory_space<vmem>>) attributes {dimension_semantics = [#tpu.dimension_semantics<parallel>], iteration_bounds = array<i64: 1>, scalar_prefetch = 0 : i64, scratch_operands = 0 : i64, tpu.core_type = #tpu.core_type<tc>, window_params = [{transform_indices = @transform_0, window_bounds = array<i64: 20, 32>}, {pipeline_mode = #tpu.pipeline_mode<synchronous>, transform_indices = @transform_1, window_bounds = array<i64: 32, 64>}, {pipeline_mode = #tpu.pipeline_mode<synchronous>, transform_indices = @transform_2, window_bounds = array<i64: 1, 64>}, {pipeline_mode = #tpu.pipeline_mode<synchronous>, transform_indices = @transform_3, window_bounds = array<i64: 64, 32>}, {pipeline_mode = #tpu.pipeline_mode<synchronous>, transform_indices = @transform_4, window_bounds = array<i64: 1, 32>}, {pipeline_mode = #tpu.pipeline_mode<synchronous>, transform_indices = @transform_5, window_bounds = array<i64: 32, 32>}, {pipeline_mode = #tpu.pipeline_mode<synchronous>, transform_indices = @transform_6, window_bounds = array<i64: 32, 32>}, {transform_indices = @transform_7, window_bounds = array<i64: 20, 32>}, {transform_indices = @transform_8, window_bounds = array<i64: 20, 32>}, {transform_indices = @transform_9, window_bounds = array<i64: 20, 32>}]} {
    %c0 = arith.constant 0 : index
    %c0_0 = arith.constant 0 : index
    %0 = vector.load %arg1[%c0, %c0_0] : memref<20x32xbf16, #tpu.memory_space<vmem>>, vector<20x32xbf16>
    %c0_1 = arith.constant 0 : index
    %c0_2 = arith.constant 0 : index
    %1 = vector.load %arg2[%c0_1, %c0_2] : memref<32x64xbf16, #tpu.memory_space<vmem>>, vector<32x64xbf16>
    %cst = arith.constant dense<0.000000e+00> : vector<20x64xf32>
    %2 = tpu.matmul %0, %1, %cst {dimension_numbers = #tpu.dot_dimension_numbers<[1], [0], [0], [1], [0, 0, 1, 1], [], []>} : vector<20x32xbf16>, vector<32x64xbf16>, vector<20x64xf32> -> vector<20x64xf32>
    %c0_3 = arith.constant 0 : index
    %c0_4 = arith.constant 0 : index
    %3 = vector.load %arg3[%c0_3, %c0_4] : memref<1x64xf32, #tpu.memory_space<vmem>>, vector<1x64xf32>
    %4 = vector.broadcast %3 : vector<1x64xf32> to vector<20x64xf32>
    %5 = arith.addf %2, %4 : vector<20x64xf32>
    %6 = arith.mulf %5, %5 : vector<20x64xf32>
    %7 = arith.mulf %5, %6 : vector<20x64xf32>
    %cst_5 = arith.constant 4.471500e-02 : f32
    %8 = vector.broadcast %cst_5 : f32 to vector<20x64xf32>
    %9 = arith.mulf %8, %7 : vector<20x64xf32>
    %10 = arith.addf %5, %9 : vector<20x64xf32>
    %cst_6 = arith.constant 0.797884583 : f32
    %11 = vector.broadcast %cst_6 : f32 to vector<20x64xf32>
    %12 = arith.mulf %11, %10 : vector<20x64xf32>
    %13 = math.tanh %12 : vector<20x64xf32>
    %cst_7 = arith.constant 1.000000e+00 : f32
    %14 = vector.broadcast %cst_7 : f32 to vector<20x64xf32>
    %15 = arith.addf %14, %13 : vector<20x64xf32>
    %cst_8 = arith.constant 5.000000e-01 : f32
    %16 = vector.broadcast %cst_8 : f32 to vector<20x64xf32>
    %17 = arith.mulf %16, %15 : vector<20x64xf32>
    %18 = arith.mulf %5, %17 : vector<20x64xf32>
    %19 = arith.truncf %18 : vector<20x64xf32> to vector<20x64xbf16>
    %c0_9 = arith.constant 0 : index
    %c0_10 = arith.constant 0 : index
    %20 = vector.load %arg4[%c0_9, %c0_10] : memref<64x32xbf16, #tpu.memory_space<vmem>>, vector<64x32xbf16>
    %cst_11 = arith.constant dense<0.000000e+00> : vector<20x32xf32>
    %21 = tpu.matmul %19, %20, %cst_11 {dimension_numbers = #tpu.dot_dimension_numbers<[1], [0], [0], [1], [0, 0, 1, 1], [], []>} : vector<20x64xbf16>, vector<64x32xbf16>, vector<20x32xf32> -> vector<20x32xf32>
    %c0_12 = arith.constant 0 : index
    %c0_13 = arith.constant 0 : index
    %22 = vector.load %arg5[%c0_12, %c0_13] : memref<1x32xf32, #tpu.memory_space<vmem>>, vector<1x32xf32>
    %23 = vector.broadcast %22 : vector<1x32xf32> to vector<20x32xf32>
    %24 = arith.addf %21, %23 : vector<20x32xf32>
    %25 = arith.extf %0 : vector<20x32xbf16> to vector<20x32xf32>
    %cst_14 = arith.constant 0.999994993 : f32
    %26 = vector.broadcast %cst_14 : f32 to vector<20x32xf32>
    %27 = arith.mulf %25, %26 : vector<20x32xf32>
    %28 = arith.addf %24, %27 : vector<20x32xf32>
    %29 = arith.mulf %28, %28 : vector<20x32xf32>
    %30 = arith.mulf %28, %29 : vector<20x32xf32>
    %cst_15 = arith.constant 4.471500e-02 : f32
    %31 = vector.broadcast %cst_15 : f32 to vector<20x32xf32>
    %32 = arith.mulf %31, %30 : vector<20x32xf32>
    %33 = arith.addf %28, %32 : vector<20x32xf32>
    %cst_16 = arith.constant 0.797884583 : f32
    %34 = vector.broadcast %cst_16 : f32 to vector<20x32xf32>
    %35 = arith.mulf %34, %33 : vector<20x32xf32>
    %36 = math.tanh %35 : vector<20x32xf32>
    %cst_17 = arith.constant 1.000000e+00 : f32
    %37 = vector.broadcast %cst_17 : f32 to vector<20x32xf32>
    %38 = arith.addf %37, %36 : vector<20x32xf32>
    %cst_18 = arith.constant 5.000000e-01 : f32
    %39 = vector.broadcast %cst_18 : f32 to vector<20x32xf32>
    %40 = arith.mulf %39, %38 : vector<20x32xf32>
    %41 = arith.mulf %28, %40 : vector<20x32xf32>
    %42 = arith.truncf %41 : vector<20x32xf32> to vector<20x32xbf16>
    %c0_19 = arith.constant 0 : index
    %c0_20 = arith.constant 0 : index
    %43 = vector.load %arg8[%c0_19, %c0_20] : memref<20x32xbf16, #tpu.memory_space<vmem>>, vector<20x32xbf16>
    tpu.vector_store %arg8[%c0_19, %c0_20], %42 {strides = array<i32>} : memref<20x32xbf16, #tpu.memory_space<vmem>>, vector<20x32xbf16>,
    %44 = arith.truncf %28 : vector<20x32xf32> to vector<20x32xbf16>
    %c0_21 = arith.constant 0 : index
    %c0_22 = arith.constant 0 : index
    %45 = vector.load %arg6[%c0_21, %c0_22] : memref<32x32xbf16, #tpu.memory_space<vmem>>, vector<32x32xbf16>
    %cst_23 = arith.constant dense<0.000000e+00> : vector<20x32xf32>
    %46 = tpu.matmul %44, %45, %cst_23 {dimension_numbers = #tpu.dot_dimension_numbers<[1], [0], [0], [1], [0, 0, 1, 1], [], []>} : vector<20x32xbf16>, vector<32x32xbf16>, vector<20x32xf32> -> vector<20x32xf32>
    %47 = arith.truncf %46 : vector<20x32xf32> to vector<20x32xbf16>
    %c0_24 = arith.constant 0 : index
    %c0_25 = arith.constant 0 : index
    %48 = vector.load %arg9[%c0_24, %c0_25] : memref<20x32xbf16, #tpu.memory_space<vmem>>, vector<20x32xbf16>
    tpu.vector_store %arg9[%c0_24, %c0_25], %47 {strides = array<i32>} : memref<20x32xbf16, #tpu.memory_space<vmem>>, vector<20x32xbf16>,
    %c0_26 = arith.constant 0 : index
    %c0_27 = arith.constant 0 : index
    %49 = vector.load %arg7[%c0_26, %c0_27] : memref<32x32xbf16, #tpu.memory_space<vmem>>, vector<32x32xbf16>
    %cst_28 = arith.constant dense<0.000000e+00> : vector<20x32xf32>
    %50 = tpu.matmul %44, %49, %cst_28 {dimension_numbers = #tpu.dot_dimension_numbers<[1], [0], [0], [1], [0, 0, 1, 1], [], []>} : vector<20x32xbf16>, vector<32x32xbf16>, vector<20x32xf32> -> vector<20x32xf32>
    %51 = arith.truncf %50 : vector<20x32xf32> to vector<20x32xbf16>
    %c0_29 = arith.constant 0 : index
    %c0_30 = arith.constant 0 : index
    %52 = vector.load %arg10[%c0_29, %c0_30] : memref<20x32xbf16, #tpu.memory_space<vmem>>, vector<20x32xbf16>
    tpu.vector_store %arg10[%c0_29, %c0_30], %51 {strides = array<i32>} : memref<20x32xbf16, #tpu.memory_space<vmem>>, vector<20x32xbf16>,
    return
  }
  func.func @transform_0(%arg0: i32) -> (i32, i32) {
    %c0_i32 = arith.constant 0 : i32
    %c0_i32_0 = arith.constant 0 : i32
    return %arg0, %c0_i32 : i32, i32
  }
  func.func @transform_1(%arg0: i32) -> (i32, i32) {
    %c0_i32 = arith.constant 0 : i32
    %c0_i32_0 = arith.constant 0 : i32
    %c0_i32_1 = arith.constant 0 : i32
    return %c0_i32, %c0_i32_0 : i32, i32
  }
  func.func @transform_2(%arg0: i32) -> (i32, i32) {
    %c0_i32 = arith.constant 0 : i32
    %c0_i32_0 = arith.constant 0 : i32
    %c0_i32_1 = arith.constant 0 : i32
    return %c0_i32, %c0_i32_0 : i32, i32
  }
  func.func @transform_3(%arg0: i32) -> (i32, i32) {
    %c0_i32 = arith.constant 0 : i32
    %c0_i32_0 = arith.constant 0 : i32
    %c0_i32_1 = arith.constant 0 : i32
    return %c0_i32, %c0_i32_0 : i32, i32
  }
  func.func @transform_4(%arg0: i32) -> (i32, i32) {
    %c0_i32 = arith.constant 0 : i32
    %c0_i32_0 = arith.constant 0 : i32
    %c0_i32_1 = arith.constant 0 : i32
    return %c0_i32, %c0_i32_0 : i32, i32
  }
  func.func @transform_5(%arg0: i32) -> (i32, i32) {
    %c0_i32 = arith.constant 0 : i32
    %c0_i32_0 = arith.constant 0 : i32
    %c0_i32_1 = arith.constant 0 : i32
    return %c0_i32, %c0_i32_0 : i32, i32
  }
  func.func @transform_6(%arg0: i32) -> (i32, i32) {
    %c0_i32 = arith.constant 0 : i32
    %c0_i32_0 = arith.constant 0 : i32
    %c0_i32_1 = arith.constant 0 : i32
    return %c0_i32, %c0_i32_0 : i32, i32
  }
  func.func @transform_7(%arg0: i32) -> (i32, i32) {
    %c0_i32 = arith.constant 0 : i32
    %c0_i32_0 = arith.constant 0 : i32
    return %arg0, %c0_i32 : i32, i32
  }
  func.func @transform_8(%arg0: i32) -> (i32, i32) {
    %c0_i32 = arith.constant 0 : i32
    %c0_i32_0 = arith.constant 0 : i32
    return %arg0, %c0_i32 : i32, i32
  }
  func.func @transform_9(%arg0: i32) -> (i32, i32) {
    %c0_i32 = arith.constant 0 : i32
    %c0_i32_0 = arith.constant 0 : i32
    return %arg0, %c0_i32 : i32, i32
  }
}

</mosaic_0001>

<llo_original>
// kernel: run.9
$region0: #{run.9}
  #allocation0 [shape = 'u32[]', space=smem, size = 0x4, offset = 0x4, fixed_abs, tag = 'smem constant byte address 0x4 - core index']
  #allocation1 [shape = 'u32[144,128]{1,0:T(1,128)}', space=vmem, size = 0x12000, scoped, tag = 'internal scratch']
  %s0 = inlined_call_operand.vmem [shape: bf16[20,16], index: 0, kind: input, shape index: {}]
  %s1 = inlined_call_operand.vmem [shape: bf16[16,32], index: 1, kind: input, shape index: {}]
  %s2 = inlined_call_operand.vmem [shape: f32[1,32], index: 2, kind: input, shape index: {}]
  %s3 = inlined_call_operand.vmem [shape: bf16[20,32], index: 3, kind: output, shape index: {}]
  %s4 = sld [smem:[#allocation0]]
  $region22: #{run.9} parent=0
    _
  %s6 = ssub.s32 1, %s4
  %s7 = scalar_select 0, %s6, %s4
  // Predicated region
  $region2: #{run.9} parent=0 // pred_check
    _
  $region3: #{run.9} parent=0 // pred_check_branch
    %9 = sbr.rel (0) target = $region5
  $region4: #{run.9} parent=0 // pred_region
    _
  $region5: #{run.9} parent=0 // pred_fallthru
    _
  // Predicated region
  $region6: #{run.9} parent=0 // pred_check
    _
  $region7: #{run.9} parent=0 // pred_check_branch
    %11 = sbr.rel (0) target = $region9
  $region8: #{run.9} parent=0 // pred_region
    _
  $region9: #{run.9} parent=0 // pred_fallthru
    _
  // Predicated region
  $region10: #{run.9} parent=0 // pred_check
    _
  $region11: #{run.9} parent=0 // pred_check_branch
    %13 = sbr.rel (0) target = $region13
  $region12: #{run.9} parent=0 // pred_region
    _
  $region13: #{run.9} parent=0 // pred_fallthru
    _
  %v15 = vld [vmem:[%s0] sm:$0xf]
  %v16 = vld [vmem:[%s0 + $0x4] sm:$0xf]
  %v17 = vld [vmem:[%s0 + $0x8] sm:$0x3]
  %v18 = vld [vmem:[%s1] sm:$0xf]
  %v19 = vld [vmem:[%s1 + $0x4] sm:$0xf]
  %v20 = vld [vmem:[%s2] sm:$0x1]
  %v22 = vlaneseq
  %v23 = vshrl.u32 %v22, 7
  %v24 = vsub.s32 0, %v23
  %v25 = vrot.slane %v20, %v24
  %v30 = vunpack.c.l.b16 %v15
  %v31 = vunpack.c.l.b16 %v16
  %v32 = vunpack.c.l.b16 %v17
  %v33 = vpack.c.b16 %v31, %v30
  %v34 = vpack.c.b16 %v32, %v32
  %v37 = vunpack.c.l.b16 %v18
  %v38 = vunpack.c.l.b16 %v19
  %v39 = vpack.c.b16 %v38, %v37
  %vm41 = vcmask 130048
  %v43 = vsel %vm41, %v33, 0
  %v46 = vsel %vm41, %v34, 0
  %48 = vmatprep.subr.bf16.mxu0 0
  %49 = vmatpush1.bf16.msra.mxu0 0
  %50 = vmatprep.subr.bf16.mxu0 0
  %51 = vmatpush1.bf16.msra.mxu0 0
  %52 = vmatprep.subr.bf16.mxu0 0
  %53 = vmatpush1.bf16.msra.mxu0 0
  %54 = vmatprep.subr.bf16.mxu0 0
  %55 = vmatpush1.bf16.msra.mxu0 0
  %56 = vmatprep.subr.bf16.mxu0 0
  %57 = vmatpush1.bf16.msra.mxu0 0
  %58 = vmatprep.subr.bf16.mxu0 0
  %59 = vmatpush1.bf16.msra.mxu0 0
  %60 = vmatprep.subr.bf16.mxu0 0
  %61 = vmatpush1.bf16.msra.mxu0 0
  %62 = vmatprep.subr.bf16.mxu0 0
  %63 = vmatpush1.bf16.msra.mxu0 %v39
  %64 = vmatprep.subr.bf16.mxu0 0
  %65 = vmatpush2.bf16.msra.mxu0 0
  %66 = vmatprep.subr.bf16.mxu0 0
  %67 = vmatpush2.bf16.msra.mxu0 0
  %68 = vmatprep.subr.bf16.mxu0 0
  %69 = vmatpush2.bf16.msra.mxu0 0
  %70 = vmatprep.subr.bf16.mxu0 0
  %71 = vmatpush2.bf16.msra.mxu0 0
  %72 = vmatprep.subr.bf16.mxu0 0
  %73 = vmatpush2.bf16.msra.mxu0 0
  %74 = vmatprep.subr.bf16.mxu0 0
  %75 = vmatpush2.bf16.msra.mxu0 0
  %76 = vmatprep.subr.bf16.mxu0 0
  %77 = vmatpush2.bf16.msra.mxu0 0
  %78 = vmatprep.subr.bf16.mxu0 0
  %79 = vmatpush2.bf16.msra.mxu0 0
  %80 = vmatprep.mubr.bf16.mxu0 0
  %81 = vmatmul.mubr.bf16.gmra.mxu0 %v43
  %v82 = vpop.f32.mrf.mxu0
  %v83 = vadd.f32 %v25, %v82
  %v84 = vpop.f32.mrf.mxu0
  %v85 = vpop.f32.mrf.mxu0
  %v86 = vadd.f32 %v25, %v85
  %v87 = vpop.f32.mrf.mxu0
  %88 = vmatprep.mubr.bf16.mxu0 0
  %89 = vmatmul.mubr.bf16.gmra.mxu0 %v46
  %v90 = vpop.f32.mrf.mxu0
  %v91 = vadd.f32 %v25, %v90
  %v92 = vpop.f32.mrf.mxu0
  %v93 = vpop.f32.mrf.mxu0
  %v94 = vpop.f32.mrf.mxu0
  %95 = vdwg.mxu0
  %v96 = vmax.f32 %v83, 0.0
  %v97 = vmax.f32 %v86, 0.0
  %v98 = vmax.f32 %v91, 0.0
  %v99 = vpack.c.bf16 %v97, %v96
  %v100 = vpack.c.bf16 %v98, %v98
  %v103 = vunpack.c.l.b16 %v99
  %v104 = vunpack.c.h.b16 %v99
  %v105 = vunpack.c.l.b16 %v100
  %v106 = vpack.c.b16 %v103, %v103
  %v107 = vpack.c.b16 %v104, %v104
  %v108 = vpack.c.b16 %v105, %v105
  %vm112 = vcmask 257024
  %113 = vst.msk [vmem:[%s3] sm:$0xf] %vm112, %v106
  %114 = vst.msk [vmem:[%s3 + $0x4] sm:$0xf] %vm112, %v107
  %vm115 = vcmask 254976
  %116 = vst.msk [vmem:[%s3 + $0x8] sm:$0x3] %vm115, %v108
  // Predicated region
  $region14: #{run.9} parent=0 // pred_check
    _
  $region15: #{run.9} parent=0 // pred_check_branch
    %118 = sbr.rel (0) target = $region17
  $region16: #{run.9} parent=0 // pred_region
    _
  $region17: #{run.9} parent=0 // pred_fallthru
    _
  // Predicated region
  $region18: #{run.9} parent=0 // pred_check
    _
  $region19: #{run.9} parent=0 // pred_check_branch
    %120 = sbr.rel (0) target = $region21
  $region20: #{run.9} parent=0 // pred_region
    _
  $region21: #{run.9} parent=0 // pred_fallthru
    _

// kernel: run.11
$region0: #{run.11}
  #allocation0 [shape = 'u32[]', space=smem, size = 0x4, offset = 0x4, fixed_abs, tag = 'smem constant byte address 0x4 - core index']
  #allocation1 [shape = 'u32[144,128]{1,0:T(1,128)}', space=vmem, size = 0x12000, scoped, tag = 'internal scratch']
  %s0 = inlined_call_operand.vmem [shape: bf16[20,32], index: 0, kind: input, shape index: {}]
  %s1 = inlined_call_operand.vmem [shape: bf16[32,32], index: 1, kind: input, shape index: {}]
  %s2 = inlined_call_operand.vmem [shape: bf16[32,32], index: 2, kind: input, shape index: {}]
  %s3 = inlined_call_operand.vmem [shape: bf16[32,32], index: 3, kind: input, shape index: {}]
  %s4 = inlined_call_operand.vmem [shape: bf16[32,32], index: 4, kind: input, shape index: {}]
  %s5 = inlined_call_operand.vmem [shape: f32[1,32], index: 5, kind: input, shape index: {}]
  %s6 = inlined_call_operand.vmem [shape: f32[1,32], index: 6, kind: input, shape index: {}]
  %s7 = inlined_call_operand.vmem [shape: f32[1,32], index: 7, kind: input, shape index: {}]
  %s8 = inlined_call_operand.vmem [shape: f32[1,32], index: 8, kind: input, shape index: {}]
  %s9 = inlined_call_operand.vmem [shape: bf16[20,32], index: 9, kind: output, shape index: {0}]
  %s10 = inlined_call_operand.vmem [shape: bf16[20,32], index: 10, kind: output, shape index: {1}]
  %s11 = inlined_call_operand.vmem [shape: bf16[20,32], index: 11, kind: output, shape index: {2}]
  %s12 = inlined_call_operand.vmem [shape: f32[20,32], index: 12, kind: output, shape index: {3}]
  %13 = xla_tuple %s9, %s10, %s11, %s12
  %s14 = sld [smem:[#allocation0]]
  $region70: #{run.11} parent=0
    _
  %s16 = ssub.s32 1, %s14
  %s17 = scalar_select 0, %s16, %s14
  // Predicated region
  $region2: #{run.11} parent=0 // pred_check
    _
  $region3: #{run.11} parent=0 // pred_check_branch
    %19 = sbr.rel (0) target = $region5
  $region4: #{run.11} parent=0 // pred_region
    _
  $region5: #{run.11} parent=0 // pred_fallthru
    _
  // Predicated region
  $region6: #{run.11} parent=0 // pred_check
    _
  $region7: #{run.11} parent=0 // pred_check_branch
    %21 = sbr.rel (0) target = $region9
  $region8: #{run.11} parent=0 // pred_region
    _
  $region9: #{run.11} parent=0 // pred_fallthru
    _
  // Predicated region
  $region10: #{run.11} parent=0 // pred_check
    _
  $region11: #{run.11} parent=0 // pred_check_branch
    %23 = sbr.rel (0) target = $region13
  $region12: #{run.11} parent=0 // pred_region
    _
  $region13: #{run.11} parent=0 // pred_fallthru
    _
  // Predicated region
  $region14: #{run.11} parent=0 // pred_check
    _
  $region15: #{run.11} parent=0 // pred_check_branch
    %25 = sbr.rel (0) target = $region17
  $region16: #{run.11} parent=0 // pred_region
    _
  $region17: #{run.11} parent=0 // pred_fallthru
    _
  // Predicated region
  $region18: #{run.11} parent=0 // pred_check
    _
  $region19: #{run.11} parent=0 // pred_check_branch
    %27 = sbr.rel (0) target = $region21
  $region20: #{run.11} parent=0 // pred_region
    _
  $region21: #{run.11} parent=0 // pred_fallthru
    _
  // Predicated region
  $region22: #{run.11} parent=0 // pred_check
    _
  $region23: #{run.11} parent=0 // pred_check_branch
    %29 = sbr.rel (0) target = $region25
  $region24: #{run.11} parent=0 // pred_region
    _
  $region25: #{run.11} parent=0 // pred_fallthru
    _
  // Predicated region
  $region26: #{run.11} parent=0 // pred_check
    _
  $region27: #{run.11} parent=0 // pred_check_branch
    %31 = sbr.rel (0) target = $region29
  $region28: #{run.11} parent=0 // pred_region
    _
  $region29: #{run.11} parent=0 // pred_fallthru
    _
  // Predicated region
  $region30: #{run.11} parent=0 // pred_check
    _
  $region31: #{run.11} parent=0 // pred_check_branch
    %33 = sbr.rel (0) target = $region33
  $region32: #{run.11} parent=0 // pred_region
    _
  $region33: #{run.11} parent=0 // pred_fallthru
    _
  // Predicated region
  $region34: #{run.11} parent=0 // pred_check
    _
  $region35: #{run.11} parent=0 // pred_check_branch
    %35 = sbr.rel (0) target = $region37
  $region36: #{run.11} parent=0 // pred_region
    _
  $region37: #{run.11} parent=0 // pred_fallthru
    _
  %v37 = vld [vmem:[%s0] sm:$0xf]
  %v38 = vld [vmem:[%s0 + $0x4] sm:$0xf]
  %v39 = vld [vmem:[%s0 + $0x8] sm:$0x3]
  %v40 = vld [vmem:[%s1] sm:$0xf]
  %v41 = vld [vmem:[%s1 + $0x4] sm:$0xf]
  %v42 = vld [vmem:[%s1 + $0x8] sm:$0xf]
  %v43 = vld [vmem:[%s1 + $0xc] sm:$0xf]
  %v44 = vld [vmem:[%s5] sm:$0x1]
  %v46 = vlaneseq
  %v47 = vshrl.u32 %v46, 7
  %v48 = vsub.s32 0, %v47
  %v49 = vrot.slane %v44, %v48
  %v54 = vunpack.c.l.b16 %v37
  %v55 = vunpack.c.l.b16 %v38
  %v56 = vunpack.c.l.b16 %v39
  %v57 = vpack.c.b16 %v55, %v54
  %v58 = vpack.c.b16 %v56, %v56
  %v63 = vunpack.c.l.b16 %v40
  %v64 = vunpack.c.l.b16 %v41
  %v65 = vunpack.c.l.b16 %v42
  %v66 = vunpack.c.l.b16 %v43
  %v67 = vpack.c.b16 %v64, %v63
  %v68 = vpack.c.b16 %v66, %v65
  %vm71 = vcmask 261120
  %v73 = vsel %vm71, %v57, 0
  %v76 = vsel %vm71, %v58, 0
  %78 = vmatprep.subr.bf16.mxu0 0
  %79 = vmatpush1.bf16.msra.mxu0 0
  %80 = vmatprep.subr.bf16.mxu0 0
  %81 = vmatpush1.bf16.msra.mxu0 0
  %82 = vmatprep.subr.bf16.mxu0 0
  %83 = vmatpush1.bf16.msra.mxu0 0
  %84 = vmatprep.subr.bf16.mxu0 0
  %85 = vmatpush1.bf16.msra.mxu0 0
  %86 = vmatprep.subr.bf16.mxu0 0
  %87 = vmatpush1.bf16.msra.mxu0 0
  %88 = vmatprep.subr.bf16.mxu0 0
  %89 = vmatpush1.bf16.msra.mxu0 0
  %90 = vmatprep.subr.bf16.mxu0 0
  %91 = vmatpush1.bf16.msra.mxu0 %v68
  %92 = vmatprep.subr.bf16.mxu0 0
  %93 = vmatpush1.bf16.msra.mxu0 %v67
  %94 = vmatprep.subr.bf16.mxu0 0
  %95 = vmatpush2.bf16.msra.mxu0 0
  %96 = vmatprep.subr.bf16.mxu0 0
  %97 = vmatpush2.bf16.msra.mxu0 0
  %98 = vmatprep.subr.bf16.mxu0 0
  %99 = vmatpush2.bf16.msra.mxu0 0
  %100 = vmatprep.subr.bf16.mxu0 0
  %101 = vmatpush2.bf16.msra.mxu0 0
  %102 = vmatprep.subr.bf16.mxu0 0
  %103 = vmatpush2.bf16.msra.mxu0 0
  %104 = vmatprep.subr.bf16.mxu0 0
  %105 = vmatpush2.bf16.msra.mxu0 0
  %106 = vmatprep.subr.bf16.mxu0 0
  %107 = vmatpush2.bf16.msra.mxu0 0
  %108 = vmatprep.subr.bf16.mxu0 0
  %109 = vmatpush2.bf16.msra.mxu0 0
  %110 = vmatprep.mubr.bf16.mxu0 0
  %111 = vmatmul.mubr.bf16.gmra.mxu0 %v73
  %v112 = vpop.f32.mrf.mxu0
  %v113 = vadd.f32 %v49, %v112
  %v114 = vpop.f32.mrf.mxu0
  %v115 = vpop.f32.mrf.mxu0
  %v116 = vadd.f32 %v49, %v115
  %v117 = vpop.f32.mrf.mxu0
  %118 = vmatprep.mubr.bf16.mxu0 0
  %119 = vmatmul.mubr.bf16.gmra.mxu0 %v76
  %v120 = vpop.f32.mrf.mxu0
  %v121 = vadd.f32 %v49, %v120
  %v122 = vpop.f32.mrf.mxu0
  %v123 = vpop.f32.mrf.mxu0
  %v124 = vpop.f32.mrf.mxu0
  %125 = vdwg.mxu0
  %v126 = vpack.c.bf16 %v116, %v113
  %v127 = vpack.c.bf16 %v121, %v121
  %v130 = vunpack.c.l.b16 %v126
  %v131 = vunpack.c.h.b16 %v126
  %v132 = vunpack.c.l.b16 %v127
  %v133 = vpack.c.b16 %v130, %v130
  %v134 = vpack.c.b16 %v131, %v131
  %v135 = vpack.c.b16 %v132, %v132
  %vm139 = vcmask 257024
  %140 = vst.msk [vmem:[%s9] sm:$0xf] %vm139, %v133
  %141 = vst.msk [vmem:[%s9 + $0x4] sm:$0xf] %vm139, %v134
  %vm142 = vcmask 254976
  %143 = vst.msk [vmem:[%s9 + $0x8] sm:$0x3] %vm142, %v135
  %v144 = vld [vmem:[%s2] sm:$0xf]
  %v145 = vld [vmem:[%s2 + $0x4] sm:$0xf]
  %v146 = vld [vmem:[%s2 + $0x8] sm:$0xf]
  %v147 = vld [vmem:[%s2 + $0xc] sm:$0xf]
  %v148 = vld [vmem:[%s6] sm:$0x1]
  %v150 = vlaneseq
  %v151 = vshrl.u32 %v150, 7
  %v152 = vsub.s32 0, %v151
  %v153 = vrot.slane %v148, %v152
  %v159 = vunpack.c.l.b16 %v144
  %v160 = vunpack.c.l.b16 %v145
  %v161 = vunpack.c.l.b16 %v146
  %v162 = vunpack.c.l.b16 %v147
  %v163 = vpack.c.b16 %v160, %v159
  %v164 = vpack.c.b16 %v162, %v161
  %167 = vmatprep.subr.bf16.mxu0 0
  %168 = vmatpush1.bf16.msra.mxu0 0
  %169 = vmatprep.subr.bf16.mxu0 0
  %170 = vmatpush1.bf16.msra.mxu0 0
  %171 = vmatprep.subr.bf16.mxu0 0
  %172 = vmatpush1.bf16.msra.mxu0 0
  %173 = vmatprep.subr.bf16.mxu0 0
  %174 = vmatpush1.bf16.msra.mxu0 0
  %175 = vmatprep.subr.bf16.mxu0 0
  %176 = vmatpush1.bf16.msra.mxu0 0
  %177 = vmatprep.subr.bf16.mxu0 0
  %178 = vmatpush1.bf16.msra.mxu0 0
  %179 = vmatprep.subr.bf16.mxu0 0
  %180 = vmatpush1.bf16.msra.mxu0 %v164
  %181 = vmatprep.subr.bf16.mxu0 0
  %182 = vmatpush1.bf16.msra.mxu0 %v163
  %183 = vmatprep.subr.bf16.mxu0 0
  %184 = vmatpush2.bf16.msra.mxu0 0
  %185 = vmatprep.subr.bf16.mxu0 0
  %186 = vmatpush2.bf16.msra.mxu0 0
  %187 = vmatprep.subr.bf16.mxu0 0
  %188 = vmatpush2.bf16.msra.mxu0 0
  %189 = vmatprep.subr.bf16.mxu0 0
  %190 = vmatpush2.bf16.msra.mxu0 0
  %191 = vmatprep.subr.bf16.mxu0 0
  %192 = vmatpush2.bf16.msra.mxu0 0
  %193 = vmatprep.subr.bf16.mxu0 0
  %194 = vmatpush2.bf16.msra.mxu0 0
  %195 = vmatprep.subr.bf16.mxu0 0
  %196 = vmatpush2.bf16.msra.mxu0 0
  %197 = vmatprep.subr.bf16.mxu0 0
  %198 = vmatpush2.bf16.msra.mxu0 0
  %199 = vmatprep.mubr.bf16.mxu0 0
  %200 = vmatmul.mubr.bf16.gmra.mxu0 %v73
  %v201 = vpop.f32.mrf.mxu0
  %v202 = vadd.f32 %v153, %v201
  %v203 = vpop.f32.mrf.mxu0
  %v204 = vpop.f32.mrf.mxu0
  %v205 = vadd.f32 %v153, %v204
  %v206 = vpop.f32.mrf.mxu0
  %207 = vmatprep.mubr.bf16.mxu0 0
  %208 = vmatmul.mubr.bf16.gmra.mxu0 %v76
  %v209 = vpop.f32.mrf.mxu0
  %v210 = vadd.f32 %v153, %v209
  %v211 = vpop.f32.mrf.mxu0
  %v212 = vpop.f32.mrf.mxu0
  %v213 = vpop.f32.mrf.mxu0
  %214 = vdwg.mxu0
  %v215 = vpack.c.bf16 %v205, %v202
  %v216 = vpack.c.bf16 %v210, %v210
  %v219 = vunpack.c.l.b16 %v215
  %v220 = vunpack.c.h.b16 %v215
  %v221 = vunpack.c.l.b16 %v216
  %v222 = vpack.c.b16 %v219, %v219
  %v223 = vpack.c.b16 %v220, %v220
  %v224 = vpack.c.b16 %v221, %v221
  %228 = vst.msk [vmem:[%s10] sm:$0xf] %vm139, %v222
  %229 = vst.msk [vmem:[%s10 + $0x4] sm:$0xf] %vm139, %v223
  %230 = vst.msk [vmem:[%s10 + $0x8] sm:$0x3] %vm142, %v224
  %v231 = vld [vmem:[%s3] sm:$0xf]
  %v232 = vld [vmem:[%s3 + $0x4] sm:$0xf]
  %v233 = vld [vmem:[%s3 + $0x8] sm:$0xf]
  %v234 = vld [vmem:[%s3 + $0xc] sm:$0xf]
  %v235 = vld [vmem:[%s7] sm:$0x1]
  %v237 = vlaneseq
  %v238 = vshrl.u32 %v237, 7
  %v239 = vsub.s32 0, %v238
  %v240 = vrot.slane %v235, %v239
  %v246 = vunpack.c.l.b16 %v231
  %v247 = vunpack.c.l.b16 %v232
  %v248 = vunpack.c.l.b16 %v233
  %v249 = vunpack.c.l.b16 %v234
  %v250 = vpack.c.b16 %v247, %v246
  %v251 = vpack.c.b16 %v249, %v248
  %254 = vmatprep.subr.bf16.mxu0 0
  %255 = vmatpush1.bf16.msra.mxu0 0
  %256 = vmatprep.subr.bf16.mxu0 0
  %257 = vmatpush1.bf16.msra.mxu0 0
  %258 = vmatprep.subr.bf16.mxu0 0
  %259 = vmatpush1.bf16.msra.mxu0 0
  %260 = vmatprep.subr.bf16.mxu0 0
  %261 = vmatpush1.bf16.msra.mxu0 0
  %262 = vmatprep.subr.bf16.mxu0 0
  %263 = vmatpush1.bf16.msra.mxu0 0
  %264 = vmatprep.subr.bf16.mxu0 0
  %265 = vmatpush1.bf16.msra.mxu0 0
  %266 = vmatprep.subr.bf16.mxu0 0
  %267 = vmatpush1.bf16.msra.mxu0 %v251
  %268 = vmatprep.subr.bf16.mxu0 0
  %269 = vmatpush1.bf16.msra.mxu0 %v250
  %270 = vmatprep.subr.bf16.mxu0 0
  %271 = vmatpush2.bf16.msra.mxu0 0
  %272 = vmatprep.subr.bf16.mxu0 0
  %273 = vmatpush2.bf16.msra.mxu0 0
  %274 = vmatprep.subr.bf16.mxu0 0
  %275 = vmatpush2.bf16.msra.mxu0 0
  %276 = vmatprep.subr.bf16.mxu0 0
  %277 = vmatpush2.bf16.msra.mxu0 0
  %278 = vmatprep.subr.bf16.mxu0 0
  %279 = vmatpush2.bf16.msra.mxu0 0
  %280 = vmatprep.subr.bf16.mxu0 0
  %281 = vmatpush2.bf16.msra.mxu0 0
  %282 = vmatprep.subr.bf16.mxu0 0
  %283 = vmatpush2.bf16.msra.mxu0 0
  %284 = vmatprep.subr.bf16.mxu0 0
  %285 = vmatpush2.bf16.msra.mxu0 0
  %286 = vmatprep.mubr.bf16.mxu0 0
  %287 = vmatmul.mubr.bf16.gmra.mxu0 %v73
  %v288 = vpop.f32.mrf.mxu0
  %v289 = vadd.f32 %v240, %v288
  %v290 = vpop.f32.mrf.mxu0
  %v291 = vpop.f32.mrf.mxu0
  %v292 = vadd.f32 %v240, %v291
  %v293 = vpop.f32.mrf.mxu0
  %294 = vmatprep.mubr.bf16.mxu0 0
  %295 = vmatmul.mubr.bf16.gmra.mxu0 %v76
  %v296 = vpop.f32.mrf.mxu0
  %v297 = vadd.f32 %v240, %v296
  %v298 = vpop.f32.mrf.mxu0
  %v299 = vpop.f32.mrf.mxu0
  %v300 = vpop.f32.mrf.mxu0
  %301 = vdwg.mxu0
  %v302 = vpack.c.bf16 %v292, %v289
  %v303 = vpack.c.bf16 %v297, %v297
  %v306 = vunpack.c.l.b16 %v302
  %v307 = vunpack.c.h.b16 %v302
  %v308 = vunpack.c.l.b16 %v303
  %v309 = vpack.c.b16 %v306, %v306
  %v310 = vpack.c.b16 %v307, %v307
  %v311 = vpack.c.b16 %v308, %v308
  %315 = vst.msk [vmem:[%s11] sm:$0xf] %vm139, %v309
  %316 = vst.msk [vmem:[%s11 + $0x4] sm:$0xf] %vm139, %v310
  %317 = vst.msk [vmem:[%s11 + $0x8] sm:$0x3] %vm142, %v311
  %v318 = vld [vmem:[%s4] sm:$0xf]
  %v319 = vld [vmem:[%s4 + $0x4] sm:$0xf]
  %v320 = vld [vmem:[%s4 + $0x8] sm:$0xf]
  %v321 = vld [vmem:[%s4 + $0xc] sm:$0xf]
  %v322 = vld [vmem:[%s8] sm:$0x1]
  %v324 = vlaneseq
  %v325 = vshrl.u32 %v324, 7
  %v326 = vsub.s32 0, %v325
  %v327 = vrot.slane %v322, %v326
  %v333 = vunpack.c.l.b16 %v318
  %v334 = vunpack.c.l.b16 %v319
  %v335 = vunpack.c.l.b16 %v320
  %v336 = vunpack.c.l.b16 %v321
  %v337 = vpack.c.b16 %v334, %v333
  %v338 = vpack.c.b16 %v336, %v335
  %341 = vmatprep.subr.bf16.mxu0 0
  %342 = vmatpush1.bf16.msra.mxu0 0
  %343 = vmatprep.subr.bf16.mxu0 0
  %344 = vmatpush1.bf16.msra.mxu0 0
  %345 = vmatprep.subr.bf16.mxu0 0
  %346 = vmatpush1.bf16.msra.mxu0 0
  %347 = vmatprep.subr.bf16.mxu0 0
  %348 = vmatpush1.bf16.msra.mxu0 0
  %349 = vmatprep.subr.bf16.mxu0 0
  %350 = vmatpush1.bf16.msra.mxu0 0
  %351 = vmatprep.subr.bf16.mxu0 0
  %352 = vmatpush1.bf16.msra.mxu0 0
  %353 = vmatprep.subr.bf16.mxu0 0
  %354 = vmatpush1.bf16.msra.mxu0 %v338
  %355 = vmatprep.subr.bf16.mxu0 0
  %356 = vmatpush1.bf16.msra.mxu0 %v337
  %357 = vmatprep.subr.bf16.mxu0 0
  %358 = vmatpush2.bf16.msra.mxu0 0
  %359 = vmatprep.subr.bf16.mxu0 0
  %360 = vmatpush2.bf16.msra.mxu0 0
  %361 = vmatprep.subr.bf16.mxu0 0
  %362 = vmatpush2.bf16.msra.mxu0 0
  %363 = vmatprep.subr.bf16.mxu0 0
  %364 = vmatpush2.bf16.msra.mxu0 0
  %365 = vmatprep.subr.bf16.mxu0 0
  %366 = vmatpush2.bf16.msra.mxu0 0
  %367 = vmatprep.subr.bf16.mxu0 0
  %368 = vmatpush2.bf16.msra.mxu0 0
  %369 = vmatprep.subr.bf16.mxu0 0
  %370 = vmatpush2.bf16.msra.mxu0 0
  %371 = vmatprep.subr.bf16.mxu0 0
  %372 = vmatpush2.bf16.msra.mxu0 0
  %373 = vmatprep.mubr.bf16.mxu0 0
  %374 = vmatmul.mubr.bf16.gmra.mxu0 %v73
  %v375 = vpop.f32.mrf.mxu0
  %v376 = vadd.f32 %v327, %v375
  %v377 = vpop.f32.mrf.mxu0
  %v378 = vpop.f32.mrf.mxu0
  %v379 = vadd.f32 %v327, %v378
  %v380 = vpop.f32.mrf.mxu0
  %381 = vmatprep.mubr.bf16.mxu0 0
  %382 = vmatmul.mubr.bf16.gmra.mxu0 %v76
  %v383 = vpop.f32.mrf.mxu0
  %v384 = vadd.f32 %v327, %v383
  %v385 = vpop.f32.mrf.mxu0
  %v386 = vpop.f32.mrf.mxu0
  %v387 = vpop.f32.mrf.mxu0
  %388 = vdwg.mxu0
  %389 = vst.msk [vmem:[%s12] sm:$0xff] %vm71, %v376
  %390 = vst.msk [vmem:[%s12 + $0x8] sm:$0xff] %vm71, %v379
  %391 = vst.msk [vmem:[%s12 + $0x10] sm:$0xf] %vm139, %v384
  // Predicated region
  $region38: #{run.11} parent=0 // pred_check
    _
  $region39: #{run.11} parent=0 // pred_check_branch
    %393 = sbr.rel (0) target = $region41
  $region40: #{run.11} parent=0 // pred_region
    _
  $region41: #{run.11} parent=0 // pred_fallthru
    _
  // Predicated region
  $region42: #{run.11} parent=0 // pred_check
    _
  $region43: #{run.11} parent=0 // pred_check_branch
    %395 = sbr.rel (0) target = $region45
  $region44: #{run.11} parent=0 // pred_region
    _
  $region45: #{run.11} parent=0 // pred_fallthru
    _
  // Predicated region
  $region46: #{run.11} parent=0 // pred_check
    _
  $region47: #{run.11} parent=0 // pred_check_branch
    %397 = sbr.rel (0) target = $region49
  $region48: #{run.11} parent=0 // pred_region
    _
  $region49: #{run.11} parent=0 // pred_fallthru
    _
  // Predicated region
  $region50: #{run.11} parent=0 // pred_check
    _
  $region51: #{run.11} parent=0 // pred_check_branch
    %399 = sbr.rel (0) target = $region53
  $region52: #{run.11} parent=0 // pred_region
    _
  $region53: #{run.11} parent=0 // pred_fallthru
    _
  // Predicated region
  $region54: #{run.11} parent=0 // pred_check
    _
  $region55: #{run.11} parent=0 // pred_check_branch
    %401 = sbr.rel (0) target = $region57
  $region56: #{run.11} parent=0 // pred_region
    _
  $region57: #{run.11} parent=0 // pred_fallthru
    _
  // Predicated region
  $region58: #{run.11} parent=0 // pred_check
    _
  $region59: #{run.11} parent=0 // pred_check_branch
    %403 = sbr.rel (0) target = $region61
  $region60: #{run.11} parent=0 // pred_region
    _
  $region61: #{run.11} parent=0 // pred_fallthru
    _
  // Predicated region
  $region62: #{run.11} parent=0 // pred_check
    _
  $region63: #{run.11} parent=0 // pred_check_branch
    %405 = sbr.rel (0) target = $region65
  $region64: #{run.11} parent=0 // pred_region
    _
  $region65: #{run.11} parent=0 // pred_fallthru
    _
  // Predicated region
  $region66: #{run.11} parent=0 // pred_check
    _
  $region67: #{run.11} parent=0 // pred_check_branch
    %407 = sbr.rel (0) target = $region69
  $region68: #{run.11} parent=0 // pred_region
    _
  $region69: #{run.11} parent=0 // pred_fallthru
    _

// kernel: run.10
$region0: #{run.10}
  #allocation0 [shape = 'u32[]', space=smem, size = 0x4, offset = 0x4, fixed_abs, tag = 'smem constant byte address 0x4 - core index']
  #allocation1 [shape = 'u32[144,128]{1,0:T(1,128)}', space=vmem, size = 0x12000, scoped, tag = 'internal scratch']
  %s0 = inlined_call_operand.vmem [shape: bf16[40,16], index: 0, kind: input, shape index: {}]
  %s1 = inlined_call_operand.vmem [shape: bf16[16,128], index: 1, kind: input, shape index: {}]
  %s2 = inlined_call_operand.vmem [shape: f32[1,128], index: 2, kind: input, shape index: {}]
  %s3 = inlined_call_operand.vmem [shape: bf16[128,32], index: 3, kind: input, shape index: {}]
  %s4 = inlined_call_operand.vmem [shape: f32[1,32], index: 4, kind: input, shape index: {}]
  %s5 = inlined_call_operand.vmem [shape: bf16[40,32], index: 5, kind: output, shape index: {}]
  %s6 = sld [smem:[#allocation0]]
  $region30: #{run.10} parent=0
    _
  %s8 = ssub.s32 1, %s6
  %s9 = scalar_select 0, %s8, %s6
  // Predicated region
  $region2: #{run.10} parent=0 // pred_check
    _
  $region3: #{run.10} parent=0 // pred_check_branch
    %11 = sbr.rel (0) target = $region5
  $region4: #{run.10} parent=0 // pred_region
    _
  $region5: #{run.10} parent=0 // pred_fallthru
    _
  // Predicated region
  $region6: #{run.10} parent=0 // pred_check
    _
  $region7: #{run.10} parent=0 // pred_check_branch
    %13 = sbr.rel (0) target = $region9
  $region8: #{run.10} parent=0 // pred_region
    _
  $region9: #{run.10} parent=0 // pred_fallthru
    _
  // Predicated region
  $region10: #{run.10} parent=0 // pred_check
    _
  $region11: #{run.10} parent=0 // pred_check_branch
    %15 = sbr.rel (0) target = $region13
  $region12: #{run.10} parent=0 // pred_region
    _
  $region13: #{run.10} parent=0 // pred_fallthru
    _
  // Predicated region
  $region14: #{run.10} parent=0 // pred_check
    _
  $region15: #{run.10} parent=0 // pred_check_branch
    %17 = sbr.rel (0) target = $region17
  $region16: #{run.10} parent=0 // pred_region
    _
  $region17: #{run.10} parent=0 // pred_fallthru
    _
  // Predicated region
  $region18: #{run.10} parent=0 // pred_check
    _
  $region19: #{run.10} parent=0 // pred_check_branch
    %19 = sbr.rel (0) target = $region21
  $region20: #{run.10} parent=0 // pred_region
    _
  $region21: #{run.10} parent=0 // pred_fallthru
    _
  %v21 = vld [vmem:[%s0] sm:$0xf]
  %v22 = vld [vmem:[%s0 + $0x4] sm:$0xf]
  %v23 = vld [vmem:[%s0 + $0x8] sm:$0xf]
  %v24 = vld [vmem:[%s0 + $0xc] sm:$0xf]
  %v25 = vld [vmem:[%s0 + $0x10] sm:$0xf]
  %v26 = vld [vmem:[%s1] sm:$0xf]
  %v27 = vld [vmem:[%s1 + $0x4] sm:$0xf]
  %v28 = vld [vmem:[%s2] sm:$0x1]
  %v30 = vlaneseq
  %v31 = vshrl.u32 %v30, 7
  %v32 = vsub.s32 0, %v31
  %v33 = vrot.slane %v28, %v32
  %v40 = vunpack.c.l.b16 %v21
  %v41 = vunpack.c.l.b16 %v22
  %v42 = vunpack.c.l.b16 %v23
  %v43 = vunpack.c.l.b16 %v24
  %v44 = vunpack.c.l.b16 %v25
  %v45 = vpack.c.b16 %v41, %v40
  %v46 = vpack.c.b16 %v43, %v42
  %v47 = vpack.c.b16 %v44, %v44
  %v50 = vunpack.c.l.b16 %v26
  %v51 = vunpack.c.l.b16 %v27
  %v52 = vpack.c.b16 %v51, %v50
  %vm54 = vcmask 130048
  %v56 = vsel %vm54, %v45, 0
  %v59 = vsel %vm54, %v46, 0
  %v62 = vsel %vm54, %v47, 0
  %64 = vmatprep.subr.bf16.mxu0 0
  %65 = vmatpush1.bf16.msra.mxu0 0
  %66 = vmatprep.subr.bf16.mxu0 0
  %67 = vmatpush1.bf16.msra.mxu0 0
  %68 = vmatprep.subr.bf16.mxu0 0
  %69 = vmatpush1.bf16.msra.mxu0 0
  %70 = vmatprep.subr.bf16.mxu0 0
  %71 = vmatpush1.bf16.msra.mxu0 0
  %72 = vmatprep.subr.bf16.mxu0 0
  %73 = vmatpush1.bf16.msra.mxu0 0
  %74 = vmatprep.subr.bf16.mxu0 0
  %75 = vmatpush1.bf16.msra.mxu0 0
  %76 = vmatprep.subr.bf16.mxu0 0
  %77 = vmatpush1.bf16.msra.mxu0 0
  %78 = vmatprep.subr.bf16.mxu0 0
  %79 = vmatpush1.bf16.msra.mxu0 %v52
  %80 = vmatprep.subr.bf16.mxu0 0
  %81 = vmatpush2.bf16.msra.mxu0 0
  %82 = vmatprep.subr.bf16.mxu0 0
  %83 = vmatpush2.bf16.msra.mxu0 0
  %84 = vmatprep.subr.bf16.mxu0 0
  %85 = vmatpush2.bf16.msra.mxu0 0
  %86 = vmatprep.subr.bf16.mxu0 0
  %87 = vmatpush2.bf16.msra.mxu0 0
  %88 = vmatprep.subr.bf16.mxu0 0
  %89 = vmatpush2.bf16.msra.mxu0 0
  %90 = vmatprep.subr.bf16.mxu0 0
  %91 = vmatpush2.bf16.msra.mxu0 0
  %92 = vmatprep.subr.bf16.mxu0 0
  %93 = vmatpush2.bf16.msra.mxu0 0
  %94 = vmatprep.subr.bf16.mxu0 0
  %95 = vmatpush2.bf16.msra.mxu0 0
  %96 = vmatprep.mubr.bf16.mxu0 0
  %97 = vmatmul.mubr.bf16.gmra.mxu0 %v56
  %v98 = vpop.f32.mrf.mxu0
  %v99 = vadd.f32 %v33, %v98
  %v100 = vpop.f32.mrf.mxu0
  %v101 = vpop.f32.mrf.mxu0
  %v102 = vadd.f32 %v33, %v101
  %v103 = vpop.f32.mrf.mxu0
  %104 = vmatprep.mubr.bf16.mxu0 0
  %105 = vmatmul.mubr.bf16.gmra.mxu0 %v59
  %v106 = vpop.f32.mrf.mxu0
  %v107 = vadd.f32 %v33, %v106
  %v108 = vpop.f32.mrf.mxu0
  %v109 = vpop.f32.mrf.mxu0
  %v110 = vadd.f32 %v33, %v109
  %v111 = vpop.f32.mrf.mxu0
  %112 = vmatprep.mubr.bf16.mxu0 0
  %113 = vmatmul.mubr.bf16.gmra.mxu0 %v62
  %v114 = vpop.f32.mrf.mxu0
  %v115 = vadd.f32 %v33, %v114
  %v116 = vpop.f32.mrf.mxu0
  %v117 = vpop.f32.mrf.mxu0
  %v118 = vpop.f32.mrf.mxu0
  %119 = vdwg.mxu0
  %v120 = vmax.f32 %v99, 0.0
  %v121 = vmax.f32 %v102, 0.0
  %v122 = vmax.f32 %v107, 0.0
  %v123 = vmax.f32 %v110, 0.0
  %v124 = vmax.f32 %v115, 0.0
  %v125 = vpack.c.bf16 %v121, %v120
  %v126 = vpack.c.bf16 %v123, %v122
  %v127 = vpack.c.bf16 %v124, %v124
  %v128 = vld [vmem:[%s3] sm:$0xf]
  %v129 = vld [vmem:[%s3 + $0x4] sm:$0xf]
  %v130 = vld [vmem:[%s3 + $0x8] sm:$0xf]
  %v131 = vld [vmem:[%s3 + $0xc] sm:$0xf]
  %v132 = vld [vmem:[%s3 + $0x10] sm:$0xf]
  %v133 = vld [vmem:[%s3 + $0x14] sm:$0xf]
  %v134 = vld [vmem:[%s3 + $0x18] sm:$0xf]
  %v135 = vld [vmem:[%s3 + $0x1c] sm:$0xf]
  %v136 = vld [vmem:[%s3 + $0x20] sm:$0xf]
  %v137 = vld [vmem:[%s3 + $0x24] sm:$0xf]
  %v138 = vld [vmem:[%s3 + $0x28] sm:$0xf]
  %v139 = vld [vmem:[%s3 + $0x2c] sm:$0xf]
  %v140 = vld [vmem:[%s3 + $0x30] sm:$0xf]
  %v141 = vld [vmem:[%s3 + $0x34] sm:$0xf]
  %v142 = vld [vmem:[%s3 + $0x38] sm:$0xf]
  %v143 = vld [vmem:[%s3 + $0x3c] sm:$0xf]
  %v144 = vld [vmem:[%s4] sm:$0x1]
  %v146 = vlaneseq
  %v147 = vshrl.u32 %v146, 7
  %v148 = vsub.s32 0, %v147
  %v149 = vrot.slane %v144, %v148
  %v167 = vunpack.c.l.b16 %v128
  %v168 = vunpack.c.l.b16 %v129
  %v169 = vunpack.c.l.b16 %v130
  %v170 = vunpack.c.l.b16 %v131
  %v171 = vunpack.c.l.b16 %v132
  %v172 = vunpack.c.l.b16 %v133
  %v173 = vunpack.c.l.b16 %v134
  %v174 = vunpack.c.l.b16 %v135
  %v175 = vunpack.c.l.b16 %v136
  %v176 = vunpack.c.l.b16 %v137
  %v177 = vunpack.c.l.b16 %v138
  %v178 = vunpack.c.l.b16 %v139
  %v179 = vunpack.c.l.b16 %v140
  %v180 = vunpack.c.l.b16 %v141
  %v181 = vunpack.c.l.b16 %v142
  %v182 = vunpack.c.l.b16 %v143
  %v183 = vpack.c.b16 %v168, %v167
  %v184 = vpack.c.b16 %v170, %v169
  %v185 = vpack.c.b16 %v172, %v171
  %v186 = vpack.c.b16 %v174, %v173
  %v187 = vpack.c.b16 %v176, %v175
  %v188 = vpack.c.b16 %v178, %v177
  %v189 = vpack.c.b16 %v180, %v179
  %v190 = vpack.c.b16 %v182, %v181
  %199 = vmatprep.subr.bf16.mxu0 0
  %200 = vmatpush1.bf16.msra.mxu0 %v190
  %201 = vmatprep.subr.bf16.mxu0 0
  %202 = vmatpush1.bf16.msra.mxu0 %v189
  %203 = vmatprep.subr.bf16.mxu0 0
  %204 = vmatpush1.bf16.msra.mxu0 %v188
  %205 = vmatprep.subr.bf16.mxu0 0
  %206 = vmatpush1.bf16.msra.mxu0 %v187
  %207 = vmatprep.subr.bf16.mxu0 0
  %208 = vmatpush1.bf16.msra.mxu0 %v186
  %209 = vmatprep.subr.bf16.mxu0 0
  %210 = vmatpush1.bf16.msra.mxu0 %v185
  %211 = vmatprep.subr.bf16.mxu0 0
  %212 = vmatpush1.bf16.msra.mxu0 %v184
  %213 = vmatprep.subr.bf16.mxu0 0
  %214 = vmatpush1.bf16.msra.mxu0 %v183
  %215 = vmatprep.subr.bf16.mxu0 0
  %216 = vmatpush2.bf16.msra.mxu0 0
  %217 = vmatprep.subr.bf16.mxu0 0
  %218 = vmatpush2.bf16.msra.mxu0 0
  %219 = vmatprep.subr.bf16.mxu0 0
  %220 = vmatpush2.bf16.msra.mxu0 0
  %221 = vmatprep.subr.bf16.mxu0 0
  %222 = vmatpush2.bf16.msra.mxu0 0
  %223 = vmatprep.subr.bf16.mxu0 0
  %224 = vmatpush2.bf16.msra.mxu0 0
  %225 = vmatprep.subr.bf16.mxu0 0
  %226 = vmatpush2.bf16.msra.mxu0 0
  %227 = vmatprep.subr.bf16.mxu0 0
  %228 = vmatpush2.bf16.msra.mxu0 0
  %229 = vmatprep.subr.bf16.mxu0 0
  %230 = vmatpush2.bf16.msra.mxu0 0
  %231 = vmatprep.mubr.bf16.mxu0 0
  %232 = vmatmul.mubr.bf16.gmra.mxu0 %v125
  %v233 = vpop.f32.mrf.mxu0
  %v234 = vadd.f32 %v149, %v233
  %v235 = vpop.f32.mrf.mxu0
  %v236 = vpop.f32.mrf.mxu0
  %v237 = vadd.f32 %v149, %v236
  %v238 = vpop.f32.mrf.mxu0
  %239 = vmatprep.mubr.bf16.mxu0 0
  %240 = vmatmul.mubr.bf16.gmra.mxu0 %v126
  %v241 = vpop.f32.mrf.mxu0
  %v242 = vadd.f32 %v149, %v241
  %v243 = vpop.f32.mrf.mxu0
  %v244 = vpop.f32.mrf.mxu0
  %v245 = vadd.f32 %v149, %v244
  %v246 = vpop.f32.mrf.mxu0
  %247 = vmatprep.mubr.bf16.mxu0 0
  %248 = vmatmul.mubr.bf16.gmra.mxu0 %v127
  %v249 = vpop.f32.mrf.mxu0
  %v250 = vadd.f32 %v149, %v249
  %v251 = vpop.f32.mrf.mxu0
  %v252 = vpop.f32.mrf.mxu0
  %v253 = vpop.f32.mrf.mxu0
  %254 = vdwg.mxu0
  %v255 = vmax.f32 %v234, 0.0
  %v256 = vmax.f32 %v237, 0.0
  %v257 = vmax.f32 %v242, 0.0
  %v258 = vmax.f32 %v245, 0.0
  %v259 = vmax.f32 %v250, 0.0
  %v260 = vpack.c.bf16 %v256, %v255
  %v261 = vpack.c.bf16 %v258, %v257
  %v262 = vpack.c.bf16 %v259, %v259
  %v266 = vunpack.c.l.b16 %v260
  %v267 = vunpack.c.h.b16 %v260
  %v268 = vunpack.c.l.b16 %v261
  %v269 = vunpack.c.h.b16 %v261
  %v270 = vunpack.c.l.b16 %v262
  %v271 = vpack.c.b16 %v266, %v266
  %v272 = vpack.c.b16 %v267, %v267
  %v273 = vpack.c.b16 %v268, %v268
  %v274 = vpack.c.b16 %v269, %v269
  %v275 = vpack.c.b16 %v270, %v270
  %vm281 = vcmask 257024
  %282 = vst.msk [vmem:[%s5] sm:$0xf] %vm281, %v271
  %283 = vst.msk [vmem:[%s5 + $0x4] sm:$0xf] %vm281, %v272
  %284 = vst.msk [vmem:[%s5 + $0x8] sm:$0xf] %vm281, %v273
  %285 = vst.msk [vmem:[%s5 + $0xc] sm:$0xf] %vm281, %v274
  %286 = vst.msk [vmem:[%s5 + $0x10] sm:$0xf] %vm281, %v275
  // Predicated region
  $region22: #{run.10} parent=0 // pred_check
    _
  $region23: #{run.10} parent=0 // pred_check_branch
    %288 = sbr.rel (0) target = $region25
  $region24: #{run.10} parent=0 // pred_region
    _
  $region25: #{run.10} parent=0 // pred_fallthru
    _
  // Predicated region
  $region26: #{run.10} parent=0 // pred_check
    _
  $region27: #{run.10} parent=0 // pred_check_branch
    %290 = sbr.rel (0) target = $region29
  $region28: #{run.10} parent=0 // pred_region
    _
  $region29: #{run.10} parent=0 // pred_fallthru
    _

// kernel: run.12
$region0: #{run.12}
  #allocation0 [shape = 'u32[]', space=smem, size = 0x4, offset = 0x4, fixed_abs, tag = 'smem constant byte address 0x4 - core index']
  #allocation1 [shape = 'u32[144,128]{1,0:T(1,128)}', space=vmem, size = 0x12000, scoped, tag = 'internal scratch']
  %s0 = inlined_call_operand.vmem [shape: bf16[40,32], index: 0, kind: input, shape index: {}]
  %s1 = inlined_call_operand.vmem [shape: bf16[40,32], index: 1, kind: input, shape index: {}]
  %s2 = inlined_call_operand.vmem [shape: bf16[40,32], index: 2, kind: input, shape index: {}]
  %s3 = inlined_call_operand.vmem [shape: bf16[40,32], index: 3, kind: input, shape index: {}]
  %s4 = inlined_call_operand.vmem [shape: bf16[32,32], index: 4, kind: input, shape index: {}]
  %s5 = inlined_call_operand.vmem [shape: f32[32,4], index: 5, kind: input, shape index: {}]
  %s6 = inlined_call_operand.vmem [shape: f32[40,4], index: 6, kind: output, shape index: {0}]
  %s7 = inlined_call_operand.vmem [shape: bf16[40,32], index: 7, kind: output, shape index: {1}]
  %8 = xla_tuple %s6, %s7
  %s9 = sld [smem:[#allocation0]]
  $region42: #{run.12} parent=0
    _
  %s11 = ssub.s32 1, %s9
  %s12 = scalar_select 0, %s11, %s9
  // Predicated region
  $region2: #{run.12} parent=0 // pred_check
    _
  $region3: #{run.12} parent=0 // pred_check_branch
    %14 = sbr.rel (0) target = $region5
  $region4: #{run.12} parent=0 // pred_region
    _
  $region5: #{run.12} parent=0 // pred_fallthru
    _
  // Predicated region
  $region6: #{run.12} parent=0 // pred_check
    _
  $region7: #{run.12} parent=0 // pred_check_branch
    %16 = sbr.rel (0) target = $region9
  $region8: #{run.12} parent=0 // pred_region
    _
  $region9: #{run.12} parent=0 // pred_fallthru
    _
  // Predicated region
  $region10: #{run.12} parent=0 // pred_check
    _
  $region11: #{run.12} parent=0 // pred_check_branch
    %18 = sbr.rel (0) target = $region13
  $region12: #{run.12} parent=0 // pred_region
    _
  $region13: #{run.12} parent=0 // pred_fallthru
    _
  // Predicated region
  $region14: #{run.12} parent=0 // pred_check
    _
  $region15: #{run.12} parent=0 // pred_check_branch
    %20 = sbr.rel (0) target = $region17
  $region16: #{run.12} parent=0 // pred_region
    _
  $region17: #{run.12} parent=0 // pred_fallthru
    _
  // Predicated region
  $region18: #{run.12} parent=0 // pred_check
    _
  $region19: #{run.12} parent=0 // pred_check_branch
    %22 = sbr.rel (0) target = $region21
  $region20: #{run.12} parent=0 // pred_region
    _
  $region21: #{run.12} parent=0 // pred_fallthru
    _
  // Predicated region
  $region22: #{run.12} parent=0 // pred_check
    _
  $region23: #{run.12} parent=0 // pred_check_branch
    %24 = sbr.rel (0) target = $region25
  $region24: #{run.12} parent=0 // pred_region
    _
  $region25: #{run.12} parent=0 // pred_fallthru
    _
  %v26 = vld [vmem:[%s3] sm:$0xf]
  %v27 = vld [vmem:[%s3 + $0x4] sm:$0xf]
  %v28 = vld [vmem:[%s3 + $0x8] sm:$0xf]
  %v29 = vld [vmem:[%s3 + $0xc] sm:$0xf]
  %v30 = vld [vmem:[%s3 + $0x10] sm:$0xf]
  %v31 = vld [vmem:[%s4] sm:$0xf]
  %v32 = vld [vmem:[%s4 + $0x4] sm:$0xf]
  %v33 = vld [vmem:[%s4 + $0x8] sm:$0xf]
  %v34 = vld [vmem:[%s4 + $0xc] sm:$0xf]
  %v40 = vunpack.c.l.b16 %v26
  %v41 = vunpack.c.l.b16 %v27
  %v42 = vunpack.c.l.b16 %v28
  %v43 = vunpack.c.l.b16 %v29
  %v44 = vunpack.c.l.b16 %v30
  %v45 = vpack.c.b16 %v41, %v40
  %v46 = vpack.c.b16 %v43, %v42
  %v47 = vpack.c.b16 %v44, %v44
  %v52 = vunpack.c.l.b16 %v31
  %v53 = vunpack.c.l.b16 %v32
  %v54 = vunpack.c.l.b16 %v33
  %v55 = vunpack.c.l.b16 %v34
  %v56 = vpack.c.b16 %v53, %v52
  %v57 = vpack.c.b16 %v55, %v54
  %vm60 = vcmask 261120
  %v62 = vsel %vm60, %v45, 0
  %v65 = vsel %vm60, %v46, 0
  %v68 = vsel %vm60, %v47, 0
  %70 = vmatprep.subr.bf16.mxu0 0
  %71 = vmatpush1.bf16.msra.mxu0 0
  %72 = vmatprep.subr.bf16.mxu0 0
  %73 = vmatpush1.bf16.msra.mxu0 0
  %74 = vmatprep.subr.bf16.mxu0 0
  %75 = vmatpush1.bf16.msra.mxu0 0
  %76 = vmatprep.subr.bf16.mxu0 0
  %77 = vmatpush1.bf16.msra.mxu0 0
  %78 = vmatprep.subr.bf16.mxu0 0
  %79 = vmatpush1.bf16.msra.mxu0 0
  %80 = vmatprep.subr.bf16.mxu0 0
  %81 = vmatpush1.bf16.msra.mxu0 0
  %82 = vmatprep.subr.bf16.mxu0 0
  %83 = vmatpush1.bf16.msra.mxu0 %v57
  %84 = vmatprep.subr.bf16.mxu0 0
  %85 = vmatpush1.bf16.msra.mxu0 %v56
  %86 = vmatprep.subr.bf16.mxu0 0
  %87 = vmatpush2.bf16.msra.mxu0 0
  %88 = vmatprep.subr.bf16.mxu0 0
  %89 = vmatpush2.bf16.msra.mxu0 0
  %90 = vmatprep.subr.bf16.mxu0 0
  %91 = vmatpush2.bf16.msra.mxu0 0
  %92 = vmatprep.subr.bf16.mxu0 0
  %93 = vmatpush2.bf16.msra.mxu0 0
  %94 = vmatprep.subr.bf16.mxu0 0
  %95 = vmatpush2.bf16.msra.mxu0 0
  %96 = vmatprep.subr.bf16.mxu0 0
  %97 = vmatpush2.bf16.msra.mxu0 0
  %98 = vmatprep.subr.bf16.mxu0 0
  %99 = vmatpush2.bf16.msra.mxu0 0
  %100 = vmatprep.subr.bf16.mxu0 0
  %101 = vmatpush2.bf16.msra.mxu0 0
  %102 = vmatprep.mubr.bf16.mxu0 0
  %103 = vmatmul.mubr.bf16.gmra.mxu0 %v62
  %v104 = vpop.f32.mrf.mxu0
  %v105 = vadd.f32 0.0, %v104
  %v106 = vpop.f32.mrf.mxu0
  %v107 = vpop.f32.mrf.mxu0
  %v108 = vadd.f32 0.0, %v107
  %v109 = vpop.f32.mrf.mxu0
  %110 = vmatprep.mubr.bf16.mxu0 0
  %111 = vmatmul.mubr.bf16.gmra.mxu0 %v65
  %v112 = vpop.f32.mrf.mxu0
  %v113 = vadd.f32 0.0, %v112
  %v114 = vpop.f32.mrf.mxu0
  %v115 = vpop.f32.mrf.mxu0
  %v116 = vadd.f32 0.0, %v115
  %v117 = vpop.f32.mrf.mxu0
  %118 = vmatprep.mubr.bf16.mxu0 0
  %119 = vmatmul.mubr.bf16.gmra.mxu0 %v68
  %v120 = vpop.f32.mrf.mxu0
  %v121 = vadd.f32 0.0, %v120
  %v122 = vpop.f32.mrf.mxu0
  %v123 = vpop.f32.mrf.mxu0
  %v124 = vpop.f32.mrf.mxu0
  %125 = vdwg.mxu0
  %v126 = vld [vmem:[%s0] sm:$0xf]
  %v127 = vld [vmem:[%s0 + $0x4] sm:$0xf]
  %v128 = vld [vmem:[%s0 + $0x8] sm:$0xf]
  %v129 = vld [vmem:[%s0 + $0xc] sm:$0xf]
  %v130 = vld [vmem:[%s0 + $0x10] sm:$0xf]
  %v131 = vunpack.c.l.bf16 %v126
  %v132 = vunpack.c.l.bf16 %v127
  %v133 = vunpack.c.l.bf16 %v128
  %v134 = vunpack.c.l.bf16 %v129
  %v135 = vunpack.c.l.bf16 %v130
  %v136 = vld [vmem:[%s1] sm:$0xf]
  %v137 = vld [vmem:[%s1 + $0x4] sm:$0xf]
  %v138 = vld [vmem:[%s1 + $0x8] sm:$0xf]
  %v139 = vld [vmem:[%s1 + $0xc] sm:$0xf]
  %v140 = vld [vmem:[%s1 + $0x10] sm:$0xf]
  %v141 = vunpack.c.l.bf16 %v136
  %v142 = vunpack.c.l.bf16 %v137
  %v143 = vunpack.c.l.bf16 %v138
  %v144 = vunpack.c.l.bf16 %v139
  %v145 = vunpack.c.l.bf16 %v140
  %v146 = vadd.f32 %v141, %v105
  %v147 = vadd.f32 %v142, %v108
  %v148 = vadd.f32 %v143, %v113
  %v149 = vadd.f32 %v144, %v116
  %v150 = vadd.f32 %v145, %v121
  %v151 = vmul.f32 %v131, %v146
  %v152 = vmul.f32 %v132, %v147
  %v153 = vmul.f32 %v133, %v148
  %v154 = vmul.f32 %v134, %v149
  %v155 = vmul.f32 %v135, %v150
  %v156 = vld [vmem:[%s5] sm:$0xff]
  %v157 = vld [vmem:[%s5 + $0x8] sm:$0xff]
  %v158 = vld [vmem:[%s5 + $0x10] sm:$0xff]
  %v159 = vld [vmem:[%s5 + $0x18] sm:$0xff]
  %v161 = vsel %vm60, %v151, 0
  %v164 = vsel %vm60, %v152, 0
  %v167 = vsel %vm60, %v153, 0
  %v170 = vsel %vm60, %v154, 0
  %v173 = vsel %vm60, %v155, 0
  %175 = vmatprep.subr.mxu0 0.0
  %176 = vmatpush1.msra.mxu0 0.0
  %177 = vmatprep.subr.mxu0 0.0
  %178 = vmatpush1.msra.mxu0 0.0
  %179 = vmatprep.subr.mxu0 0.0
  %180 = vmatpush1.msra.mxu0 0.0
  %181 = vmatprep.subr.mxu0 0.0
  %182 = vmatpush1.msra.mxu0 0.0
  %183 = vmatprep.subr.mxu0 0.0
  %184 = vmatpush1.msra.mxu0 0.0
  %185 = vmatprep.subr.mxu0 0.0
  %186 = vmatpush1.msra.mxu0 0.0
  %187 = vmatprep.subr.mxu0 0.0
  %188 = vmatpush1.msra.mxu0 0.0
  %189 = vmatprep.subr.mxu0 0.0
  %190 = vmatpush1.msra.mxu0 0.0
  %191 = vmatprep.subr.mxu0 0.0
  %192 = vmatpush1.msra.mxu0 0.0
  %193 = vmatprep.subr.mxu0 0.0
  %194 = vmatpush1.msra.mxu0 0.0
  %195 = vmatprep.subr.mxu0 0.0
  %196 = vmatpush1.msra.mxu0 0.0
  %197 = vmatprep.subr.mxu0 0.0
  %198 = vmatpush1.msra.mxu0 0.0
  %199 = vmatprep.subr.mxu0 0.0
  %200 = vmatpush1.msra.mxu0 %v159
  %201 = vmatprep.subr.mxu0 0.0
  %202 = vmatpush1.msra.mxu0 %v158
  %203 = vmatprep.subr.mxu0 0.0
  %204 = vmatpush1.msra.mxu0 %v157
  %205 = vmatprep.subr.mxu0 0.0
  %206 = vmatpush1.msra.mxu0 %v156
  %207 = vmatprep.subr.mxu0 0.0
  %208 = vmatpush2.msra.mxu0 0.0
  %209 = vmatprep.subr.mxu0 0.0
  %210 = vmatpush2.msra.mxu0 0.0
  %211 = vmatprep.subr.mxu0 0.0
  %212 = vmatpush2.msra.mxu0 0.0
  %213 = vmatprep.subr.mxu0 0.0
  %214 = vmatpush2.msra.mxu0 0.0
  %215 = vmatprep.subr.mxu0 0.0
  %216 = vmatpush2.msra.mxu0 0.0
  %217 = vmatprep.subr.mxu0 0.0
  %218 = vmatpush2.msra.mxu0 0.0
  %219 = vmatprep.subr.mxu0 0.0
  %220 = vmatpush2.msra.mxu0 0.0
  %221 = vmatprep.subr.mxu0 0.0
  %222 = vmatpush2.msra.mxu0 0.0
  %223 = vmatprep.subr.mxu0 0.0
  %224 = vmatpush2.msra.mxu0 0.0
  %225 = vmatprep.subr.mxu0 0.0
  %226 = vmatpush2.msra.mxu0 0.0
  %227 = vmatprep.subr.mxu0 0.0
  %228 = vmatpush2.msra.mxu0 0.0
  %229 = vmatprep.subr.mxu0 0.0
  %230 = vmatpush2.msra.mxu0 0.0
  %231 = vmatprep.subr.mxu0 0.0
  %232 = vmatpush2.msra.mxu0 0.0
  %233 = vmatprep.subr.mxu0 0.0
  %234 = vmatpush2.msra.mxu0 0.0
  %235 = vmatprep.subr.mxu0 0.0
  %236 = vmatpush2.msra.mxu0 0.0
  %237 = vmatprep.subr.mxu0 0.0
  %238 = vmatpush2.msra.mxu0 0.0
  %239 = vmatprep.mubr.f32.mxu0 0.0
  %240 = vmatmul.mubr.f32.gmra.mxu0 %v161
  %v241 = vpop.f32.mrf.mxu0
  %v242 = vadd.f32 0.0, %v241
  %v243 = vpop.f32.mrf.mxu0
  %244 = vmatprep.mubr.f32.mxu0 0.0
  %245 = vmatmul.mubr.f32.gmra.mxu0 %v164
  %v246 = vpop.f32.mrf.mxu0
  %v247 = vadd.f32 0.0, %v246
  %v248 = vpop.f32.mrf.mxu0
  %249 = vmatprep.mubr.f32.mxu0 0.0
  %250 = vmatmul.mubr.f32.gmra.mxu0 %v167
  %v251 = vpop.f32.mrf.mxu0
  %v252 = vadd.f32 0.0, %v251
  %v253 = vpop.f32.mrf.mxu0
  %254 = vmatprep.mubr.f32.mxu0 0.0
  %255 = vmatmul.mubr.f32.gmra.mxu0 %v170
  %v256 = vpop.f32.mrf.mxu0
  %v257 = vadd.f32 0.0, %v256
  %v258 = vpop.f32.mrf.mxu0
  %259 = vmatprep.mubr.f32.mxu0 0.0
  %260 = vmatmul.mubr.f32.gmra.mxu0 %v173
  %v261 = vpop.f32.mrf.mxu0
  %v262 = vadd.f32 0.0, %v261
  %v263 = vpop.f32.mrf.mxu0
  %264 = vdwg.mxu0
  %vm265 = vcmask 31744
  %266 = vst.msk [vmem:[%s6] sm:$0xff] %vm265, %v242
  %267 = vst.msk [vmem:[%s6 + $0x8] sm:$0xff] %vm265, %v247
  %268 = vst.msk [vmem:[%s6 + $0x10] sm:$0xff] %vm265, %v252
  %269 = vst.msk [vmem:[%s6 + $0x18] sm:$0xff] %vm265, %v257
  %270 = vst.msk [vmem:[%s6 + $0x20] sm:$0xff] %vm265, %v262
  %v271 = vld [vmem:[%s2] sm:$0xf]
  %v272 = vld [vmem:[%s2 + $0x4] sm:$0xf]
  %v273 = vld [vmem:[%s2 + $0x8] sm:$0xf]
  %v274 = vld [vmem:[%s2 + $0xc] sm:$0xf]
  %v275 = vld [vmem:[%s2 + $0x10] sm:$0xf]
  %v276 = vunpack.c.l.bf16 %v271
  %v277 = vunpack.c.l.bf16 %v272
  %v278 = vunpack.c.l.bf16 %v273
  %v279 = vunpack.c.l.bf16 %v274
  %v280 = vunpack.c.l.bf16 %v275
  %v281 = vadd.f32 %v276, %v105
  %v282 = vadd.f32 %v277, %v108
  %v283 = vadd.f32 %v278, %v113
  %v284 = vadd.f32 %v279, %v116
  %v285 = vadd.f32 %v280, %v121
  %v286 = vpack.c.bf16 %v282, %v281
  %v287 = vpack.c.bf16 %v284, %v283
  %v288 = vpack.c.bf16 %v285, %v285
  %v292 = vunpack.c.l.b16 %v286
  %v293 = vunpack.c.h.b16 %v286
  %v294 = vunpack.c.l.b16 %v287
  %v295 = vunpack.c.h.b16 %v287
  %v296 = vunpack.c.l.b16 %v288
  %v297 = vpack.c.b16 %v292, %v292
  %v298 = vpack.c.b16 %v293, %v293
  %v299 = vpack.c.b16 %v294, %v294
  %v300 = vpack.c.b16 %v295, %v295
  %v301 = vpack.c.b16 %v296, %v296
  %vm307 = vcmask 257024
  %308 = vst.msk [vmem:[%s7] sm:$0xf] %vm307, %v297
  %309 = vst.msk [vmem:[%s7 + $0x4] sm:$0xf] %vm307, %v298
  %310 = vst.msk [vmem:[%s7 + $0x8] sm:$0xf] %vm307, %v299
  %311 = vst.msk [vmem:[%s7 + $0xc] sm:$0xf] %vm307, %v300
  %312 = vst.msk [vmem:[%s7 + $0x10] sm:$0xf] %vm307, %v301
  // Predicated region
  $region26: #{run.12} parent=0 // pred_check
    _
  $region27: #{run.12} parent=0 // pred_check_branch
    %314 = sbr.rel (0) target = $region29
  $region28: #{run.12} parent=0 // pred_region
    _
  $region29: #{run.12} parent=0 // pred_fallthru
    _
  // Predicated region
  $region30: #{run.12} parent=0 // pred_check
    _
  $region31: #{run.12} parent=0 // pred_check_branch
    %316 = sbr.rel (0) target = $region33
  $region32: #{run.12} parent=0 // pred_region
    _
  $region33: #{run.12} parent=0 // pred_fallthru
    _
  // Predicated region
  $region34: #{run.12} parent=0 // pred_check
    _
  $region35: #{run.12} parent=0 // pred_check_branch
    %318 = sbr.rel (0) target = $region37
  $region36: #{run.12} parent=0 // pred_region
    _
  $region37: #{run.12} parent=0 // pred_fallthru
    _
  // Predicated region
  $region38: #{run.12} parent=0 // pred_check
    _
  $region39: #{run.12} parent=0 // pred_check_branch
    %320 = sbr.rel (0) target = $region41
  $region40: #{run.12} parent=0 // pred_region
    _
  $region41: #{run.12} parent=0 // pred_fallthru
    _

// kernel: run.14
$region0: #{run.14}
  #allocation0 [shape = 'u32[]', space=smem, size = 0x4, offset = 0x4, fixed_abs, tag = 'smem constant byte address 0x4 - core index']
  #allocation1 [shape = 'u32[144,128]{1,0:T(1,128)}', space=vmem, size = 0x12000, scoped, tag = 'internal scratch']
  %s0 = inlined_call_operand.vmem [shape: bf16[40,32], index: 0, kind: input, shape index: {}]
  %s1 = inlined_call_operand.vmem [shape: bf16[40,32], index: 1, kind: input, shape index: {}]
  %s2 = inlined_call_operand.vmem [shape: bf16[40,32], index: 2, kind: input, shape index: {}]
  %s3 = inlined_call_operand.vmem [shape: bf16[32,32], index: 3, kind: input, shape index: {}]
  %s4 = inlined_call_operand.vmem [shape: f32[1,32], index: 4, kind: input, shape index: {}]
  %s5 = inlined_call_operand.vmem [shape: bf16[32,32], index: 5, kind: input, shape index: {}]
  %s6 = inlined_call_operand.vmem [shape: f32[1,32], index: 6, kind: input, shape index: {}]
  %s7 = inlined_call_operand.vmem [shape: bf16[40,32], index: 7, kind: output, shape index: {}]
  %s8 = sld [smem:[#allocation0]]
  $region38: #{run.14} parent=0
    _
  %s10 = ssub.s32 1, %s8
  %s11 = scalar_select 0, %s10, %s8
  // Predicated region
  $region2: #{run.14} parent=0 // pred_check
    _
  $region3: #{run.14} parent=0 // pred_check_branch
    %13 = sbr.rel (0) target = $region5
  $region4: #{run.14} parent=0 // pred_region
    _
  $region5: #{run.14} parent=0 // pred_fallthru
    _
  // Predicated region
  $region6: #{run.14} parent=0 // pred_check
    _
  $region7: #{run.14} parent=0 // pred_check_branch
    %15 = sbr.rel (0) target = $region9
  $region8: #{run.14} parent=0 // pred_region
    _
  $region9: #{run.14} parent=0 // pred_fallthru
    _
  // Predicated region
  $region10: #{run.14} parent=0 // pred_check
    _
  $region11: #{run.14} parent=0 // pred_check_branch
    %17 = sbr.rel (0) target = $region13
  $region12: #{run.14} parent=0 // pred_region
    _
  $region13: #{run.14} parent=0 // pred_fallthru
    _
  // Predicated region
  $region14: #{run.14} parent=0 // pred_check
    _
  $region15: #{run.14} parent=0 // pred_check_branch
    %19 = sbr.rel (0) target = $region17
  $region16: #{run.14} parent=0 // pred_region
    _
  $region17: #{run.14} parent=0 // pred_fallthru
    _
  // Predicated region
  $region18: #{run.14} parent=0 // pred_check
    _
  $region19: #{run.14} parent=0 // pred_check_branch
    %21 = sbr.rel (0) target = $region21
  $region20: #{run.14} parent=0 // pred_region
    _
  $region21: #{run.14} parent=0 // pred_fallthru
    _
  // Predicated region
  $region22: #{run.14} parent=0 // pred_check
    _
  $region23: #{run.14} parent=0 // pred_check_branch
    %23 = sbr.rel (0) target = $region25
  $region24: #{run.14} parent=0 // pred_region
    _
  $region25: #{run.14} parent=0 // pred_fallthru
    _
  // Predicated region
  $region26: #{run.14} parent=0 // pred_check
    _
  $region27: #{run.14} parent=0 // pred_check_branch
    %25 = sbr.rel (0) target = $region29
  $region28: #{run.14} parent=0 // pred_region
    _
  $region29: #{run.14} parent=0 // pred_fallthru
    _
  %v27 = vld [vmem:[%s0] sm:$0xf]
  %v28 = vld [vmem:[%s0 + $0x4] sm:$0xf]
  %v29 = vld [vmem:[%s0 + $0x8] sm:$0xf]
  %v30 = vld [vmem:[%s0 + $0xc] sm:$0xf]
  %v31 = vld [vmem:[%s0 + $0x10] sm:$0xf]
  %v32 = vld [vmem:[%s3] sm:$0xf]
  %v33 = vld [vmem:[%s3 + $0x4] sm:$0xf]
  %v34 = vld [vmem:[%s3 + $0x8] sm:$0xf]
  %v35 = vld [vmem:[%s3 + $0xc] sm:$0xf]
  %v36 = vld [vmem:[%s1] sm:$0xf]
  %v37 = vld [vmem:[%s1 + $0x4] sm:$0xf]
  %v38 = vld [vmem:[%s1 + $0x8] sm:$0xf]
  %v39 = vld [vmem:[%s1 + $0xc] sm:$0xf]
  %v40 = vld [vmem:[%s1 + $0x10] sm:$0xf]
  %v41 = vunpack.c.l.bf16 %v36
  %v42 = vunpack.c.l.bf16 %v37
  %v43 = vunpack.c.l.bf16 %v38
  %v44 = vunpack.c.l.bf16 %v39
  %v45 = vunpack.c.l.bf16 %v40
  %v51 = vunpack.c.l.b16 %v27
  %v52 = vunpack.c.l.b16 %v28
  %v53 = vunpack.c.l.b16 %v29
  %v54 = vunpack.c.l.b16 %v30
  %v55 = vunpack.c.l.b16 %v31
  %v56 = vpack.c.b16 %v52, %v51
  %v57 = vpack.c.b16 %v54, %v53
  %v58 = vpack.c.b16 %v55, %v55
  %v63 = vunpack.c.l.b16 %v32
  %v64 = vunpack.c.l.b16 %v33
  %v65 = vunpack.c.l.b16 %v34
  %v66 = vunpack.c.l.b16 %v35
  %v67 = vpack.c.b16 %v64, %v63
  %v68 = vpack.c.b16 %v66, %v65
  %vm71 = vcmask 261120
  %v73 = vsel %vm71, %v56, 0
  %v76 = vsel %vm71, %v57, 0
  %v79 = vsel %vm71, %v58, 0
  %81 = vmatprep.subr.bf16.mxu0 0
  %82 = vmatpush1.bf16.msra.mxu0 0
  %83 = vmatprep.subr.bf16.mxu0 0
  %84 = vmatpush1.bf16.msra.mxu0 0
  %85 = vmatprep.subr.bf16.mxu0 0
  %86 = vmatpush1.bf16.msra.mxu0 0
  %87 = vmatprep.subr.bf16.mxu0 0
  %88 = vmatpush1.bf16.msra.mxu0 0
  %89 = vmatprep.subr.bf16.mxu0 0
  %90 = vmatpush1.bf16.msra.mxu0 0
  %91 = vmatprep.subr.bf16.mxu0 0
  %92 = vmatpush1.bf16.msra.mxu0 0
  %93 = vmatprep.subr.bf16.mxu0 0
  %94 = vmatpush1.bf16.msra.mxu0 %v68
  %95 = vmatprep.subr.bf16.mxu0 0
  %96 = vmatpush1.bf16.msra.mxu0 %v67
  %97 = vmatprep.subr.bf16.mxu0 0
  %98 = vmatpush2.bf16.msra.mxu0 0
  %99 = vmatprep.subr.bf16.mxu0 0
  %100 = vmatpush2.bf16.msra.mxu0 0
  %101 = vmatprep.subr.bf16.mxu0 0
  %102 = vmatpush2.bf16.msra.mxu0 0
  %103 = vmatprep.subr.bf16.mxu0 0
  %104 = vmatpush2.bf16.msra.mxu0 0
  %105 = vmatprep.subr.bf16.mxu0 0
  %106 = vmatpush2.bf16.msra.mxu0 0
  %107 = vmatprep.subr.bf16.mxu0 0
  %108 = vmatpush2.bf16.msra.mxu0 0
  %109 = vmatprep.subr.bf16.mxu0 0
  %110 = vmatpush2.bf16.msra.mxu0 0
  %111 = vmatprep.subr.bf16.mxu0 0
  %112 = vmatpush2.bf16.msra.mxu0 0
  %113 = vmatprep.mubr.bf16.mxu0 0
  %114 = vmatmul.mubr.bf16.gmra.mxu0 %v73
  %v115 = vpop.f32.mrf.mxu0
  %v116 = vadd.f32 %v41, %v115
  %v117 = vpop.f32.mrf.mxu0
  %v118 = vpop.f32.mrf.mxu0
  %v119 = vadd.f32 %v42, %v118
  %v120 = vpop.f32.mrf.mxu0
  %121 = vmatprep.mubr.bf16.mxu0 0
  %122 = vmatmul.mubr.bf16.gmra.mxu0 %v76
  %v123 = vpop.f32.mrf.mxu0
  %v124 = vadd.f32 %v43, %v123
  %v125 = vpop.f32.mrf.mxu0
  %v126 = vpop.f32.mrf.mxu0
  %v127 = vadd.f32 %v44, %v126
  %v128 = vpop.f32.mrf.mxu0
  %129 = vmatprep.mubr.bf16.mxu0 0
  %130 = vmatmul.mubr.bf16.gmra.mxu0 %v79
  %v131 = vpop.f32.mrf.mxu0
  %v132 = vadd.f32 %v45, %v131
  %v133 = vpop.f32.mrf.mxu0
  %v134 = vpop.f32.mrf.mxu0
  %v135 = vpop.f32.mrf.mxu0
  %136 = vdwg.mxu0
  %v137 = vld [vmem:[%s2] sm:$0xf]
  %v138 = vld [vmem:[%s2 + $0x4] sm:$0xf]
  %v139 = vld [vmem:[%s2 + $0x8] sm:$0xf]
  %v140 = vld [vmem:[%s2 + $0xc] sm:$0xf]
  %v141 = vld [vmem:[%s2 + $0x10] sm:$0xf]
  %v142 = vunpack.c.l.bf16 %v137
  %v143 = vunpack.c.l.bf16 %v138
  %v144 = vunpack.c.l.bf16 %v139
  %v145 = vunpack.c.l.bf16 %v140
  %v146 = vunpack.c.l.bf16 %v141
  %v147 = vadd.f32 %v116, %v142
  %v148 = vadd.f32 %v119, %v143
  %v149 = vadd.f32 %v124, %v144
  %v150 = vadd.f32 %v127, %v145
  %v151 = vadd.f32 %v132, %v146
  %v152 = vld [vmem:[%s4] sm:$0x1]
  %v154 = vlaneseq
  %v155 = vshrl.u32 %v154, 7
  %v156 = vsub.s32 0, %v155
  %v157 = vrot.slane %v152, %v156
  %v159 = vadd.f32 %v147, %v157
  %v160 = vadd.f32 %v148, %v157
  %v161 = vadd.f32 %v149, %v157
  %v162 = vadd.f32 %v150, %v157
  %v163 = vadd.f32 %v151, %v157
  %v164 = vmul.f32 %v159, %v159
  %v165 = vmul.f32 %v160, %v160
  %v166 = vmul.f32 %v161, %v161
  %v167 = vmul.f32 %v162, %v162
  %v168 = vmul.f32 %v163, %v163
  %v169 = vmul.f32 %v159, %v164
  %v170 = vmul.f32 %v160, %v165
  %v171 = vmul.f32 %v161, %v166
  %v172 = vmul.f32 %v162, %v167
  %v173 = vmul.f32 %v163, %v168
  %v174 = vmul.f32 %v169, 0.044715
  %v175 = vmul.f32 %v170, 0.044715
  %v176 = vmul.f32 %v171, 0.044715
  %v177 = vmul.f32 %v172, 0.044715
  %v178 = vmul.f32 %v173, 0.044715
  %v179 = vadd.f32 %v159, %v174
  %v180 = vadd.f32 %v160, %v175
  %v181 = vadd.f32 %v161, %v176
  %v182 = vadd.f32 %v162, %v177
  %v183 = vadd.f32 %v163, %v178
  %v184 = vmul.f32 %v179, 0.7978846
  %v185 = vmul.f32 %v180, 0.7978846
  %v186 = vmul.f32 %v181, 0.7978846
  %v187 = vmul.f32 %v182, 0.7978846
  %v188 = vmul.f32 %v183, 0.7978846
  %v189 = vtanh.pop %v184
  %v190 = vtanh.pop %v185
  %v191 = vtanh.pop %v186
  %v192 = vtanh.pop %v187
  %v193 = vtanh.pop %v188
  %v194 = vadd.f32 %v189, 1.0
  %v195 = vadd.f32 %v190, 1.0
  %v196 = vadd.f32 %v191, 1.0
  %v197 = vadd.f32 %v192, 1.0
  %v198 = vadd.f32 %v193, 1.0
  %v199 = vmul.f32 %v194, 0.5
  %v200 = vmul.f32 %v195, 0.5
  %v201 = vmul.f32 %v196, 0.5
  %v202 = vmul.f32 %v197, 0.5
  %v203 = vmul.f32 %v198, 0.5
  %v204 = vmul.f32 %v159, %v199
  %v205 = vmul.f32 %v160, %v200
  %v206 = vmul.f32 %v161, %v201
  %v207 = vmul.f32 %v162, %v202
  %v208 = vmul.f32 %v163, %v203
  %v209 = vpack.c.bf16 %v205, %v204
  %v210 = vpack.c.bf16 %v207, %v206
  %v211 = vpack.c.bf16 %v208, %v208
  %v212 = vld [vmem:[%s5] sm:$0xf]
  %v213 = vld [vmem:[%s5 + $0x4] sm:$0xf]
  %v214 = vld [vmem:[%s5 + $0x8] sm:$0xf]
  %v215 = vld [vmem:[%s5 + $0xc] sm:$0xf]
  %v216 = vld [vmem:[%s6] sm:$0x1]
  %v218 = vlaneseq
  %v219 = vshrl.u32 %v218, 7
  %v220 = vsub.s32 0, %v219
  %v221 = vrot.slane %v216, %v220
  %v227 = vunpack.c.l.b16 %v212
  %v228 = vunpack.c.l.b16 %v213
  %v229 = vunpack.c.l.b16 %v214
  %v230 = vunpack.c.l.b16 %v215
  %v231 = vpack.c.b16 %v228, %v227
  %v232 = vpack.c.b16 %v230, %v229
  %v236 = vsel %vm71, %v209, 0
  %v239 = vsel %vm71, %v210, 0
  %v242 = vsel %vm71, %v211, 0
  %244 = vmatprep.subr.bf16.mxu0 0
  %245 = vmatpush1.bf16.msra.mxu0 0
  %246 = vmatprep.subr.bf16.mxu0 0
  %247 = vmatpush1.bf16.msra.mxu0 0
  %248 = vmatprep.subr.bf16.mxu0 0
  %249 = vmatpush1.bf16.msra.mxu0 0
  %250 = vmatprep.subr.bf16.mxu0 0
  %251 = vmatpush1.bf16.msra.mxu0 0
  %252 = vmatprep.subr.bf16.mxu0 0
  %253 = vmatpush1.bf16.msra.mxu0 0
  %254 = vmatprep.subr.bf16.mxu0 0
  %255 = vmatpush1.bf16.msra.mxu0 0
  %256 = vmatprep.subr.bf16.mxu0 0
  %257 = vmatpush1.bf16.msra.mxu0 %v232
  %258 = vmatprep.subr.bf16.mxu0 0
  %259 = vmatpush1.bf16.msra.mxu0 %v231
  %260 = vmatprep.subr.bf16.mxu0 0
  %261 = vmatpush2.bf16.msra.mxu0 0
  %262 = vmatprep.subr.bf16.mxu0 0
  %263 = vmatpush2.bf16.msra.mxu0 0
  %264 = vmatprep.subr.bf16.mxu0 0
  %265 = vmatpush2.bf16.msra.mxu0 0
  %266 = vmatprep.subr.bf16.mxu0 0
  %267 = vmatpush2.bf16.msra.mxu0 0
  %268 = vmatprep.subr.bf16.mxu0 0
  %269 = vmatpush2.bf16.msra.mxu0 0
  %270 = vmatprep.subr.bf16.mxu0 0
  %271 = vmatpush2.bf16.msra.mxu0 0
  %272 = vmatprep.subr.bf16.mxu0 0
  %273 = vmatpush2.bf16.msra.mxu0 0
  %274 = vmatprep.subr.bf16.mxu0 0
  %275 = vmatpush2.bf16.msra.mxu0 0
  %276 = vmatprep.mubr.bf16.mxu0 0
  %277 = vmatmul.mubr.bf16.gmra.mxu0 %v236
  %v278 = vpop.f32.mrf.mxu0
  %v279 = vadd.f32 %v221, %v278
  %v280 = vpop.f32.mrf.mxu0
  %v281 = vpop.f32.mrf.mxu0
  %v282 = vadd.f32 %v221, %v281
  %v283 = vpop.f32.mrf.mxu0
  %284 = vmatprep.mubr.bf16.mxu0 0
  %285 = vmatmul.mubr.bf16.gmra.mxu0 %v239
  %v286 = vpop.f32.mrf.mxu0
  %v287 = vadd.f32 %v221, %v286
  %v288 = vpop.f32.mrf.mxu0
  %v289 = vpop.f32.mrf.mxu0
  %v290 = vadd.f32 %v221, %v289
  %v291 = vpop.f32.mrf.mxu0
  %292 = vmatprep.mubr.bf16.mxu0 0
  %293 = vmatmul.mubr.bf16.gmra.mxu0 %v242
  %v294 = vpop.f32.mrf.mxu0
  %v295 = vadd.f32 %v221, %v294
  %v296 = vpop.f32.mrf.mxu0
  %v297 = vpop.f32.mrf.mxu0
  %v298 = vpop.f32.mrf.mxu0
  %299 = vdwg.mxu0
  %v300 = vmul.f32 %v279, %v279
  %v301 = vmul.f32 %v282, %v282
  %v302 = vmul.f32 %v287, %v287
  %v303 = vmul.f32 %v290, %v290
  %v304 = vmul.f32 %v295, %v295
  %v305 = vmul.f32 %v279, %v300
  %v306 = vmul.f32 %v282, %v301
  %v307 = vmul.f32 %v287, %v302
  %v308 = vmul.f32 %v290, %v303
  %v309 = vmul.f32 %v295, %v304
  %v310 = vmul.f32 %v305, 0.044715
  %v311 = vmul.f32 %v306, 0.044715
  %v312 = vmul.f32 %v307, 0.044715
  %v313 = vmul.f32 %v308, 0.044715
  %v314 = vmul.f32 %v309, 0.044715
  %v315 = vadd.f32 %v279, %v310
  %v316 = vadd.f32 %v282, %v311
  %v317 = vadd.f32 %v287, %v312
  %v318 = vadd.f32 %v290, %v313
  %v319 = vadd.f32 %v295, %v314
  %v320 = vmul.f32 %v315, 0.7978846
  %v321 = vmul.f32 %v316, 0.7978846
  %v322 = vmul.f32 %v317, 0.7978846
  %v323 = vmul.f32 %v318, 0.7978846
  %v324 = vmul.f32 %v319, 0.7978846
  %v325 = vtanh.pop %v320
  %v326 = vtanh.pop %v321
  %v327 = vtanh.pop %v322
  %v328 = vtanh.pop %v323
  %v329 = vtanh.pop %v324
  %v330 = vadd.f32 %v325, 1.0
  %v331 = vadd.f32 %v326, 1.0
  %v332 = vadd.f32 %v327, 1.0
  %v333 = vadd.f32 %v328, 1.0
  %v334 = vadd.f32 %v329, 1.0
  %v335 = vmul.f32 %v330, 0.5
  %v336 = vmul.f32 %v331, 0.5
  %v337 = vmul.f32 %v332, 0.5
  %v338 = vmul.f32 %v333, 0.5
  %v339 = vmul.f32 %v334, 0.5
  %v340 = vmul.f32 %v279, %v335
  %v341 = vmul.f32 %v282, %v336
  %v342 = vmul.f32 %v287, %v337
  %v343 = vmul.f32 %v290, %v338
  %v344 = vmul.f32 %v295, %v339
  %v345 = vpack.c.bf16 %v341, %v340
  %v346 = vpack.c.bf16 %v343, %v342
  %v347 = vpack.c.bf16 %v344, %v344
  %v351 = vunpack.c.l.b16 %v345
  %v352 = vunpack.c.h.b16 %v345
  %v353 = vunpack.c.l.b16 %v346
  %v354 = vunpack.c.h.b16 %v346
  %v355 = vunpack.c.l.b16 %v347
  %v356 = vpack.c.b16 %v351, %v351
  %v357 = vpack.c.b16 %v352, %v352
  %v358 = vpack.c.b16 %v353, %v353
  %v359 = vpack.c.b16 %v354, %v354
  %v360 = vpack.c.b16 %v355, %v355
  %vm366 = vcmask 257024
  %367 = vst.msk [vmem:[%s7] sm:$0xf] %vm366, %v356
  %368 = vst.msk [vmem:[%s7 + $0x4] sm:$0xf] %vm366, %v357
  %369 = vst.msk [vmem:[%s7 + $0x8] sm:$0xf] %vm366, %v358
  %370 = vst.msk [vmem:[%s7 + $0xc] sm:$0xf] %vm366, %v359
  %371 = vst.msk [vmem:[%s7 + $0x10] sm:$0xf] %vm366, %v360
  // Predicated region
  $region30: #{run.14} parent=0 // pred_check
    _
  $region31: #{run.14} parent=0 // pred_check_branch
    %373 = sbr.rel (0) target = $region33
  $region32: #{run.14} parent=0 // pred_region
    _
  $region33: #{run.14} parent=0 // pred_fallthru
    _
  // Predicated region
  $region34: #{run.14} parent=0 // pred_check
    _
  $region35: #{run.14} parent=0 // pred_check_branch
    %375 = sbr.rel (0) target = $region37
  $region36: #{run.14} parent=0 // pred_region
    _
  $region37: #{run.14} parent=0 // pred_fallthru
    _

// kernel: run.13
$region0: #{run.13}
  #allocation0 [shape = 'u32[]', space=smem, size = 0x4, offset = 0x4, fixed_abs, tag = 'smem constant byte address 0x4 - core index']
  #allocation1 [shape = 'u32[144,128]{1,0:T(1,128)}', space=vmem, size = 0x12000, scoped, tag = 'internal scratch']
  %s0 = inlined_call_operand.vmem [shape: bf16[20,32], index: 0, kind: input, shape index: {}]
  %s1 = inlined_call_operand.vmem [shape: bf16[32,64], index: 1, kind: input, shape index: {}]
  %s2 = inlined_call_operand.vmem [shape: f32[1,64], index: 2, kind: input, shape index: {}]
  %s3 = inlined_call_operand.vmem [shape: bf16[64,32], index: 3, kind: input, shape index: {}]
  %s4 = inlined_call_operand.vmem [shape: f32[1,32], index: 4, kind: input, shape index: {}]
  %s5 = inlined_call_operand.vmem [shape: bf16[32,32], index: 5, kind: input, shape index: {}]
  %s6 = inlined_call_operand.vmem [shape: bf16[32,32], index: 6, kind: input, shape index: {}]
  %s7 = inlined_call_operand.vmem [shape: bf16[20,32], index: 7, kind: output, shape index: {0}]
  %s8 = inlined_call_operand.vmem [shape: bf16[20,32], index: 8, kind: output, shape index: {1}]
  %s9 = inlined_call_operand.vmem [shape: bf16[20,32], index: 9, kind: output, shape index: {2}]
  %10 = xla_tuple %s7, %s8, %s9
  %s11 = sld [smem:[#allocation0]]
  $region54: #{run.13} parent=0
    _
  %s13 = ssub.s32 1, %s11
  %s14 = scalar_select 0, %s13, %s11
  // Predicated region
  $region2: #{run.13} parent=0 // pred_check
    _
  $region3: #{run.13} parent=0 // pred_check_branch
    %16 = sbr.rel (0) target = $region5
  $region4: #{run.13} parent=0 // pred_region
    _
  $region5: #{run.13} parent=0 // pred_fallthru
    _
  // Predicated region
  $region6: #{run.13} parent=0 // pred_check
    _
  $region7: #{run.13} parent=0 // pred_check_branch
    %18 = sbr.rel (0) target = $region9
  $region8: #{run.13} parent=0 // pred_region
    _
  $region9: #{run.13} parent=0 // pred_fallthru
    _
  // Predicated region
  $region10: #{run.13} parent=0 // pred_check
    _
  $region11: #{run.13} parent=0 // pred_check_branch
    %20 = sbr.rel (0) target = $region13
  $region12: #{run.13} parent=0 // pred_region
    _
  $region13: #{run.13} parent=0 // pred_fallthru
    _
  // Predicated region
  $region14: #{run.13} parent=0 // pred_check
    _
  $region15: #{run.13} parent=0 // pred_check_branch
    %22 = sbr.rel (0) target = $region17
  $region16: #{run.13} parent=0 // pred_region
    _
  $region17: #{run.13} parent=0 // pred_fallthru
    _
  // Predicated region
  $region18: #{run.13} parent=0 // pred_check
    _
  $region19: #{run.13} parent=0 // pred_check_branch
    %24 = sbr.rel (0) target = $region21
  $region20: #{run.13} parent=0 // pred_region
    _
  $region21: #{run.13} parent=0 // pred_fallthru
    _
  // Predicated region
  $region22: #{run.13} parent=0 // pred_check
    _
  $region23: #{run.13} parent=0 // pred_check_branch
    %26 = sbr.rel (0) target = $region25
  $region24: #{run.13} parent=0 // pred_region
    _
  $region25: #{run.13} parent=0 // pred_fallthru
    _
  // Predicated region
  $region26: #{run.13} parent=0 // pred_check
    _
  $region27: #{run.13} parent=0 // pred_check_branch
    %28 = sbr.rel (0) target = $region29
  $region28: #{run.13} parent=0 // pred_region
    _
  $region29: #{run.13} parent=0 // pred_fallthru
    _
  %v30 = vld [vmem:[%s0] sm:$0xf]
  %v31 = vld [vmem:[%s0 + $0x4] sm:$0xf]
  %v32 = vld [vmem:[%s0 + $0x8] sm:$0x3]
  %v33 = vld [vmem:[%s1] sm:$0xf]
  %v34 = vld [vmem:[%s1 + $0x4] sm:$0xf]
  %v35 = vld [vmem:[%s1 + $0x8] sm:$0xf]
  %v36 = vld [vmem:[%s1 + $0xc] sm:$0xf]
  %v37 = vld [vmem:[%s2] sm:$0x1]
  %v39 = vlaneseq
  %v40 = vshrl.u32 %v39, 7
  %v41 = vsub.s32 0, %v40
  %v42 = vrot.slane %v37, %v41
  %v47 = vunpack.c.l.b16 %v30
  %v48 = vunpack.c.l.b16 %v31
  %v49 = vunpack.c.l.b16 %v32
  %v50 = vpack.c.b16 %v48, %v47
  %v51 = vpack.c.b16 %v49, %v49
  %v56 = vunpack.c.l.b16 %v33
  %v57 = vunpack.c.l.b16 %v34
  %v58 = vunpack.c.l.b16 %v35
  %v59 = vunpack.c.l.b16 %v36
  %v60 = vpack.c.b16 %v57, %v56
  %v61 = vpack.c.b16 %v59, %v58
  %vm64 = vcmask 261120
  %v66 = vsel %vm64, %v50, 0
  %v69 = vsel %vm64, %v51, 0
  %71 = vmatprep.subr.bf16.mxu0 0
  %72 = vmatpush1.bf16.msra.mxu0 0
  %73 = vmatprep.subr.bf16.mxu0 0
  %74 = vmatpush1.bf16.msra.mxu0 0
  %75 = vmatprep.subr.bf16.mxu0 0
  %76 = vmatpush1.bf16.msra.mxu0 0
  %77 = vmatprep.subr.bf16.mxu0 0
  %78 = vmatpush1.bf16.msra.mxu0 0
  %79 = vmatprep.subr.bf16.mxu0 0
  %80 = vmatpush1.bf16.msra.mxu0 0
  %81 = vmatprep.subr.bf16.mxu0 0
  %82 = vmatpush1.bf16.msra.mxu0 0
  %83 = vmatprep.subr.bf16.mxu0 0
  %84 = vmatpush1.bf16.msra.mxu0 %v61
  %85 = vmatprep.subr.bf16.mxu0 0
  %86 = vmatpush1.bf16.msra.mxu0 %v60
  %87 = vmatprep.subr.bf16.mxu0 0
  %88 = vmatpush2.bf16.msra.mxu0 0
  %89 = vmatprep.subr.bf16.mxu0 0
  %90 = vmatpush2.bf16.msra.mxu0 0
  %91 = vmatprep.subr.bf16.mxu0 0
  %92 = vmatpush2.bf16.msra.mxu0 0
  %93 = vmatprep.subr.bf16.mxu0 0
  %94 = vmatpush2.bf16.msra.mxu0 0
  %95 = vmatprep.subr.bf16.mxu0 0
  %96 = vmatpush2.bf16.msra.mxu0 0
  %97 = vmatprep.subr.bf16.mxu0 0
  %98 = vmatpush2.bf16.msra.mxu0 0
  %99 = vmatprep.subr.bf16.mxu0 0
  %100 = vmatpush2.bf16.msra.mxu0 0
  %101 = vmatprep.subr.bf16.mxu0 0
  %102 = vmatpush2.bf16.msra.mxu0 0
  %103 = vmatprep.mubr.bf16.mxu0 0
  %104 = vmatmul.mubr.bf16.gmra.mxu0 %v66
  %v105 = vpop.f32.mrf.mxu0
  %v106 = vadd.f32 %v42, %v105
  %v107 = vpop.f32.mrf.mxu0
  %v108 = vpop.f32.mrf.mxu0
  %v109 = vadd.f32 %v42, %v108
  %v110 = vpop.f32.mrf.mxu0
  %111 = vmatprep.mubr.bf16.mxu0 0
  %112 = vmatmul.mubr.bf16.gmra.mxu0 %v69
  %v113 = vpop.f32.mrf.mxu0
  %v114 = vadd.f32 %v42, %v113
  %v115 = vpop.f32.mrf.mxu0
  %v116 = vpop.f32.mrf.mxu0
  %v117 = vpop.f32.mrf.mxu0
  %118 = vdwg.mxu0
  %v119 = vmul.f32 %v106, %v106
  %v120 = vmul.f32 %v109, %v109
  %v121 = vmul.f32 %v114, %v114
  %v122 = vmul.f32 %v106, %v119
  %v123 = vmul.f32 %v109, %v120
  %v124 = vmul.f32 %v114, %v121
  %v125 = vmul.f32 %v122, 0.044715
  %v126 = vmul.f32 %v123, 0.044715
  %v127 = vmul.f32 %v124, 0.044715
  %v128 = vadd.f32 %v106, %v125
  %v129 = vadd.f32 %v109, %v126
  %v130 = vadd.f32 %v114, %v127
  %v131 = vmul.f32 %v128, 0.7978846
  %v132 = vmul.f32 %v129, 0.7978846
  %v133 = vmul.f32 %v130, 0.7978846
  %v134 = vtanh.pop %v131
  %v135 = vtanh.pop %v132
  %v136 = vtanh.pop %v133
  %v137 = vadd.f32 %v134, 1.0
  %v138 = vadd.f32 %v135, 1.0
  %v139 = vadd.f32 %v136, 1.0
  %v140 = vmul.f32 %v137, 0.5
  %v141 = vmul.f32 %v138, 0.5
  %v142 = vmul.f32 %v139, 0.5
  %v143 = vmul.f32 %v106, %v140
  %v144 = vmul.f32 %v109, %v141
  %v145 = vmul.f32 %v114, %v142
  %v146 = vpack.c.bf16 %v144, %v143
  %v147 = vpack.c.bf16 %v145, %v145
  %v148 = vld [vmem:[%s3] sm:$0xf]
  %v149 = vld [vmem:[%s3 + $0x4] sm:$0xf]
  %v150 = vld [vmem:[%s3 + $0x8] sm:$0xf]
  %v151 = vld [vmem:[%s3 + $0xc] sm:$0xf]
  %v152 = vld [vmem:[%s3 + $0x10] sm:$0xf]
  %v153 = vld [vmem:[%s3 + $0x14] sm:$0xf]
  %v154 = vld [vmem:[%s3 + $0x18] sm:$0xf]
  %v155 = vld [vmem:[%s3 + $0x1c] sm:$0xf]
  %v156 = vld [vmem:[%s4] sm:$0x1]
  %v158 = vlaneseq
  %v159 = vshrl.u32 %v158, 7
  %v160 = vsub.s32 0, %v159
  %v161 = vrot.slane %v156, %v160
  %v171 = vunpack.c.l.b16 %v148
  %v172 = vunpack.c.l.b16 %v149
  %v173 = vunpack.c.l.b16 %v150
  %v174 = vunpack.c.l.b16 %v151
  %v175 = vunpack.c.l.b16 %v152
  %v176 = vunpack.c.l.b16 %v153
  %v177 = vunpack.c.l.b16 %v154
  %v178 = vunpack.c.l.b16 %v155
  %v179 = vpack.c.b16 %v172, %v171
  %v180 = vpack.c.b16 %v174, %v173
  %v181 = vpack.c.b16 %v176, %v175
  %v182 = vpack.c.b16 %v178, %v177
  %vm187 = vcmask 523264
  %v189 = vsel %vm187, %v146, 0
  %v192 = vsel %vm187, %v147, 0
  %194 = vmatprep.subr.bf16.mxu0 0
  %195 = vmatpush1.bf16.msra.mxu0 0
  %196 = vmatprep.subr.bf16.mxu0 0
  %197 = vmatpush1.bf16.msra.mxu0 0
  %198 = vmatprep.subr.bf16.mxu0 0
  %199 = vmatpush1.bf16.msra.mxu0 0
  %200 = vmatprep.subr.bf16.mxu0 0
  %201 = vmatpush1.bf16.msra.mxu0 0
  %202 = vmatprep.subr.bf16.mxu0 0
  %203 = vmatpush1.bf16.msra.mxu0 %v182
  %204 = vmatprep.subr.bf16.mxu0 0
  %205 = vmatpush1.bf16.msra.mxu0 %v181
  %206 = vmatprep.subr.bf16.mxu0 0
  %207 = vmatpush1.bf16.msra.mxu0 %v180
  %208 = vmatprep.subr.bf16.mxu0 0
  %209 = vmatpush1.bf16.msra.mxu0 %v179
  %210 = vmatprep.subr.bf16.mxu0 0
  %211 = vmatpush2.bf16.msra.mxu0 0
  %212 = vmatprep.subr.bf16.mxu0 0
  %213 = vmatpush2.bf16.msra.mxu0 0
  %214 = vmatprep.subr.bf16.mxu0 0
  %215 = vmatpush2.bf16.msra.mxu0 0
  %216 = vmatprep.subr.bf16.mxu0 0
  %217 = vmatpush2.bf16.msra.mxu0 0
  %218 = vmatprep.subr.bf16.mxu0 0
  %219 = vmatpush2.bf16.msra.mxu0 0
  %220 = vmatprep.subr.bf16.mxu0 0
  %221 = vmatpush2.bf16.msra.mxu0 0
  %222 = vmatprep.subr.bf16.mxu0 0
  %223 = vmatpush2.bf16.msra.mxu0 0
  %224 = vmatprep.subr.bf16.mxu0 0
  %225 = vmatpush2.bf16.msra.mxu0 0
  %226 = vmatprep.mubr.bf16.mxu0 0
  %227 = vmatmul.mubr.bf16.gmra.mxu0 %v189
  %v228 = vpop.f32.mrf.mxu0
  %v229 = vadd.f32 %v161, %v228
  %v230 = vpop.f32.mrf.mxu0
  %v231 = vpop.f32.mrf.mxu0
  %v232 = vadd.f32 %v161, %v231
  %v233 = vpop.f32.mrf.mxu0
  %234 = vmatprep.mubr.bf16.mxu0 0
  %235 = vmatmul.mubr.bf16.gmra.mxu0 %v192
  %v236 = vpop.f32.mrf.mxu0
  %v237 = vadd.f32 %v161, %v236
  %v238 = vpop.f32.mrf.mxu0
  %v239 = vpop.f32.mrf.mxu0
  %v240 = vpop.f32.mrf.mxu0
  %241 = vdwg.mxu0
  %v242 = vunpack.c.l.bf16 %v30
  %v243 = vunpack.c.l.bf16 %v31
  %v244 = vunpack.c.l.bf16 %v32
  %v245 = vmul.f32 %v242, 0.999995
  %v246 = vmul.f32 %v243, 0.999995
  %v247 = vmul.f32 %v244, 0.999995
  %v248 = vadd.f32 %v229, %v245
  %v249 = vadd.f32 %v232, %v246
  %v250 = vadd.f32 %v237, %v247
  %v251 = vmul.f32 %v248, %v248
  %v252 = vmul.f32 %v249, %v249
  %v253 = vmul.f32 %v250, %v250
  %v254 = vmul.f32 %v248, %v251
  %v255 = vmul.f32 %v249, %v252
  %v256 = vmul.f32 %v250, %v253
  %v257 = vmul.f32 %v254, 0.044715
  %v258 = vmul.f32 %v255, 0.044715
  %v259 = vmul.f32 %v256, 0.044715
  %v260 = vadd.f32 %v248, %v257
  %v261 = vadd.f32 %v249, %v258
  %v262 = vadd.f32 %v250, %v259
  %v263 = vmul.f32 %v260, 0.7978846
  %v264 = vmul.f32 %v261, 0.7978846
  %v265 = vmul.f32 %v262, 0.7978846
  %v266 = vtanh.pop %v263
  %v267 = vtanh.pop %v264
  %v268 = vtanh.pop %v265
  %v269 = vadd.f32 %v266, 1.0
  %v270 = vadd.f32 %v267, 1.0
  %v271 = vadd.f32 %v268, 1.0
  %v272 = vmul.f32 %v269, 0.5
  %v273 = vmul.f32 %v270, 0.5
  %v274 = vmul.f32 %v271, 0.5
  %v275 = vmul.f32 %v248, %v272
  %v276 = vmul.f32 %v249, %v273
  %v277 = vmul.f32 %v250, %v274
  %v278 = vpack.c.bf16 %v276, %v275
  %v279 = vpack.c.bf16 %v277, %v277
  %v282 = vunpack.c.l.b16 %v278
  %v283 = vunpack.c.h.b16 %v278
  %v284 = vunpack.c.l.b16 %v279
  %v285 = vpack.c.b16 %v282, %v282
  %v286 = vpack.c.b16 %v283, %v283
  %v287 = vpack.c.b16 %v284, %v284
  %vm291 = vcmask 257024
  %292 = vst.msk [vmem:[%s7] sm:$0xf] %vm291, %v285
  %293 = vst.msk [vmem:[%s7 + $0x4] sm:$0xf] %vm291, %v286
  %vm294 = vcmask 254976
  %295 = vst.msk [vmem:[%s7 + $0x8] sm:$0x3] %vm294, %v287
  %v296 = vpack.c.bf16 %v249, %v248
  %v297 = vpack.c.bf16 %v250, %v250
  %v298 = vld [vmem:[%s5] sm:$0xf]
  %v299 = vld [vmem:[%s5 + $0x4] sm:$0xf]
  %v300 = vld [vmem:[%s5 + $0x8] sm:$0xf]
  %v301 = vld [vmem:[%s5 + $0xc] sm:$0xf]
  %v306 = vunpack.c.l.b16 %v298
  %v307 = vunpack.c.l.b16 %v299
  %v308 = vunpack.c.l.b16 %v300
  %v309 = vunpack.c.l.b16 %v301
  %v310 = vpack.c.b16 %v307, %v306
  %v311 = vpack.c.b16 %v309, %v308
  %v315 = vsel %vm64, %v296, 0
  %v318 = vsel %vm64, %v297, 0
  %320 = vmatprep.subr.bf16.mxu0 0
  %321 = vmatpush1.bf16.msra.mxu0 0
  %322 = vmatprep.subr.bf16.mxu0 0
  %323 = vmatpush1.bf16.msra.mxu0 0
  %324 = vmatprep.subr.bf16.mxu0 0
  %325 = vmatpush1.bf16.msra.mxu0 0
  %326 = vmatprep.subr.bf16.mxu0 0
  %327 = vmatpush1.bf16.msra.mxu0 0
  %328 = vmatprep.subr.bf16.mxu0 0
  %329 = vmatpush1.bf16.msra.mxu0 0
  %330 = vmatprep.subr.bf16.mxu0 0
  %331 = vmatpush1.bf16.msra.mxu0 0
  %332 = vmatprep.subr.bf16.mxu0 0
  %333 = vmatpush1.bf16.msra.mxu0 %v311
  %334 = vmatprep.subr.bf16.mxu0 0
  %335 = vmatpush1.bf16.msra.mxu0 %v310
  %336 = vmatprep.subr.bf16.mxu0 0
  %337 = vmatpush2.bf16.msra.mxu0 0
  %338 = vmatprep.subr.bf16.mxu0 0
  %339 = vmatpush2.bf16.msra.mxu0 0
  %340 = vmatprep.subr.bf16.mxu0 0
  %341 = vmatpush2.bf16.msra.mxu0 0
  %342 = vmatprep.subr.bf16.mxu0 0
  %343 = vmatpush2.bf16.msra.mxu0 0
  %344 = vmatprep.subr.bf16.mxu0 0
  %345 = vmatpush2.bf16.msra.mxu0 0
  %346 = vmatprep.subr.bf16.mxu0 0
  %347 = vmatpush2.bf16.msra.mxu0 0
  %348 = vmatprep.subr.bf16.mxu0 0
  %349 = vmatpush2.bf16.msra.mxu0 0
  %350 = vmatprep.subr.bf16.mxu0 0
  %351 = vmatpush2.bf16.msra.mxu0 0
  %352 = vmatprep.mubr.bf16.mxu0 0
  %353 = vmatmul.mubr.bf16.gmra.mxu0 %v315
  %v354 = vpop.f32.mrf.mxu0
  %v355 = vadd.f32 0.0, %v354
  %v356 = vpop.f32.mrf.mxu0
  %v357 = vpop.f32.mrf.mxu0
  %v358 = vadd.f32 0.0, %v357
  %v359 = vpop.f32.mrf.mxu0
  %360 = vmatprep.mubr.bf16.mxu0 0
  %361 = vmatmul.mubr.bf16.gmra.mxu0 %v318
  %v362 = vpop.f32.mrf.mxu0
  %v363 = vadd.f32 0.0, %v362
  %v364 = vpop.f32.mrf.mxu0
  %v365 = vpop.f32.mrf.mxu0
  %v366 = vpop.f32.mrf.mxu0
  %367 = vdwg.mxu0
  %v368 = vpack.c.bf16 %v358, %v355
  %v369 = vpack.c.bf16 %v363, %v363
  %v372 = vunpack.c.l.b16 %v368
  %v373 = vunpack.c.h.b16 %v368
  %v374 = vunpack.c.l.b16 %v369
  %v375 = vpack.c.b16 %v372, %v372
  %v376 = vpack.c.b16 %v373, %v373
  %v377 = vpack.c.b16 %v374, %v374
  %381 = vst.msk [vmem:[%s8] sm:$0xf] %vm291, %v375
  %382 = vst.msk [vmem:[%s8 + $0x4] sm:$0xf] %vm291, %v376
  %383 = vst.msk [vmem:[%s8 + $0x8] sm:$0x3] %vm294, %v377
  %v384 = vld [vmem:[%s6] sm:$0xf]
  %v385 = vld [vmem:[%s6 + $0x4] sm:$0xf]
  %v386 = vld [vmem:[%s6 + $0x8] sm:$0xf]
  %v387 = vld [vmem:[%s6 + $0xc] sm:$0xf]
  %v392 = vunpack.c.l.b16 %v384
  %v393 = vunpack.c.l.b16 %v385
  %v394 = vunpack.c.l.b16 %v386
  %v395 = vunpack.c.l.b16 %v387
  %v396 = vpack.c.b16 %v393, %v392
  %v397 = vpack.c.b16 %v395, %v394
  %400 = vmatprep.subr.bf16.mxu0 0
  %401 = vmatpush1.bf16.msra.mxu0 0
  %402 = vmatprep.subr.bf16.mxu0 0
  %403 = vmatpush1.bf16.msra.mxu0 0
  %404 = vmatprep.subr.bf16.mxu0 0
  %405 = vmatpush1.bf16.msra.mxu0 0
  %406 = vmatprep.subr.bf16.mxu0 0
  %407 = vmatpush1.bf16.msra.mxu0 0
  %408 = vmatprep.subr.bf16.mxu0 0
  %409 = vmatpush1.bf16.msra.mxu0 0
  %410 = vmatprep.subr.bf16.mxu0 0
  %411 = vmatpush1.bf16.msra.mxu0 0
  %412 = vmatprep.subr.bf16.mxu0 0
  %413 = vmatpush1.bf16.msra.mxu0 %v397
  %414 = vmatprep.subr.bf16.mxu0 0
  %415 = vmatpush1.bf16.msra.mxu0 %v396
  %416 = vmatprep.subr.bf16.mxu0 0
  %417 = vmatpush2.bf16.msra.mxu0 0
  %418 = vmatprep.subr.bf16.mxu0 0
  %419 = vmatpush2.bf16.msra.mxu0 0
  %420 = vmatprep.subr.bf16.mxu0 0
  %421 = vmatpush2.bf16.msra.mxu0 0
  %422 = vmatprep.subr.bf16.mxu0 0
  %423 = vmatpush2.bf16.msra.mxu0 0
  %424 = vmatprep.subr.bf16.mxu0 0
  %425 = vmatpush2.bf16.msra.mxu0 0
  %426 = vmatprep.subr.bf16.mxu0 0
  %427 = vmatpush2.bf16.msra.mxu0 0
  %428 = vmatprep.subr.bf16.mxu0 0
  %429 = vmatpush2.bf16.msra.mxu0 0
  %430 = vmatprep.subr.bf16.mxu0 0
  %431 = vmatpush2.bf16.msra.mxu0 0
  %432 = vmatprep.mubr.bf16.mxu0 0
  %433 = vmatmul.mubr.bf16.gmra.mxu0 %v315
  %v434 = vpop.f32.mrf.mxu0
  %v435 = vadd.f32 0.0, %v434
  %v436 = vpop.f32.mrf.mxu0
  %v437 = vpop.f32.mrf.mxu0
  %v438 = vadd.f32 0.0, %v437
  %v439 = vpop.f32.mrf.mxu0
  %440 = vmatprep.mubr.bf16.mxu0 0
  %441 = vmatmul.mubr.bf16.gmra.mxu0 %v318
  %v442 = vpop.f32.mrf.mxu0
  %v443 = vadd.f32 0.0, %v442
  %v444 = vpop.f32.mrf.mxu0
  %v445 = vpop.f32.mrf.mxu0
  %v446 = vpop.f32.mrf.mxu0
  %447 = vdwg.mxu0
  %v448 = vpack.c.bf16 %v438, %v435
  %v449 = vpack.c.bf16 %v443, %v443
  %v452 = vunpack.c.l.b16 %v448
  %v453 = vunpack.c.h.b16 %v448
  %v454 = vunpack.c.l.b16 %v449
  %v455 = vpack.c.b16 %v452, %v452
  %v456 = vpack.c.b16 %v453, %v453
  %v457 = vpack.c.b16 %v454, %v454
  %461 = vst.msk [vmem:[%s9] sm:$0xf] %vm291, %v455
  %462 = vst.msk [vmem:[%s9 + $0x4] sm:$0xf] %vm291, %v456
  %463 = vst.msk [vmem:[%s9 + $0x8] sm:$0x3] %vm294, %v457
  // Predicated region
  $region30: #{run.13} parent=0 // pred_check
    _
  $region31: #{run.13} parent=0 // pred_check_branch
    %465 = sbr.rel (0) target = $region33
  $region32: #{run.13} parent=0 // pred_region
    _
  $region33: #{run.13} parent=0 // pred_fallthru
    _
  // Predicated region
  $region34: #{run.13} parent=0 // pred_check
    _
  $region35: #{run.13} parent=0 // pred_check_branch
    %467 = sbr.rel (0) target = $region37
  $region36: #{run.13} parent=0 // pred_region
    _
  $region37: #{run.13} parent=0 // pred_fallthru
    _
  // Predicated region
  $region38: #{run.13} parent=0 // pred_check
    _
  $region39: #{run.13} parent=0 // pred_check_branch
    %469 = sbr.rel (0) target = $region41
  $region40: #{run.13} parent=0 // pred_region
    _
  $region41: #{run.13} parent=0 // pred_fallthru
    _
  // Predicated region
  $region42: #{run.13} parent=0 // pred_check
    _
  $region43: #{run.13} parent=0 // pred_check_branch
    %471 = sbr.rel (0) target = $region45
  $region44: #{run.13} parent=0 // pred_region
    _
  $region45: #{run.13} parent=0 // pred_fallthru
    _
  // Predicated region
  $region46: #{run.13} parent=0 // pred_check
    _
  $region47: #{run.13} parent=0 // pred_check_branch
    %473 = sbr.rel (0) target = $region49
  $region48: #{run.13} parent=0 // pred_region
    _
  $region49: #{run.13} parent=0 // pred_fallthru
    _
  // Predicated region
  $region50: #{run.13} parent=0 // pred_check
    _
  $region51: #{run.13} parent=0 // pred_check_branch
    %475 = sbr.rel (0) target = $region53
  $region52: #{run.13} parent=0 // pred_region
    _
  $region53: #{run.13} parent=0 // pred_fallthru
    _

// kernel: run.17
$region0: #{run.17}
  #allocation0 [shape = 'u32[]', space=smem, size = 0x4, offset = 0x4, fixed_abs, tag = 'smem constant byte address 0x4 - core index']
  #allocation1 [shape = 'u32[144,128]{1,0:T(1,128)}', space=vmem, size = 0x12000, scoped, tag = 'internal scratch']
  %s0 = inlined_call_operand.vmem [shape: bf16[20,32], index: 0, kind: input, shape index: {}]
  %s1 = inlined_call_operand.vmem [shape: bf16[32,64], index: 1, kind: input, shape index: {}]
  %s2 = inlined_call_operand.vmem [shape: f32[1,64], index: 2, kind: input, shape index: {}]
  %s3 = inlined_call_operand.vmem [shape: bf16[64,32], index: 3, kind: input, shape index: {}]
  %s4 = inlined_call_operand.vmem [shape: f32[1,32], index: 4, kind: input, shape index: {}]
  %s5 = inlined_call_operand.vmem [shape: bf16[32,32], index: 5, kind: input, shape index: {}]
  %s6 = inlined_call_operand.vmem [shape: bf16[32,32], index: 6, kind: input, shape index: {}]
  %s7 = inlined_call_operand.vmem [shape: bf16[20,32], index: 7, kind: output, shape index: {0}]
  %s8 = inlined_call_operand.hbm [shape: bf16[20,32], index: 8, kind: output, shape index: {1}]
  %s9 = inlined_call_operand.hbm [shape: bf16[20,32], index: 9, kind: output, shape index: {2}]
  %10 = xla_tuple %s7, %s8, %s9
  %s11 = sld [smem:[#allocation0]]
  $region54: #{run.17} parent=0
    _
  %s13 = ssub.s32 1, %s11
  %s14 = scalar_select 0, %s13, %s11
  $region1: #{run.17} parent=0
    #allocation2 [shape = 'u8[6144]{0}', space=vmem, size = 0x1800, scoped, tag = 'output window, operand 1, single buffered']
    #allocation3 [shape = 's32[1]{0}', space=sflag, size = 0x4, scoped, tag = 'scoped memory for run.17']
    #allocation4 [shape = 'u8[6144]{0}', space=vmem, size = 0x1800, scoped, tag = 'output window, operand 2, single buffered']
    #allocation5 [shape = 's32[1]{0}', space=sflag, size = 0x4, scoped, tag = 'scoped memory for run.17']
    %15 = vsyncpa [#allocation3], 0
    %16 = vsyncpa [#allocation5], 0
    // Predicated region
    $region2: #{run.17} parent=1 // pred_check
      _
    $region3: #{run.17} parent=1 // pred_check_branch
      %18 = sbr.rel (0) target = $region5
    $region4: #{run.17} parent=1 // pred_region
      _
    $region5: #{run.17} parent=1 // pred_fallthru
      _
    // Predicated region
    $region6: #{run.17} parent=1 // pred_check
      _
    $region7: #{run.17} parent=1 // pred_check_branch
      %20 = sbr.rel (0) target = $region9
    $region8: #{run.17} parent=1 // pred_region
      _
    $region9: #{run.17} parent=1 // pred_fallthru
      _
    // Predicated region
    $region10: #{run.17} parent=1 // pred_check
      _
    $region11: #{run.17} parent=1 // pred_check_branch
      %22 = sbr.rel (0) target = $region13
    $region12: #{run.17} parent=1 // pred_region
      _
    $region13: #{run.17} parent=1 // pred_fallthru
      _
    // Predicated region
    $region14: #{run.17} parent=1 // pred_check
      _
    $region15: #{run.17} parent=1 // pred_check_branch
      %24 = sbr.rel (0) target = $region17
    $region16: #{run.17} parent=1 // pred_region
      _
    $region17: #{run.17} parent=1 // pred_fallthru
      _
    // Predicated region
    $region18: #{run.17} parent=1 // pred_check
      _
    $region19: #{run.17} parent=1 // pred_check_branch
      %26 = sbr.rel (0) target = $region21
    $region20: #{run.17} parent=1 // pred_region
      _
    $region21: #{run.17} parent=1 // pred_fallthru
      _
    // Predicated region
    $region22: #{run.17} parent=1 // pred_check
      _
    $region23: #{run.17} parent=1 // pred_check_branch
      %28 = sbr.rel (0) target = $region25
    $region24: #{run.17} parent=1 // pred_region
      _
    $region25: #{run.17} parent=1 // pred_fallthru
      _
    // Predicated region
    $region26: #{run.17} parent=1 // pred_check
      _
    $region27: #{run.17} parent=1 // pred_check_branch
      %30 = sbr.rel (0) target = $region29
    $region28: #{run.17} parent=1 // pred_region
      _
    $region29: #{run.17} parent=1 // pred_fallthru
      _
    %v32 = vld [vmem:[%s0] sm:$0xf]
    %v33 = vld [vmem:[%s0 + $0x4] sm:$0xf]
    %v34 = vld [vmem:[%s0 + $0x8] sm:$0x3]
    %v35 = vld [vmem:[%s1] sm:$0xf]
    %v36 = vld [vmem:[%s1 + $0x4] sm:$0xf]
    %v37 = vld [vmem:[%s1 + $0x8] sm:$0xf]
    %v38 = vld [vmem:[%s1 + $0xc] sm:$0xf]
    %v39 = vld [vmem:[%s2] sm:$0x1]
    %v41 = vlaneseq
    %v42 = vshrl.u32 %v41, 7
    %v43 = vsub.s32 0, %v42
    %v44 = vrot.slane %v39, %v43
    %v49 = vunpack.c.l.b16 %v32
    %v50 = vunpack.c.l.b16 %v33
    %v51 = vunpack.c.l.b16 %v34
    %v52 = vpack.c.b16 %v50, %v49
    %v53 = vpack.c.b16 %v51, %v51
    %v58 = vunpack.c.l.b16 %v35
    %v59 = vunpack.c.l.b16 %v36
    %v60 = vunpack.c.l.b16 %v37
    %v61 = vunpack.c.l.b16 %v38
    %v62 = vpack.c.b16 %v59, %v58
    %v63 = vpack.c.b16 %v61, %v60
    %vm66 = vcmask 261120
    %v68 = vsel %vm66, %v52, 0
    %v71 = vsel %vm66, %v53, 0
    %73 = vmatprep.subr.bf16.mxu0 0
    %74 = vmatpush1.bf16.msra.mxu0 0
    %75 = vmatprep.subr.bf16.mxu0 0
    %76 = vmatpush1.bf16.msra.mxu0 0
    %77 = vmatprep.subr.bf16.mxu0 0
    %78 = vmatpush1.bf16.msra.mxu0 0
    %79 = vmatprep.subr.bf16.mxu0 0
    %80 = vmatpush1.bf16.msra.mxu0 0
    %81 = vmatprep.subr.bf16.mxu0 0
    %82 = vmatpush1.bf16.msra.mxu0 0
    %83 = vmatprep.subr.bf16.mxu0 0
    %84 = vmatpush1.bf16.msra.mxu0 0
    %85 = vmatprep.subr.bf16.mxu0 0
    %86 = vmatpush1.bf16.msra.mxu0 %v63
    %87 = vmatprep.subr.bf16.mxu0 0
    %88 = vmatpush1.bf16.msra.mxu0 %v62
    %89 = vmatprep.subr.bf16.mxu0 0
    %90 = vmatpush2.bf16.msra.mxu0 0
    %91 = vmatprep.subr.bf16.mxu0 0
    %92 = vmatpush2.bf16.msra.mxu0 0
    %93 = vmatprep.subr.bf16.mxu0 0
    %94 = vmatpush2.bf16.msra.mxu0 0
    %95 = vmatprep.subr.bf16.mxu0 0
    %96 = vmatpush2.bf16.msra.mxu0 0
    %97 = vmatprep.subr.bf16.mxu0 0
    %98 = vmatpush2.bf16.msra.mxu0 0
    %99 = vmatprep.subr.bf16.mxu0 0
    %100 = vmatpush2.bf16.msra.mxu0 0
    %101 = vmatprep.subr.bf16.mxu0 0
    %102 = vmatpush2.bf16.msra.mxu0 0
    %103 = vmatprep.subr.bf16.mxu0 0
    %104 = vmatpush2.bf16.msra.mxu0 0
    %105 = vmatprep.mubr.bf16.mxu0 0
    %106 = vmatmul.mubr.bf16.gmra.mxu0 %v68
    %v107 = vpop.f32.mrf.mxu0
    %v108 = vadd.f32 %v44, %v107
    %v109 = vpop.f32.mrf.mxu0
    %v110 = vpop.f32.mrf.mxu0
    %v111 = vadd.f32 %v44, %v110
    %v112 = vpop.f32.mrf.mxu0
    %113 = vmatprep.mubr.bf16.mxu0 0
    %114 = vmatmul.mubr.bf16.gmra.mxu0 %v71
    %v115 = vpop.f32.mrf.mxu0
    %v116 = vadd.f32 %v44, %v115
    %v117 = vpop.f32.mrf.mxu0
    %v118 = vpop.f32.mrf.mxu0
    %v119 = vpop.f32.mrf.mxu0
    %120 = vdwg.mxu0
    %v121 = vmul.f32 %v108, %v108
    %v122 = vmul.f32 %v111, %v111
    %v123 = vmul.f32 %v116, %v116
    %v124 = vmul.f32 %v108, %v121
    %v125 = vmul.f32 %v111, %v122
    %v126 = vmul.f32 %v116, %v123
    %v127 = vmul.f32 %v124, 0.044715
    %v128 = vmul.f32 %v125, 0.044715
    %v129 = vmul.f32 %v126, 0.044715
    %v130 = vadd.f32 %v108, %v127
    %v131 = vadd.f32 %v111, %v128
    %v132 = vadd.f32 %v116, %v129
    %v133 = vmul.f32 %v130, 0.7978846
    %v134 = vmul.f32 %v131, 0.7978846
    %v135 = vmul.f32 %v132, 0.7978846
    %v136 = vtanh.pop %v133
    %v137 = vtanh.pop %v134
    %v138 = vtanh.pop %v135
    %v139 = vadd.f32 %v136, 1.0
    %v140 = vadd.f32 %v137, 1.0
    %v141 = vadd.f32 %v138, 1.0
    %v142 = vmul.f32 %v139, 0.5
    %v143 = vmul.f32 %v140, 0.5
    %v144 = vmul.f32 %v141, 0.5
    %v145 = vmul.f32 %v108, %v142
    %v146 = vmul.f32 %v111, %v143
    %v147 = vmul.f32 %v116, %v144
    %v148 = vpack.c.bf16 %v146, %v145
    %v149 = vpack.c.bf16 %v147, %v147
    %v150 = vld [vmem:[%s3] sm:$0xf]
    %v151 = vld [vmem:[%s3 + $0x4] sm:$0xf]
    %v152 = vld [vmem:[%s3 + $0x8] sm:$0xf]
    %v153 = vld [vmem:[%s3 + $0xc] sm:$0xf]
    %v154 = vld [vmem:[%s3 + $0x10] sm:$0xf]
    %v155 = vld [vmem:[%s3 + $0x14] sm:$0xf]
    %v156 = vld [vmem:[%s3 + $0x18] sm:$0xf]
    %v157 = vld [vmem:[%s3 + $0x1c] sm:$0xf]
    %v158 = vld [vmem:[%s4] sm:$0x1]
    %v160 = vlaneseq
    %v161 = vshrl.u32 %v160, 7
    %v162 = vsub.s32 0, %v161
    %v163 = vrot.slane %v158, %v162
    %v173 = vunpack.c.l.b16 %v150
    %v174 = vunpack.c.l.b16 %v151
    %v175 = vunpack.c.l.b16 %v152
    %v176 = vunpack.c.l.b16 %v153
    %v177 = vunpack.c.l.b16 %v154
    %v178 = vunpack.c.l.b16 %v155
    %v179 = vunpack.c.l.b16 %v156
    %v180 = vunpack.c.l.b16 %v157
    %v181 = vpack.c.b16 %v174, %v173
    %v182 = vpack.c.b16 %v176, %v175
    %v183 = vpack.c.b16 %v178, %v177
    %v184 = vpack.c.b16 %v180, %v179
    %vm189 = vcmask 523264
    %v191 = vsel %vm189, %v148, 0
    %v194 = vsel %vm189, %v149, 0
    %196 = vmatprep.subr.bf16.mxu0 0
    %197 = vmatpush1.bf16.msra.mxu0 0
    %198 = vmatprep.subr.bf16.mxu0 0
    %199 = vmatpush1.bf16.msra.mxu0 0
    %200 = vmatprep.subr.bf16.mxu0 0
    %201 = vmatpush1.bf16.msra.mxu0 0
    %202 = vmatprep.subr.bf16.mxu0 0
    %203 = vmatpush1.bf16.msra.mxu0 0
    %204 = vmatprep.subr.bf16.mxu0 0
    %205 = vmatpush1.bf16.msra.mxu0 %v184
    %206 = vmatprep.subr.bf16.mxu0 0
    %207 = vmatpush1.bf16.msra.mxu0 %v183
    %208 = vmatprep.subr.bf16.mxu0 0
    %209 = vmatpush1.bf16.msra.mxu0 %v182
    %210 = vmatprep.subr.bf16.mxu0 0
    %211 = vmatpush1.bf16.msra.mxu0 %v181
    %212 = vmatprep.subr.bf16.mxu0 0
    %213 = vmatpush2.bf16.msra.mxu0 0
    %214 = vmatprep.subr.bf16.mxu0 0
    %215 = vmatpush2.bf16.msra.mxu0 0
    %216 = vmatprep.subr.bf16.mxu0 0
    %217 = vmatpush2.bf16.msra.mxu0 0
    %218 = vmatprep.subr.bf16.mxu0 0
    %219 = vmatpush2.bf16.msra.mxu0 0
    %220 = vmatprep.subr.bf16.mxu0 0
    %221 = vmatpush2.bf16.msra.mxu0 0
    %222 = vmatprep.subr.bf16.mxu0 0
    %223 = vmatpush2.bf16.msra.mxu0 0
    %224 = vmatprep.subr.bf16.mxu0 0
    %225 = vmatpush2.bf16.msra.mxu0 0
    %226 = vmatprep.subr.bf16.mxu0 0
    %227 = vmatpush2.bf16.msra.mxu0 0
    %228 = vmatprep.mubr.bf16.mxu0 0
    %229 = vmatmul.mubr.bf16.gmra.mxu0 %v191
    %v230 = vpop.f32.mrf.mxu0
    %v231 = vadd.f32 %v163, %v230
    %v232 = vpop.f32.mrf.mxu0
    %v233 = vpop.f32.mrf.mxu0
    %v234 = vadd.f32 %v163, %v233
    %v235 = vpop.f32.mrf.mxu0
    %236 = vmatprep.mubr.bf16.mxu0 0
    %237 = vmatmul.mubr.bf16.gmra.mxu0 %v194
    %v238 = vpop.f32.mrf.mxu0
    %v239 = vadd.f32 %v163, %v238
    %v240 = vpop.f32.mrf.mxu0
    %v241 = vpop.f32.mrf.mxu0
    %v242 = vpop.f32.mrf.mxu0
    %243 = vdwg.mxu0
    %v244 = vunpack.c.l.bf16 %v32
    %v245 = vunpack.c.l.bf16 %v33
    %v246 = vunpack.c.l.bf16 %v34
    %v247 = vmul.f32 %v244, 0.999995
    %v248 = vmul.f32 %v245, 0.999995
    %v249 = vmul.f32 %v246, 0.999995
    %v250 = vadd.f32 %v231, %v247
    %v251 = vadd.f32 %v234, %v248
    %v252 = vadd.f32 %v239, %v249
    %v253 = vmul.f32 %v250, %v250
    %v254 = vmul.f32 %v251, %v251
    %v255 = vmul.f32 %v252, %v252
    %v256 = vmul.f32 %v250, %v253
    %v257 = vmul.f32 %v251, %v254
    %v258 = vmul.f32 %v252, %v255
    %v259 = vmul.f32 %v256, 0.044715
    %v260 = vmul.f32 %v257, 0.044715
    %v261 = vmul.f32 %v258, 0.044715
    %v262 = vadd.f32 %v250, %v259
    %v263 = vadd.f32 %v251, %v260
    %v264 = vadd.f32 %v252, %v261
    %v265 = vmul.f32 %v262, 0.7978846
    %v266 = vmul.f32 %v263, 0.7978846
    %v267 = vmul.f32 %v264, 0.7978846
    %v268 = vtanh.pop %v265
    %v269 = vtanh.pop %v266
    %v270 = vtanh.pop %v267
    %v271 = vadd.f32 %v268, 1.0
    %v272 = vadd.f32 %v269, 1.0
    %v273 = vadd.f32 %v270, 1.0
    %v274 = vmul.f32 %v271, 0.5
    %v275 = vmul.f32 %v272, 0.5
    %v276 = vmul.f32 %v273, 0.5
    %v277 = vmul.f32 %v250, %v274
    %v278 = vmul.f32 %v251, %v275
    %v279 = vmul.f32 %v252, %v276
    %v280 = vpack.c.bf16 %v278, %v277
    %v281 = vpack.c.bf16 %v279, %v279
    %v284 = vunpack.c.l.b16 %v280
    %v285 = vunpack.c.h.b16 %v280
    %v286 = vunpack.c.l.b16 %v281
    %v287 = vpack.c.b16 %v284, %v284
    %v288 = vpack.c.b16 %v285, %v285
    %v289 = vpack.c.b16 %v286, %v286
    %vm293 = vcmask 257024
    %294 = vst.msk [vmem:[%s7] sm:$0xf] %vm293, %v287
    %295 = vst.msk [vmem:[%s7 + $0x4] sm:$0xf] %vm293, %v288
    %vm296 = vcmask 254976
    %297 = vst.msk [vmem:[%s7 + $0x8] sm:$0x3] %vm296, %v289
    %v298 = vpack.c.bf16 %v251, %v250
    %v299 = vpack.c.bf16 %v252, %v252
    %v300 = vld [vmem:[%s5] sm:$0xf]
    %v301 = vld [vmem:[%s5 + $0x4] sm:$0xf]
    %v302 = vld [vmem:[%s5 + $0x8] sm:$0xf]
    %v303 = vld [vmem:[%s5 + $0xc] sm:$0xf]
    %v308 = vunpack.c.l.b16 %v300
    %v309 = vunpack.c.l.b16 %v301
    %v310 = vunpack.c.l.b16 %v302
    %v311 = vunpack.c.l.b16 %v303
    %v312 = vpack.c.b16 %v309, %v308
    %v313 = vpack.c.b16 %v311, %v310
    %v317 = vsel %vm66, %v298, 0
    %v320 = vsel %vm66, %v299, 0
    %322 = vmatprep.subr.bf16.mxu0 0
    %323 = vmatpush1.bf16.msra.mxu0 0
    %324 = vmatprep.subr.bf16.mxu0 0
    %325 = vmatpush1.bf16.msra.mxu0 0
    %326 = vmatprep.subr.bf16.mxu0 0
    %327 = vmatpush1.bf16.msra.mxu0 0
    %328 = vmatprep.subr.bf16.mxu0 0
    %329 = vmatpush1.bf16.msra.mxu0 0
    %330 = vmatprep.subr.bf16.mxu0 0
    %331 = vmatpush1.bf16.msra.mxu0 0
    %332 = vmatprep.subr.bf16.mxu0 0
    %333 = vmatpush1.bf16.msra.mxu0 0
    %334 = vmatprep.subr.bf16.mxu0 0
    %335 = vmatpush1.bf16.msra.mxu0 %v313
    %336 = vmatprep.subr.bf16.mxu0 0
    %337 = vmatpush1.bf16.msra.mxu0 %v312
    %338 = vmatprep.subr.bf16.mxu0 0
    %339 = vmatpush2.bf16.msra.mxu0 0
    %340 = vmatprep.subr.bf16.mxu0 0
    %341 = vmatpush2.bf16.msra.mxu0 0
    %342 = vmatprep.subr.bf16.mxu0 0
    %343 = vmatpush2.bf16.msra.mxu0 0
    %344 = vmatprep.subr.bf16.mxu0 0
    %345 = vmatpush2.bf16.msra.mxu0 0
    %346 = vmatprep.subr.bf16.mxu0 0
    %347 = vmatpush2.bf16.msra.mxu0 0
    %348 = vmatprep.subr.bf16.mxu0 0
    %349 = vmatpush2.bf16.msra.mxu0 0
    %350 = vmatprep.subr.bf16.mxu0 0
    %351 = vmatpush2.bf16.msra.mxu0 0
    %352 = vmatprep.subr.bf16.mxu0 0
    %353 = vmatpush2.bf16.msra.mxu0 0
    %354 = vmatprep.mubr.bf16.mxu0 0
    %355 = vmatmul.mubr.bf16.gmra.mxu0 %v317
    %v356 = vpop.f32.mrf.mxu0
    %v357 = vadd.f32 0.0, %v356
    %v358 = vpop.f32.mrf.mxu0
    %v359 = vpop.f32.mrf.mxu0
    %v360 = vadd.f32 0.0, %v359
    %v361 = vpop.f32.mrf.mxu0
    %362 = vmatprep.mubr.bf16.mxu0 0
    %363 = vmatmul.mubr.bf16.gmra.mxu0 %v320
    %v364 = vpop.f32.mrf.mxu0
    %v365 = vadd.f32 0.0, %v364
    %v366 = vpop.f32.mrf.mxu0
    %v367 = vpop.f32.mrf.mxu0
    %v368 = vpop.f32.mrf.mxu0
    %369 = vdwg.mxu0
    %v370 = vpack.c.bf16 %v360, %v357
    %v371 = vpack.c.bf16 %v365, %v365
    %v374 = vunpack.c.l.b16 %v370
    %v375 = vunpack.c.h.b16 %v370
    %v376 = vunpack.c.l.b16 %v371
    %v377 = vpack.c.b16 %v374, %v374
    %v378 = vpack.c.b16 %v375, %v375
    %v379 = vpack.c.b16 %v376, %v376
    %383 = vst.msk [vmem:[#allocation2] sm:$0xf] %vm293, %v377
    %384 = vst.msk [vmem:[#allocation2 + $0x4] sm:$0xf] %vm293, %v378
    %385 = vst.msk [vmem:[#allocation2 + $0x8] sm:$0x3] %vm296, %v379
    %v386 = vld [vmem:[%s6] sm:$0xf]
    %v387 = vld [vmem:[%s6 + $0x4] sm:$0xf]
    %v388 = vld [vmem:[%s6 + $0x8] sm:$0xf]
    %v389 = vld [vmem:[%s6 + $0xc] sm:$0xf]
    %v394 = vunpack.c.l.b16 %v386
    %v395 = vunpack.c.l.b16 %v387
    %v396 = vunpack.c.l.b16 %v388
    %v397 = vunpack.c.l.b16 %v389
    %v398 = vpack.c.b16 %v395, %v394
    %v399 = vpack.c.b16 %v397, %v396
    %402 = vmatprep.subr.bf16.mxu0 0
    %403 = vmatpush1.bf16.msra.mxu0 0
    %404 = vmatprep.subr.bf16.mxu0 0
    %405 = vmatpush1.bf16.msra.mxu0 0
    %406 = vmatprep.subr.bf16.mxu0 0
    %407 = vmatpush1.bf16.msra.mxu0 0
    %408 = vmatprep.subr.bf16.mxu0 0
    %409 = vmatpush1.bf16.msra.mxu0 0
    %410 = vmatprep.subr.bf16.mxu0 0
    %411 = vmatpush1.bf16.msra.mxu0 0
    %412 = vmatprep.subr.bf16.mxu0 0
    %413 = vmatpush1.bf16.msra.mxu0 0
    %414 = vmatprep.subr.bf16.mxu0 0
    %415 = vmatpush1.bf16.msra.mxu0 %v399
    %416 = vmatprep.subr.bf16.mxu0 0
    %417 = vmatpush1.bf16.msra.mxu0 %v398
    %418 = vmatprep.subr.bf16.mxu0 0
    %419 = vmatpush2.bf16.msra.mxu0 0
    %420 = vmatprep.subr.bf16.mxu0 0
    %421 = vmatpush2.bf16.msra.mxu0 0
    %422 = vmatprep.subr.bf16.mxu0 0
    %423 = vmatpush2.bf16.msra.mxu0 0
    %424 = vmatprep.subr.bf16.mxu0 0
    %425 = vmatpush2.bf16.msra.mxu0 0
    %426 = vmatprep.subr.bf16.mxu0 0
    %427 = vmatpush2.bf16.msra.mxu0 0
    %428 = vmatprep.subr.bf16.mxu0 0
    %429 = vmatpush2.bf16.msra.mxu0 0
    %430 = vmatprep.subr.bf16.mxu0 0
    %431 = vmatpush2.bf16.msra.mxu0 0
    %432 = vmatprep.subr.bf16.mxu0 0
    %433 = vmatpush2.bf16.msra.mxu0 0
    %434 = vmatprep.mubr.bf16.mxu0 0
    %435 = vmatmul.mubr.bf16.gmra.mxu0 %v317
    %v436 = vpop.f32.mrf.mxu0
    %v437 = vadd.f32 0.0, %v436
    %v438 = vpop.f32.mrf.mxu0
    %v439 = vpop.f32.mrf.mxu0
    %v440 = vadd.f32 0.0, %v439
    %v441 = vpop.f32.mrf.mxu0
    %442 = vmatprep.mubr.bf16.mxu0 0
    %443 = vmatmul.mubr.bf16.gmra.mxu0 %v320
    %v444 = vpop.f32.mrf.mxu0
    %v445 = vadd.f32 0.0, %v444
    %v446 = vpop.f32.mrf.mxu0
    %v447 = vpop.f32.mrf.mxu0
    %v448 = vpop.f32.mrf.mxu0
    %449 = vdwg.mxu0
    %v450 = vpack.c.bf16 %v440, %v437
    %v451 = vpack.c.bf16 %v445, %v445
    %v454 = vunpack.c.l.b16 %v450
    %v455 = vunpack.c.h.b16 %v450
    %v456 = vunpack.c.l.b16 %v451
    %v457 = vpack.c.b16 %v454, %v454
    %v458 = vpack.c.b16 %v455, %v455
    %v459 = vpack.c.b16 %v456, %v456
    %463 = vst.msk [vmem:[#allocation4] sm:$0xf] %vm293, %v457
    %464 = vst.msk [vmem:[#allocation4 + $0x4] sm:$0xf] %vm293, %v458
    %465 = vst.msk [vmem:[#allocation4 + $0x8] sm:$0x3] %vm296, %v459
    // Predicated region
    $region30: #{run.17} parent=1 // pred_check
      _
    $region31: #{run.17} parent=1 // pred_check_branch
      %467 = sbr.rel (0) target = $region33
    $region32: #{run.17} parent=1 // pred_region
      _
    $region33: #{run.17} parent=1 // pred_fallthru
      _
    // Predicated region
    $region34: #{run.17} parent=1 // pred_check
      _
    $region35: #{run.17} parent=1 // pred_check_branch
      %469 = sbr.rel (0) target = $region37
    $region36: #{run.17} parent=1 // pred_region
      %s471 = ssub.s32 192, 192
      %472 = vsyncadd [#allocation3], %s471
      %s473 = sshll.u32 [#allocation2], 4
      %s474 = int_to_ptr.vmem [resolvable:$true] %s473
      %479 = dma.vmem_to_hbm [thread:$0]  %s474, 192, %s8, [#allocation3], 64, 64, 4
    $region37: #{run.17} parent=1 // pred_fallthru
      _
    // Predicated region
    $region38: #{run.17} parent=1 // pred_check
      _
    $region39: #{run.17} parent=1 // pred_check_branch
      %481 = sbr.rel (0) target = $region41
    $region40: #{run.17} parent=1 // pred_region
      %s483 = ssub.s32 192, 192
      %484 = vsyncadd [#allocation5], %s483
      %s485 = sshll.u32 [#allocation4], 4
      %s486 = int_to_ptr.vmem [resolvable:$true] %s485
      %491 = dma.vmem_to_hbm [thread:$0]  %s486, 192, %s9, [#allocation5], 64, 64, 4
    $region41: #{run.17} parent=1 // pred_fallthru
      _
    // Predicated region
    $region42: #{run.17} parent=1 // pred_check
      _
    $region43: #{run.17} parent=1 // pred_check_branch
      %493 = sbr.rel (0) target = $region45
    $region44: #{run.17} parent=1 // pred_region
      _
    $region45: #{run.17} parent=1 // pred_fallthru
      _
    // Predicated region
    $region46: #{run.17} parent=1 // pred_check
      _
    $region47: #{run.17} parent=1 // pred_check_branch
      %495 = sbr.rel (0) target = $region49
    $region48: #{run.17} parent=1 // pred_region
      %496 = dma.done [#allocation3], 192
    $region49: #{run.17} parent=1 // pred_fallthru
      _
    // Predicated region
    $region50: #{run.17} parent=1 // pred_check
      _
    $region51: #{run.17} parent=1 // pred_check_branch
      %498 = sbr.rel (0) target = $region53
    $region52: #{run.17} parent=1 // pred_region
      %499 = dma.done [#allocation5], 192
    $region53: #{run.17} parent=1 // pred_fallthru
      _
    %500 = vsyncpa [#allocation3], 1
    %501 = vsyncpa [#allocation5], 1

</llo_original>
